<compile_context>
chip_gen: v7x
topology: tpu7x:2x2x1
jax: 0.10.0
libtpu: 0.0.40
codegen_flags: <defaults>
</compile_context>

<pallas_src>
import functools

import numpy as np

import jax
import jax.numpy as jnp
from jax import lax
from jax.experimental import pallas as pl
from jax.experimental.pallas import tpu as pltpu

HIDDEN = 32          # hiddenSize constructor arg (default 10; small value chosen)
NUM_CLASSES = 6
LANE = 128           # TPU lane width; kernel output minor dims padded to it
GATE = 128           # per-gate lane stride inside the GRU (hidden padded to 128)
CP1 = 32             # conv1 out channels (25) padded to 32 in the banded layout
CP2 = 64             # conv2 out channels (50) padded to 64 inside conv3 patches
KH1, KW1 = 3, 2      # conv1 kernel
KH2, KW2 = 4, 3      # conv2 kernel
KH3, KW3 = 3, 3      # conv3 kernel

_VMEM = pl.BlockSpec(memory_space=pltpu.MemorySpace.VMEM)


def _derive_dims(batch, height, width):
    oh1, ow1 = height - KH1 + 1, width - KW1 + 1
    ph1, pw1 = oh1 // 2, ow1 // 2
    oh2, ow2 = ph1 - KH2 + 1, pw1 - KW2 + 1
    ph2, pw2 = oh2 // 2, ow2 // 2
    oh3, t = ph2 - KH3 + 1, pw2 - KW3 + 1
    assert oh3 == 1, "height must collapse to 1 before x.squeeze(2)"
    assert t >= 1
    return (batch, oh1, ow1, ph1, pw1, oh2, ow2, ph2, pw2, t)


# --------------------------------------------------------------------------
# The fused Pallas kernel
# --------------------------------------------------------------------------
def _crnn2_fused_kernel(x_ref,                      # (B, W, H) f32, W in sublanes
                        wband_ref, b1_ref,          # (KW1, H, OH1*CP1) bf16, (1, OH1*CP1) f32
                        w2_ref, b2_ref,             # (KH2*KW2*CP1, 128) bf16, (1, 128) f32
                        w3_ref, b3_ref,             # (KH3*KW3*CP2, 128) bf16, (1, 128) f32
                        wih_ref, bih_ref,           # (128, 3*128) bf16, (1, 3*128) f32
                        whh_ref, bhh_ref,           # (128, 3*128) bf16, (1, 3*128) f32
                        wfc_ref, bfc_ref,           # (128, 128) bf16, (1, 128) f32
                        o_ref,                      # (B, 128) f32
                        *, dims):
    (B, OH1, OW1, PH1, PW1, OH2, OW2, PH2, PW2, T) = dims
    bf16, f32 = jnp.bfloat16, jnp.float32

    f3_list = []
    for b in range(B):                               # B is tiny & static: unroll
        xt = x_ref[b]                                # (W, H)

        # ---- conv1 + bias + ReLU: banded matmul over the input height ------
        # f1[ow, oh*CP1 + c] = sum_{i,j} x[b, oh+i, ow+j] * w1[c, i, j]
        acc = None
        for j in range(KW1):
            part = jnp.dot(xt[j:j + OW1, :].astype(bf16), wband_ref[j],
                           preferred_element_type=f32)      # (OW1, OH1*CP1)
            acc = part if acc is None else acc + part
        f1 = jnp.maximum(acc + b1_ref[...], 0.0)

        # ---- maxpool 2x2: oh pairs = CP1-wide lane groups, ow pairs = rows --
        cols = [jnp.maximum(f1[:, (2 * ph) * CP1:(2 * ph) * CP1 + CP1],
                            f1[:, (2 * ph + 1) * CP1:(2 * ph + 1) * CP1 + CP1])
                for ph in range(PH1)]
        g1 = jnp.concatenate(cols, axis=1)                   # (OW1, PH1*CP1)
        rows = [jnp.maximum(g1[2 * pw:2 * pw + 1, :],
                            g1[2 * pw + 1:2 * pw + 2, :]) for pw in range(PW1)]
        p1 = jnp.concatenate(rows, axis=0)                   # (PW1, PH1*CP1)

        # ---- conv2 + bias + ReLU: in-kernel im2col, one matmul per batch ----
        groups = []
        for oh in range(OH2):
            taps = [p1[j:j + OW2, (oh + i) * CP1:(oh + i) * CP1 + CP1]
                    for i in range(KH2) for j in range(KW2)]
            groups.append(jnp.concatenate(taps, axis=1))     # (OW2, KH2*KW2*CP1)
        pat2 = jnp.concatenate(groups, axis=0).astype(bf16)  # (OH2*OW2, 384)
        f2 = jnp.maximum(
            jnp.dot(pat2, w2_ref[...], preferred_element_type=f32) + b2_ref[...],
            0.0)                                             # (OH2*OW2, 128)

        # ---- maxpool 2x2 on f2 (rows are oh2*OW2 + ow2) ---------------------
        p2 = []
        for ph in range(PH2):
            q = jnp.maximum(f2[(2 * ph) * OW2:(2 * ph) * OW2 + OW2, :],
                            f2[(2 * ph + 1) * OW2:(2 * ph + 1) * OW2 + OW2, :])
            prs = [jnp.maximum(q[2 * pw:2 * pw + 1, :],
                               q[2 * pw + 1:2 * pw + 2, :]) for pw in range(PW2)]
            p2.append(jnp.concatenate(prs, axis=0))          # (PW2, 128)

        # ---- conv3 + bias + ReLU: output height 1, width T ------------------
        taps3 = [p2[i][j:j + T, :CP2]
                 for i in range(KH3) for j in range(KW3)]
        pat3 = jnp.concatenate(taps3, axis=1).astype(bf16)   # (T, KH3*KW3*CP2)
        f3 = jnp.maximum(
            jnp.dot(pat3, w3_ref[...], preferred_element_type=f32) + b3_ref[...],
            0.0)                                             # (T, 128)
        f3_list.append(f3)

    # ---- GRU: time-major rows (t*B + b); input projection hoisted -----------
    seq = jnp.concatenate([f3_list[b][t:t + 1, :]
                           for t in range(T) for b in range(B)], axis=0)
    gi_all = jnp.dot(seq.astype(bf16), wih_ref[...],
                     preferred_element_type=f32) + bih_ref[...]    # (T*B, 384)

    whh = whh_ref[...]
    bhh = bhh_ref[...]
    # Pad-lane invariant: all pad entries of wih/whh/bih/bhh are exactly 0, so
    # hidden lanes >= HIDDEN stay exactly 0 through the recurrence.
    h = jnp.zeros((B, GATE), f32)
    m = None
    for t in range(T):                                   # T tiny & static: unroll
        gi = gi_all[t * B:(t + 1) * B, :]
        gh = jnp.dot(h.astype(bf16), whh, preferred_element_type=f32) + bhh
        r = jax.nn.sigmoid(gi[:, 0:GATE] + gh[:, 0:GATE])
        z = jax.nn.sigmoid(gi[:, GATE:2 * GATE] + gh[:, GATE:2 * GATE])
        n = jnp.tanh(gi[:, 2 * GATE:3 * GATE] + r * gh[:, 2 * GATE:3 * GATE])
        h = (1.0 - z) * n + z * h
        m = h if m is None else jnp.maximum(m, h)        # max over time

    # ---- temporal max -> Linear(hidden, 6), 128 lane-dense output -----------
    o_ref[...] = (jnp.dot(m.astype(bf16), wfc_ref[...],
                          preferred_element_type=f32) + bfc_ref[...])


# --------------------------------------------------------------------------
# Host-side weight preparation (one-time, outside the hot path)
# --------------------------------------------------------------------------
def prepare_params(p, hidden, height, width):
    Hh = hidden
    assert Hh <= GATE
    _, OH1, *_ = _derive_dims(1, height, width)

    def npa(a):
        return np.asarray(a, np.float32)

    w1, b1 = npa(p["w1"]), npa(p["b1"])           # (25,1,3,2), (25,)
    w2, b2 = npa(p["w2"]), npa(p["b2"])           # (50,25,4,3), (50,)
    w3, b3 = npa(p["w3"]), npa(p["b3"])           # (100,50,3,3), (100,)
    wih, whh = npa(p["wih"]), npa(p["whh"])       # (3H,100), (3H,H)
    bih, bhh = npa(p["bih"]), npa(p["bhh"])
    wfc, bfc = npa(p["wfc"]), npa(p["bfc"])       # (6,H), (6,)

    c1, c2, c3 = w1.shape[0], w2.shape[0], w3.shape[0]
    assert c1 <= CP1 and c2 <= CP2 and c3 <= LANE

    # conv1 as a banded matmul over input height: lanes = oh*CP1 + cout.
    wband = np.zeros((KW1, height, OH1 * CP1), np.float32)
    b1t = np.zeros((1, OH1 * CP1), np.float32)
    for oh in range(OH1):
        b1t[0, oh * CP1: oh * CP1 + c1] = b1
        for i in range(KH1):
            for j in range(KW1):
                wband[j, oh + i, oh * CP1: oh * CP1 + c1] = w1[:, 0, i, j]

    # conv2 / conv3 im2col weights: tap-major rows, per-tap channel pads,
    # lane-dense 128-wide output channels.
    w2m = np.zeros((KH2 * KW2 * CP1, LANE), np.float32)
    for i in range(KH2):
        for j in range(KW2):
            r0 = (i * KW2 + j) * CP1
            w2m[r0:r0 + c1, :c2] = w2[:, :, i, j].T
    b2v = np.zeros((1, LANE), np.float32)
    b2v[0, :c2] = b2

    w3m = np.zeros((KH3 * KW3 * CP2, LANE), np.float32)
    for i in range(KH3):
        for j in range(KW3):
            r0 = (i * KW3 + j) * CP2
            w3m[r0:r0 + c2, :c3] = w3[:, :, i, j].T
    b3v = np.zeros((1, LANE), np.float32)
    b3v[0, :c3] = b3

    # GRU, torch gate order [r, z, n]; each gate gets a 128-lane block.
    wihm = np.zeros((LANE, 3 * GATE), np.float32)
    whhm = np.zeros((GATE, 3 * GATE), np.float32)
    bihv = np.zeros((1, 3 * GATE), np.float32)
    bhhv = np.zeros((1, 3 * GATE), np.float32)
    for g in range(3):
        wihm[:c3, g * GATE: g * GATE + Hh] = wih[g * Hh:(g + 1) * Hh, :].T
        whhm[:Hh, g * GATE: g * GATE + Hh] = whh[g * Hh:(g + 1) * Hh, :].T
        bihv[0, g * GATE: g * GATE + Hh] = bih[g * Hh:(g + 1) * Hh]
        bhhv[0, g * GATE: g * GATE + Hh] = bhh[g * Hh:(g + 1) * Hh]

    wfcm = np.zeros((GATE, LANE), np.float32)
    wfcm[:Hh, :wfc.shape[0]] = wfc.T
    bfcv = np.zeros((1, LANE), np.float32)
    bfcv[0, :wfc.shape[0]] = bfc

    # Cheap insurance: the GRU pad-lane invariant needs exact zeros here.
    for g in range(3):
        assert not wihm[:, g * GATE + Hh:(g + 1) * GATE].any()
        assert not whhm[:, g * GATE + Hh:(g + 1) * GATE].any()
        assert not bihv[0, g * GATE + Hh:(g + 1) * GATE].any()
        assert not bhhv[0, g * GATE + Hh:(g + 1) * GATE].any()
    assert not whhm[Hh:, :].any()

    bf16, f32 = jnp.bfloat16, jnp.float32
    return {
        "wband": jnp.asarray(wband, bf16), "b1": jnp.asarray(b1t, f32),
        "w2": jnp.asarray(w2m, bf16), "b2": jnp.asarray(b2v, f32),
        "w3": jnp.asarray(w3m, bf16), "b3": jnp.asarray(b3v, f32),
        "wih": jnp.asarray(wihm, bf16), "bih": jnp.asarray(bihv, f32),
        "whh": jnp.asarray(whhm, bf16), "bhh": jnp.asarray(bhhv, f32),
        "wfc": jnp.asarray(wfcm, bf16), "bfc": jnp.asarray(bfcv, f32),
    }


# --------------------------------------------------------------------------
# Full CRNN2 forward: one pallas_call, two tiny XLA layout ops
# --------------------------------------------------------------------------
@jax.jit
def crnn2_forward(x, pp):
    B, height, width = x.shape
    dims = _derive_dims(B, height, width)
    (_, OH1, OW1, PH1, PW1, OH2, OW2, PH2, PW2, T) = dims

    # Width into sublanes for the conv1 banded matmul (2.3 KiB transpose).
    xt = jnp.transpose(x.astype(jnp.float32), (0, 2, 1))      # (B, W, H)

    kernel = functools.partial(_crnn2_fused_kernel, dims=dims)
    flops = (2 * B * OW1 * height * OH1 * CP1
             + 2 * B * OH2 * OW2 * KH2 * KW2 * CP1 * LANE
             + 2 * B * T * KH3 * KW3 * CP2 * LANE
             + 2 * T * B * LANE * 3 * GATE
             + 2 * T * B * GATE * 3 * GATE
             + 2 * B * GATE * LANE)
    trans = T * B * 3 * GATE
    bytes_acc = int(sum(a.size * a.dtype.itemsize for a in pp.values())
                    + xt.size * 4 + B * LANE * 4)

    out = pl.pallas_call(
        kernel,
        out_shape=jax.ShapeDtypeStruct((B, LANE), jnp.float32),
        in_specs=[_VMEM] * 13,
        out_specs=_VMEM,
        cost_estimate=pl.CostEstimate(flops=flops, transcendentals=trans,
                                      bytes_accessed=bytes_acc),
    )(xt, pp["wband"], pp["b1"], pp["w2"], pp["b2"], pp["w3"], pp["b3"],
      pp["wih"], pp["bih"], pp["whh"], pp["bhh"], pp["wfc"], pp["bfc"])
    return out[:, :NUM_CLASSES]


# --------------------------------------------------------------------------
# Pure-JAX reference (for sanity check)
# --------------------------------------------------------------------------
def _maxpool2x2_nchw(x):
    B, C, H, W = x.shape
    x = x[:, :, :(H // 2) * 2, :(W // 2) * 2]
    return x.reshape(B, C, H // 2, 2, W // 2, 2).max(axis=(3, 5))


def _gru_cell_ref(x, h, wih, whh, bih, bhh, H):
    gi = x @ wih.T + bih
    gh = h @ whh.T + bhh
    r = jax.nn.sigmoid(gi[:, :H] + gh[:, :H])
    z = jax.nn.sigmoid(gi[:, H:2 * H] + gh[:, H:2 * H])
    n = jnp.tanh(gi[:, 2 * H:] + r * gh[:, 2 * H:])
    return (1.0 - z) * n + z * h


def reference_forward(x, p, hidden=HIDDEN):
    dn = ("NCHW", "OIHW", "NCHW")
    conv = functools.partial(lax.conv_general_dilated, window_strides=(1, 1),
                             padding="VALID", dimension_numbers=dn,
                             precision=lax.Precision.HIGHEST)
    y = x[:, None, :, :]
    y = jnp.maximum(conv(y, p["w1"]) + p["b1"][None, :, None, None], 0.0)
    y = _maxpool2x2_nchw(y)
    y = jnp.maximum(conv(y, p["w2"]) + p["b2"][None, :, None, None], 0.0)
    y = _maxpool2x2_nchw(y)
    y = jnp.maximum(conv(y, p["w3"]) + p["b3"][None, :, None, None], 0.0)
    seq = jnp.squeeze(y, axis=2).transpose(0, 2, 1)       # (B, T, 100)
    B, T, _ = seq.shape
    h = jnp.zeros((B, hidden), jnp.float32)
    outs = []
    for t in range(T):
        h = _gru_cell_ref(seq[:, t], h, p["wih"], p["whh"], p["bih"],
                          p["bhh"], hidden)
        outs.append(h)
    m = jnp.stack(outs, axis=1).max(axis=1)
    return m @ p["wfc"].T + p["bfc"]


# --------------------------------------------------------------------------
# Deterministic parameter init (shapes follow the PyTorch __init__)
# --------------------------------------------------------------------------
def init_params(key, hidden=HIDDEN):
    ks = list(jax.random.split(key, 12))

    def u(k, shape, scale):
        return jax.random.uniform(k, shape, jnp.float32, -scale, scale)

    p = {}
    p["w1"] = u(ks[0], (25, 1, 3, 2), 0.3)        # Conv2d(1, 25, [3, 2])
    p["b1"] = u(ks[1], (25,), 0.3)
    p["w2"] = u(ks[2], (50, 25, 4, 3), 0.06)      # Conv2d(25, 50, [4, 3])
    p["b2"] = u(ks[3], (50,), 0.06)
    p["w3"] = u(ks[4], (100, 50, 3, 3), 0.05)     # Conv2d(50, 100, 3)
    p["b3"] = u(ks[5], (100,), 0.05)
    # GRU(input=100, hidden, num_layers=1, batch_first), torch layout (3H, in)
    s = 1.0 / float(hidden) ** 0.5
    p["wih"] = u(ks[6], (3 * hidden, 100), s)
    p["whh"] = u(ks[7], (3 * hidden, hidden), s)
    p["bih"] = u(ks[8], (3 * hidden,), s)
    p["bhh"] = u(ks[9], (3 * hidden,), s)
    # Linear(hidden, 6)
    p["wfc"] = u(ks[10], (NUM_CLASSES, hidden), s)
    p["bfc"] = u(ks[11], (NUM_CLASSES,), s)
    return p


if __name__ == "__main__":
    key = jax.random.PRNGKey(0)
    kx, kp = jax.random.split(key)

    # Input (B, H, W): H=20, W=29 so the conv stack collapses height to 1
    # before x.squeeze(2) and the GRU sequence length is T=4.
    x = jax.random.normal(kx, (2, 20, 29), jnp.float32)
    params = init_params(kp, HIDDEN)
    prepped = prepare_params(params, HIDDEN, 20, 29)

    out = jax.block_until_ready(crnn2_forward(x, prepped))
    assert out.shape == (2, NUM_CLASSES), out.shape

    ref = jax.block_until_ready(reference_forward(x, params, HIDDEN))
    max_err = float(jnp.max(jnp.abs(out - ref)))
    # Tolerance accommodates the bf16 matmul operands (accumulation is f32).
    assert max_err < 5e-2, f"mismatch vs reference: {max_err}"

    print("KERNEL_OK")
</pallas_src>

<mosaic_0001>
module attributes {stable_mosaic.version = 11 : i64} {
  func.func @_crnn2_fused_kernel(%arg0: memref<2x29x20xf32, #tpu.memory_space<vmem>>, %arg1: memref<2x20x576xbf16, #tpu.memory_space<vmem>>, %arg2: memref<1x576xf32, #tpu.memory_space<vmem>>, %arg3: memref<384x128xbf16, #tpu.memory_space<vmem>>, %arg4: memref<1x128xf32, #tpu.memory_space<vmem>>, %arg5: memref<576x128xbf16, #tpu.memory_space<vmem>>, %arg6: memref<1x128xf32, #tpu.memory_space<vmem>>, %arg7: memref<128x384xbf16, #tpu.memory_space<vmem>>, %arg8: memref<1x384xf32, #tpu.memory_space<vmem>>, %arg9: memref<128x384xbf16, #tpu.memory_space<vmem>>, %arg10: memref<1x384xf32, #tpu.memory_space<vmem>>, %arg11: memref<128x128xbf16, #tpu.memory_space<vmem>>, %arg12: memref<1x128xf32, #tpu.memory_space<vmem>>, %arg13: memref<2x128xf32, #tpu.memory_space<vmem>>) attributes {dimension_semantics = [], scalar_prefetch = 0 : i64, scratch_operands = 0 : i64, tpu.core_type = #tpu.core_type<tc>} {
    %c0 = arith.constant 0 : index
    %c0_0 = arith.constant 0 : index
    %c0_1 = arith.constant 0 : index
    %0 = vector.load %arg0[%c0, %c0_0, %c0_1] : memref<2x29x20xf32, #tpu.memory_space<vmem>>, vector<1x29x20xf32>
    %1 = vector.shape_cast %0 : vector<1x29x20xf32> to vector<29x20xf32>
    %2 = vector.extract_strided_slice %1 {offsets = [0, 0], sizes = [28, 20], strides = [1, 1]} : vector<29x20xf32> to vector<28x20xf32>
    %3 = arith.truncf %2 : vector<28x20xf32> to vector<28x20xbf16>
    %c0_2 = arith.constant 0 : index
    %c0_3 = arith.constant 0 : index
    %c0_4 = arith.constant 0 : index
    %4 = vector.load %arg1[%c0_2, %c0_3, %c0_4] : memref<2x20x576xbf16, #tpu.memory_space<vmem>>, vector<1x20x576xbf16>
    %5 = vector.shape_cast %4 : vector<1x20x576xbf16> to vector<20x576xbf16>
    %cst = arith.constant dense<0.000000e+00> : vector<28x576xf32>
    %6 = tpu.matmul %3, %5, %cst {dimension_numbers = #tpu.dot_dimension_numbers<[1], [0], [0], [1], [0, 0, 1, 1], [], []>} : vector<28x20xbf16>, vector<20x576xbf16>, vector<28x576xf32> -> vector<28x576xf32>
    %7 = vector.extract_strided_slice %1 {offsets = [1, 0], sizes = [28, 20], strides = [1, 1]} : vector<29x20xf32> to vector<28x20xf32>
    %8 = arith.truncf %7 : vector<28x20xf32> to vector<28x20xbf16>
    %c1 = arith.constant 1 : index
    %c0_5 = arith.constant 0 : index
    %c0_6 = arith.constant 0 : index
    %9 = vector.load %arg1[%c1, %c0_5, %c0_6] : memref<2x20x576xbf16, #tpu.memory_space<vmem>>, vector<1x20x576xbf16>
    %10 = vector.shape_cast %9 : vector<1x20x576xbf16> to vector<20x576xbf16>
    %cst_7 = arith.constant dense<0.000000e+00> : vector<28x576xf32>
    %11 = tpu.matmul %8, %10, %cst_7 {dimension_numbers = #tpu.dot_dimension_numbers<[1], [0], [0], [1], [0, 0, 1, 1], [], []>} : vector<28x20xbf16>, vector<20x576xbf16>, vector<28x576xf32> -> vector<28x576xf32>
    %12 = arith.addf %6, %11 : vector<28x576xf32>
    %c0_8 = arith.constant 0 : index
    %c0_9 = arith.constant 0 : index
    %13 = vector.load %arg2[%c0_8, %c0_9] : memref<1x576xf32, #tpu.memory_space<vmem>>, vector<1x576xf32>
    %14 = vector.broadcast %13 : vector<1x576xf32> to vector<28x576xf32>
    %15 = arith.addf %12, %14 : vector<28x576xf32>
    %cst_10 = arith.constant 0.000000e+00 : f32
    %16 = vector.broadcast %cst_10 : f32 to vector<28x576xf32>
    %17 = arith.maximumf %15, %16 : vector<28x576xf32>
    %18 = vector.extract_strided_slice %17 {offsets = [0, 0], sizes = [28, 32], strides = [1, 1]} : vector<28x576xf32> to vector<28x32xf32>
    %19 = vector.extract_strided_slice %17 {offsets = [0, 32], sizes = [28, 32], strides = [1, 1]} : vector<28x576xf32> to vector<28x32xf32>
    %20 = arith.maximumf %18, %19 : vector<28x32xf32>
    %21 = vector.extract_strided_slice %17 {offsets = [0, 64], sizes = [28, 32], strides = [1, 1]} : vector<28x576xf32> to vector<28x32xf32>
    %22 = vector.extract_strided_slice %17 {offsets = [0, 96], sizes = [28, 32], strides = [1, 1]} : vector<28x576xf32> to vector<28x32xf32>
    %23 = arith.maximumf %21, %22 : vector<28x32xf32>
    %24 = vector.extract_strided_slice %17 {offsets = [0, 128], sizes = [28, 32], strides = [1, 1]} : vector<28x576xf32> to vector<28x32xf32>
    %25 = vector.extract_strided_slice %17 {offsets = [0, 160], sizes = [28, 32], strides = [1, 1]} : vector<28x576xf32> to vector<28x32xf32>
    %26 = arith.maximumf %24, %25 : vector<28x32xf32>
    %27 = vector.extract_strided_slice %17 {offsets = [0, 192], sizes = [28, 32], strides = [1, 1]} : vector<28x576xf32> to vector<28x32xf32>
    %28 = vector.extract_strided_slice %17 {offsets = [0, 224], sizes = [28, 32], strides = [1, 1]} : vector<28x576xf32> to vector<28x32xf32>
    %29 = arith.maximumf %27, %28 : vector<28x32xf32>
    %30 = vector.extract_strided_slice %17 {offsets = [0, 256], sizes = [28, 32], strides = [1, 1]} : vector<28x576xf32> to vector<28x32xf32>
    %31 = vector.extract_strided_slice %17 {offsets = [0, 288], sizes = [28, 32], strides = [1, 1]} : vector<28x576xf32> to vector<28x32xf32>
    %32 = arith.maximumf %30, %31 : vector<28x32xf32>
    %33 = vector.extract_strided_slice %17 {offsets = [0, 320], sizes = [28, 32], strides = [1, 1]} : vector<28x576xf32> to vector<28x32xf32>
    %34 = vector.extract_strided_slice %17 {offsets = [0, 352], sizes = [28, 32], strides = [1, 1]} : vector<28x576xf32> to vector<28x32xf32>
    %35 = arith.maximumf %33, %34 : vector<28x32xf32>
    %36 = vector.extract_strided_slice %17 {offsets = [0, 384], sizes = [28, 32], strides = [1, 1]} : vector<28x576xf32> to vector<28x32xf32>
    %37 = vector.extract_strided_slice %17 {offsets = [0, 416], sizes = [28, 32], strides = [1, 1]} : vector<28x576xf32> to vector<28x32xf32>
    %38 = arith.maximumf %36, %37 : vector<28x32xf32>
    %39 = vector.extract_strided_slice %17 {offsets = [0, 448], sizes = [28, 32], strides = [1, 1]} : vector<28x576xf32> to vector<28x32xf32>
    %40 = vector.extract_strided_slice %17 {offsets = [0, 480], sizes = [28, 32], strides = [1, 1]} : vector<28x576xf32> to vector<28x32xf32>
    %41 = arith.maximumf %39, %40 : vector<28x32xf32>
    %42 = vector.extract_strided_slice %17 {offsets = [0, 512], sizes = [28, 32], strides = [1, 1]} : vector<28x576xf32> to vector<28x32xf32>
    %43 = vector.extract_strided_slice %17 {offsets = [0, 544], sizes = [28, 32], strides = [1, 1]} : vector<28x576xf32> to vector<28x32xf32>
    %44 = arith.maximumf %42, %43 : vector<28x32xf32>
    %45 = tpu.concatenate %20, %23, %26, %29, %32, %35, %38, %41, %44 in 1 : vector<28x32xf32>, vector<28x32xf32>, vector<28x32xf32>, vector<28x32xf32>, vector<28x32xf32>, vector<28x32xf32>, vector<28x32xf32>, vector<28x32xf32>, vector<28x32xf32> -> vector<28x288xf32>
    %46 = vector.extract_strided_slice %45 {offsets = [0, 0], sizes = [1, 288], strides = [1, 1]} : vector<28x288xf32> to vector<1x288xf32>
    %47 = vector.extract_strided_slice %45 {offsets = [1, 0], sizes = [1, 288], strides = [1, 1]} : vector<28x288xf32> to vector<1x288xf32>
    %48 = arith.maximumf %46, %47 : vector<1x288xf32>
    %49 = vector.extract_strided_slice %45 {offsets = [2, 0], sizes = [1, 288], strides = [1, 1]} : vector<28x288xf32> to vector<1x288xf32>
    %50 = vector.extract_strided_slice %45 {offsets = [3, 0], sizes = [1, 288], strides = [1, 1]} : vector<28x288xf32> to vector<1x288xf32>
    %51 = arith.maximumf %49, %50 : vector<1x288xf32>
    %52 = vector.extract_strided_slice %45 {offsets = [4, 0], sizes = [1, 288], strides = [1, 1]} : vector<28x288xf32> to vector<1x288xf32>
    %53 = vector.extract_strided_slice %45 {offsets = [5, 0], sizes = [1, 288], strides = [1, 1]} : vector<28x288xf32> to vector<1x288xf32>
    %54 = arith.maximumf %52, %53 : vector<1x288xf32>
    %55 = vector.extract_strided_slice %45 {offsets = [6, 0], sizes = [1, 288], strides = [1, 1]} : vector<28x288xf32> to vector<1x288xf32>
    %56 = vector.extract_strided_slice %45 {offsets = [7, 0], sizes = [1, 288], strides = [1, 1]} : vector<28x288xf32> to vector<1x288xf32>
    %57 = arith.maximumf %55, %56 : vector<1x288xf32>
    %58 = vector.extract_strided_slice %45 {offsets = [8, 0], sizes = [1, 288], strides = [1, 1]} : vector<28x288xf32> to vector<1x288xf32>
    %59 = vector.extract_strided_slice %45 {offsets = [9, 0], sizes = [1, 288], strides = [1, 1]} : vector<28x288xf32> to vector<1x288xf32>
    %60 = arith.maximumf %58, %59 : vector<1x288xf32>
    %61 = vector.extract_strided_slice %45 {offsets = [10, 0], sizes = [1, 288], strides = [1, 1]} : vector<28x288xf32> to vector<1x288xf32>
    %62 = vector.extract_strided_slice %45 {offsets = [11, 0], sizes = [1, 288], strides = [1, 1]} : vector<28x288xf32> to vector<1x288xf32>
    %63 = arith.maximumf %61, %62 : vector<1x288xf32>
    %64 = vector.extract_strided_slice %45 {offsets = [12, 0], sizes = [1, 288], strides = [1, 1]} : vector<28x288xf32> to vector<1x288xf32>
    %65 = vector.extract_strided_slice %45 {offsets = [13, 0], sizes = [1, 288], strides = [1, 1]} : vector<28x288xf32> to vector<1x288xf32>
    %66 = arith.maximumf %64, %65 : vector<1x288xf32>
    %67 = vector.extract_strided_slice %45 {offsets = [14, 0], sizes = [1, 288], strides = [1, 1]} : vector<28x288xf32> to vector<1x288xf32>
    %68 = vector.extract_strided_slice %45 {offsets = [15, 0], sizes = [1, 288], strides = [1, 1]} : vector<28x288xf32> to vector<1x288xf32>
    %69 = arith.maximumf %67, %68 : vector<1x288xf32>
    %70 = vector.extract_strided_slice %45 {offsets = [16, 0], sizes = [1, 288], strides = [1, 1]} : vector<28x288xf32> to vector<1x288xf32>
    %71 = vector.extract_strided_slice %45 {offsets = [17, 0], sizes = [1, 288], strides = [1, 1]} : vector<28x288xf32> to vector<1x288xf32>
    %72 = arith.maximumf %70, %71 : vector<1x288xf32>
    %73 = vector.extract_strided_slice %45 {offsets = [18, 0], sizes = [1, 288], strides = [1, 1]} : vector<28x288xf32> to vector<1x288xf32>
    %74 = vector.extract_strided_slice %45 {offsets = [19, 0], sizes = [1, 288], strides = [1, 1]} : vector<28x288xf32> to vector<1x288xf32>
    %75 = arith.maximumf %73, %74 : vector<1x288xf32>
    %76 = vector.extract_strided_slice %45 {offsets = [20, 0], sizes = [1, 288], strides = [1, 1]} : vector<28x288xf32> to vector<1x288xf32>
    %77 = vector.extract_strided_slice %45 {offsets = [21, 0], sizes = [1, 288], strides = [1, 1]} : vector<28x288xf32> to vector<1x288xf32>
    %78 = arith.maximumf %76, %77 : vector<1x288xf32>
    %79 = vector.extract_strided_slice %45 {offsets = [22, 0], sizes = [1, 288], strides = [1, 1]} : vector<28x288xf32> to vector<1x288xf32>
    %80 = vector.extract_strided_slice %45 {offsets = [23, 0], sizes = [1, 288], strides = [1, 1]} : vector<28x288xf32> to vector<1x288xf32>
    %81 = arith.maximumf %79, %80 : vector<1x288xf32>
    %82 = vector.extract_strided_slice %45 {offsets = [24, 0], sizes = [1, 288], strides = [1, 1]} : vector<28x288xf32> to vector<1x288xf32>
    %83 = vector.extract_strided_slice %45 {offsets = [25, 0], sizes = [1, 288], strides = [1, 1]} : vector<28x288xf32> to vector<1x288xf32>
    %84 = arith.maximumf %82, %83 : vector<1x288xf32>
    %85 = vector.extract_strided_slice %45 {offsets = [26, 0], sizes = [1, 288], strides = [1, 1]} : vector<28x288xf32> to vector<1x288xf32>
    %86 = vector.extract_strided_slice %45 {offsets = [27, 0], sizes = [1, 288], strides = [1, 1]} : vector<28x288xf32> to vector<1x288xf32>
    %87 = arith.maximumf %85, %86 : vector<1x288xf32>
    %88 = tpu.concatenate %48, %51, %54, %57, %60, %63, %66, %69, %72, %75, %78, %81, %84, %87 in 0 : vector<1x288xf32>, vector<1x288xf32>, vector<1x288xf32>, vector<1x288xf32>, vector<1x288xf32>, vector<1x288xf32>, vector<1x288xf32>, vector<1x288xf32>, vector<1x288xf32>, vector<1x288xf32>, vector<1x288xf32>, vector<1x288xf32>, vector<1x288xf32>, vector<1x288xf32> -> vector<14x288xf32>
    %89 = vector.extract_strided_slice %88 {offsets = [0, 0], sizes = [12, 32], strides = [1, 1]} : vector<14x288xf32> to vector<12x32xf32>
    %90 = vector.extract_strided_slice %88 {offsets = [1, 0], sizes = [12, 32], strides = [1, 1]} : vector<14x288xf32> to vector<12x32xf32>
    %91 = vector.extract_strided_slice %88 {offsets = [2, 0], sizes = [12, 32], strides = [1, 1]} : vector<14x288xf32> to vector<12x32xf32>
    %92 = vector.extract_strided_slice %88 {offsets = [0, 32], sizes = [12, 32], strides = [1, 1]} : vector<14x288xf32> to vector<12x32xf32>
    %93 = vector.extract_strided_slice %88 {offsets = [1, 32], sizes = [12, 32], strides = [1, 1]} : vector<14x288xf32> to vector<12x32xf32>
    %94 = vector.extract_strided_slice %88 {offsets = [2, 32], sizes = [12, 32], strides = [1, 1]} : vector<14x288xf32> to vector<12x32xf32>
    %95 = vector.extract_strided_slice %88 {offsets = [0, 64], sizes = [12, 32], strides = [1, 1]} : vector<14x288xf32> to vector<12x32xf32>
    %96 = vector.extract_strided_slice %88 {offsets = [1, 64], sizes = [12, 32], strides = [1, 1]} : vector<14x288xf32> to vector<12x32xf32>
    %97 = vector.extract_strided_slice %88 {offsets = [2, 64], sizes = [12, 32], strides = [1, 1]} : vector<14x288xf32> to vector<12x32xf32>
    %98 = vector.extract_strided_slice %88 {offsets = [0, 96], sizes = [12, 32], strides = [1, 1]} : vector<14x288xf32> to vector<12x32xf32>
    %99 = vector.extract_strided_slice %88 {offsets = [1, 96], sizes = [12, 32], strides = [1, 1]} : vector<14x288xf32> to vector<12x32xf32>
    %100 = vector.extract_strided_slice %88 {offsets = [2, 96], sizes = [12, 32], strides = [1, 1]} : vector<14x288xf32> to vector<12x32xf32>
    %101 = tpu.concatenate %89, %90, %91, %92, %93, %94, %95, %96, %97, %98, %99, %100 in 1 : vector<12x32xf32>, vector<12x32xf32>, vector<12x32xf32>, vector<12x32xf32>, vector<12x32xf32>, vector<12x32xf32>, vector<12x32xf32>, vector<12x32xf32>, vector<12x32xf32>, vector<12x32xf32>, vector<12x32xf32>, vector<12x32xf32> -> vector<12x384xf32>
    %102 = vector.extract_strided_slice %88 {offsets = [0, 32], sizes = [12, 32], strides = [1, 1]} : vector<14x288xf32> to vector<12x32xf32>
    %103 = vector.extract_strided_slice %88 {offsets = [1, 32], sizes = [12, 32], strides = [1, 1]} : vector<14x288xf32> to vector<12x32xf32>
    %104 = vector.extract_strided_slice %88 {offsets = [2, 32], sizes = [12, 32], strides = [1, 1]} : vector<14x288xf32> to vector<12x32xf32>
    %105 = vector.extract_strided_slice %88 {offsets = [0, 64], sizes = [12, 32], strides = [1, 1]} : vector<14x288xf32> to vector<12x32xf32>
    %106 = vector.extract_strided_slice %88 {offsets = [1, 64], sizes = [12, 32], strides = [1, 1]} : vector<14x288xf32> to vector<12x32xf32>
    %107 = vector.extract_strided_slice %88 {offsets = [2, 64], sizes = [12, 32], strides = [1, 1]} : vector<14x288xf32> to vector<12x32xf32>
    %108 = vector.extract_strided_slice %88 {offsets = [0, 96], sizes = [12, 32], strides = [1, 1]} : vector<14x288xf32> to vector<12x32xf32>
    %109 = vector.extract_strided_slice %88 {offsets = [1, 96], sizes = [12, 32], strides = [1, 1]} : vector<14x288xf32> to vector<12x32xf32>
    %110 = vector.extract_strided_slice %88 {offsets = [2, 96], sizes = [12, 32], strides = [1, 1]} : vector<14x288xf32> to vector<12x32xf32>
    %111 = vector.extract_strided_slice %88 {offsets = [0, 128], sizes = [12, 32], strides = [1, 1]} : vector<14x288xf32> to vector<12x32xf32>
    %112 = vector.extract_strided_slice %88 {offsets = [1, 128], sizes = [12, 32], strides = [1, 1]} : vector<14x288xf32> to vector<12x32xf32>
    %113 = vector.extract_strided_slice %88 {offsets = [2, 128], sizes = [12, 32], strides = [1, 1]} : vector<14x288xf32> to vector<12x32xf32>
    %114 = tpu.concatenate %102, %103, %104, %105, %106, %107, %108, %109, %110, %111, %112, %113 in 1 : vector<12x32xf32>, vector<12x32xf32>, vector<12x32xf32>, vector<12x32xf32>, vector<12x32xf32>, vector<12x32xf32>, vector<12x32xf32>, vector<12x32xf32>, vector<12x32xf32>, vector<12x32xf32>, vector<12x32xf32>, vector<12x32xf32> -> vector<12x384xf32>
    %115 = vector.extract_strided_slice %88 {offsets = [0, 64], sizes = [12, 32], strides = [1, 1]} : vector<14x288xf32> to vector<12x32xf32>
    %116 = vector.extract_strided_slice %88 {offsets = [1, 64], sizes = [12, 32], strides = [1, 1]} : vector<14x288xf32> to vector<12x32xf32>
    %117 = vector.extract_strided_slice %88 {offsets = [2, 64], sizes = [12, 32], strides = [1, 1]} : vector<14x288xf32> to vector<12x32xf32>
    %118 = vector.extract_strided_slice %88 {offsets = [0, 96], sizes = [12, 32], strides = [1, 1]} : vector<14x288xf32> to vector<12x32xf32>
    %119 = vector.extract_strided_slice %88 {offsets = [1, 96], sizes = [12, 32], strides = [1, 1]} : vector<14x288xf32> to vector<12x32xf32>
    %120 = vector.extract_strided_slice %88 {offsets = [2, 96], sizes = [12, 32], strides = [1, 1]} : vector<14x288xf32> to vector<12x32xf32>
    %121 = vector.extract_strided_slice %88 {offsets = [0, 128], sizes = [12, 32], strides = [1, 1]} : vector<14x288xf32> to vector<12x32xf32>
    %122 = vector.extract_strided_slice %88 {offsets = [1, 128], sizes = [12, 32], strides = [1, 1]} : vector<14x288xf32> to vector<12x32xf32>
    %123 = vector.extract_strided_slice %88 {offsets = [2, 128], sizes = [12, 32], strides = [1, 1]} : vector<14x288xf32> to vector<12x32xf32>
    %124 = vector.extract_strided_slice %88 {offsets = [0, 160], sizes = [12, 32], strides = [1, 1]} : vector<14x288xf32> to vector<12x32xf32>
    %125 = vector.extract_strided_slice %88 {offsets = [1, 160], sizes = [12, 32], strides = [1, 1]} : vector<14x288xf32> to vector<12x32xf32>
    %126 = vector.extract_strided_slice %88 {offsets = [2, 160], sizes = [12, 32], strides = [1, 1]} : vector<14x288xf32> to vector<12x32xf32>
    %127 = tpu.concatenate %115, %116, %117, %118, %119, %120, %121, %122, %123, %124, %125, %126 in 1 : vector<12x32xf32>, vector<12x32xf32>, vector<12x32xf32>, vector<12x32xf32>, vector<12x32xf32>, vector<12x32xf32>, vector<12x32xf32>, vector<12x32xf32>, vector<12x32xf32>, vector<12x32xf32>, vector<12x32xf32>, vector<12x32xf32> -> vector<12x384xf32>
    %128 = vector.extract_strided_slice %88 {offsets = [0, 96], sizes = [12, 32], strides = [1, 1]} : vector<14x288xf32> to vector<12x32xf32>
    %129 = vector.extract_strided_slice %88 {offsets = [1, 96], sizes = [12, 32], strides = [1, 1]} : vector<14x288xf32> to vector<12x32xf32>
    %130 = vector.extract_strided_slice %88 {offsets = [2, 96], sizes = [12, 32], strides = [1, 1]} : vector<14x288xf32> to vector<12x32xf32>
    %131 = vector.extract_strided_slice %88 {offsets = [0, 128], sizes = [12, 32], strides = [1, 1]} : vector<14x288xf32> to vector<12x32xf32>
    %132 = vector.extract_strided_slice %88 {offsets = [1, 128], sizes = [12, 32], strides = [1, 1]} : vector<14x288xf32> to vector<12x32xf32>
    %133 = vector.extract_strided_slice %88 {offsets = [2, 128], sizes = [12, 32], strides = [1, 1]} : vector<14x288xf32> to vector<12x32xf32>
    %134 = vector.extract_strided_slice %88 {offsets = [0, 160], sizes = [12, 32], strides = [1, 1]} : vector<14x288xf32> to vector<12x32xf32>
    %135 = vector.extract_strided_slice %88 {offsets = [1, 160], sizes = [12, 32], strides = [1, 1]} : vector<14x288xf32> to vector<12x32xf32>
    %136 = vector.extract_strided_slice %88 {offsets = [2, 160], sizes = [12, 32], strides = [1, 1]} : vector<14x288xf32> to vector<12x32xf32>
    %137 = vector.extract_strided_slice %88 {offsets = [0, 192], sizes = [12, 32], strides = [1, 1]} : vector<14x288xf32> to vector<12x32xf32>
    %138 = vector.extract_strided_slice %88 {offsets = [1, 192], sizes = [12, 32], strides = [1, 1]} : vector<14x288xf32> to vector<12x32xf32>
    %139 = vector.extract_strided_slice %88 {offsets = [2, 192], sizes = [12, 32], strides = [1, 1]} : vector<14x288xf32> to vector<12x32xf32>
    %140 = tpu.concatenate %128, %129, %130, %131, %132, %133, %134, %135, %136, %137, %138, %139 in 1 : vector<12x32xf32>, vector<12x32xf32>, vector<12x32xf32>, vector<12x32xf32>, vector<12x32xf32>, vector<12x32xf32>, vector<12x32xf32>, vector<12x32xf32>, vector<12x32xf32>, vector<12x32xf32>, vector<12x32xf32>, vector<12x32xf32> -> vector<12x384xf32>
    %141 = vector.extract_strided_slice %88 {offsets = [0, 128], sizes = [12, 32], strides = [1, 1]} : vector<14x288xf32> to vector<12x32xf32>
    %142 = vector.extract_strided_slice %88 {offsets = [1, 128], sizes = [12, 32], strides = [1, 1]} : vector<14x288xf32> to vector<12x32xf32>
    %143 = vector.extract_strided_slice %88 {offsets = [2, 128], sizes = [12, 32], strides = [1, 1]} : vector<14x288xf32> to vector<12x32xf32>
    %144 = vector.extract_strided_slice %88 {offsets = [0, 160], sizes = [12, 32], strides = [1, 1]} : vector<14x288xf32> to vector<12x32xf32>
    %145 = vector.extract_strided_slice %88 {offsets = [1, 160], sizes = [12, 32], strides = [1, 1]} : vector<14x288xf32> to vector<12x32xf32>
    %146 = vector.extract_strided_slice %88 {offsets = [2, 160], sizes = [12, 32], strides = [1, 1]} : vector<14x288xf32> to vector<12x32xf32>
    %147 = vector.extract_strided_slice %88 {offsets = [0, 192], sizes = [12, 32], strides = [1, 1]} : vector<14x288xf32> to vector<12x32xf32>
    %148 = vector.extract_strided_slice %88 {offsets = [1, 192], sizes = [12, 32], strides = [1, 1]} : vector<14x288xf32> to vector<12x32xf32>
    %149 = vector.extract_strided_slice %88 {offsets = [2, 192], sizes = [12, 32], strides = [1, 1]} : vector<14x288xf32> to vector<12x32xf32>
    %150 = vector.extract_strided_slice %88 {offsets = [0, 224], sizes = [12, 32], strides = [1, 1]} : vector<14x288xf32> to vector<12x32xf32>
    %151 = vector.extract_strided_slice %88 {offsets = [1, 224], sizes = [12, 32], strides = [1, 1]} : vector<14x288xf32> to vector<12x32xf32>
    %152 = vector.extract_strided_slice %88 {offsets = [2, 224], sizes = [12, 32], strides = [1, 1]} : vector<14x288xf32> to vector<12x32xf32>
    %153 = tpu.concatenate %141, %142, %143, %144, %145, %146, %147, %148, %149, %150, %151, %152 in 1 : vector<12x32xf32>, vector<12x32xf32>, vector<12x32xf32>, vector<12x32xf32>, vector<12x32xf32>, vector<12x32xf32>, vector<12x32xf32>, vector<12x32xf32>, vector<12x32xf32>, vector<12x32xf32>, vector<12x32xf32>, vector<12x32xf32> -> vector<12x384xf32>
    %154 = vector.extract_strided_slice %88 {offsets = [0, 160], sizes = [12, 32], strides = [1, 1]} : vector<14x288xf32> to vector<12x32xf32>
    %155 = vector.extract_strided_slice %88 {offsets = [1, 160], sizes = [12, 32], strides = [1, 1]} : vector<14x288xf32> to vector<12x32xf32>
    %156 = vector.extract_strided_slice %88 {offsets = [2, 160], sizes = [12, 32], strides = [1, 1]} : vector<14x288xf32> to vector<12x32xf32>
    %157 = vector.extract_strided_slice %88 {offsets = [0, 192], sizes = [12, 32], strides = [1, 1]} : vector<14x288xf32> to vector<12x32xf32>
    %158 = vector.extract_strided_slice %88 {offsets = [1, 192], sizes = [12, 32], strides = [1, 1]} : vector<14x288xf32> to vector<12x32xf32>
    %159 = vector.extract_strided_slice %88 {offsets = [2, 192], sizes = [12, 32], strides = [1, 1]} : vector<14x288xf32> to vector<12x32xf32>
    %160 = vector.extract_strided_slice %88 {offsets = [0, 224], sizes = [12, 32], strides = [1, 1]} : vector<14x288xf32> to vector<12x32xf32>
    %161 = vector.extract_strided_slice %88 {offsets = [1, 224], sizes = [12, 32], strides = [1, 1]} : vector<14x288xf32> to vector<12x32xf32>
    %162 = vector.extract_strided_slice %88 {offsets = [2, 224], sizes = [12, 32], strides = [1, 1]} : vector<14x288xf32> to vector<12x32xf32>
    %163 = vector.extract_strided_slice %88 {offsets = [0, 256], sizes = [12, 32], strides = [1, 1]} : vector<14x288xf32> to vector<12x32xf32>
    %164 = vector.extract_strided_slice %88 {offsets = [1, 256], sizes = [12, 32], strides = [1, 1]} : vector<14x288xf32> to vector<12x32xf32>
    %165 = vector.extract_strided_slice %88 {offsets = [2, 256], sizes = [12, 32], strides = [1, 1]} : vector<14x288xf32> to vector<12x32xf32>
    %166 = tpu.concatenate %154, %155, %156, %157, %158, %159, %160, %161, %162, %163, %164, %165 in 1 : vector<12x32xf32>, vector<12x32xf32>, vector<12x32xf32>, vector<12x32xf32>, vector<12x32xf32>, vector<12x32xf32>, vector<12x32xf32>, vector<12x32xf32>, vector<12x32xf32>, vector<12x32xf32>, vector<12x32xf32>, vector<12x32xf32> -> vector<12x384xf32>
    %167 = tpu.concatenate %101, %114, %127, %140, %153, %166 in 0 : vector<12x384xf32>, vector<12x384xf32>, vector<12x384xf32>, vector<12x384xf32>, vector<12x384xf32>, vector<12x384xf32> -> vector<72x384xf32>
    %168 = arith.truncf %167 : vector<72x384xf32> to vector<72x384xbf16>
    %c0_11 = arith.constant 0 : index
    %c0_12 = arith.constant 0 : index
    %169 = vector.load %arg3[%c0_11, %c0_12] : memref<384x128xbf16, #tpu.memory_space<vmem>>, vector<384x128xbf16>
    %cst_13 = arith.constant dense<0.000000e+00> : vector<72x128xf32>
    %170 = tpu.matmul %168, %169, %cst_13 {dimension_numbers = #tpu.dot_dimension_numbers<[1], [0], [0], [1], [0, 0, 1, 1], [], []>} : vector<72x384xbf16>, vector<384x128xbf16>, vector<72x128xf32> -> vector<72x128xf32>
    %c0_14 = arith.constant 0 : index
    %c0_15 = arith.constant 0 : index
    %171 = vector.load %arg4[%c0_14, %c0_15] : memref<1x128xf32, #tpu.memory_space<vmem>>, vector<1x128xf32>
    %172 = vector.broadcast %171 : vector<1x128xf32> to vector<72x128xf32>
    %173 = arith.addf %170, %172 : vector<72x128xf32>
    %cst_16 = arith.constant 0.000000e+00 : f32
    %174 = vector.broadcast %cst_16 : f32 to vector<72x128xf32>
    %175 = arith.maximumf %173, %174 : vector<72x128xf32>
    %176 = vector.extract_strided_slice %175 {offsets = [0, 0], sizes = [12, 128], strides = [1, 1]} : vector<72x128xf32> to vector<12x128xf32>
    %177 = vector.extract_strided_slice %175 {offsets = [12, 0], sizes = [12, 128], strides = [1, 1]} : vector<72x128xf32> to vector<12x128xf32>
    %178 = arith.maximumf %176, %177 : vector<12x128xf32>
    %179 = vector.extract_strided_slice %178 {offsets = [0, 0], sizes = [1, 128], strides = [1, 1]} : vector<12x128xf32> to vector<1x128xf32>
    %180 = vector.extract_strided_slice %178 {offsets = [1, 0], sizes = [1, 128], strides = [1, 1]} : vector<12x128xf32> to vector<1x128xf32>
    %181 = arith.maximumf %179, %180 : vector<1x128xf32>
    %182 = vector.extract_strided_slice %178 {offsets = [2, 0], sizes = [1, 128], strides = [1, 1]} : vector<12x128xf32> to vector<1x128xf32>
    %183 = vector.extract_strided_slice %178 {offsets = [3, 0], sizes = [1, 128], strides = [1, 1]} : vector<12x128xf32> to vector<1x128xf32>
    %184 = arith.maximumf %182, %183 : vector<1x128xf32>
    %185 = vector.extract_strided_slice %178 {offsets = [4, 0], sizes = [1, 128], strides = [1, 1]} : vector<12x128xf32> to vector<1x128xf32>
    %186 = vector.extract_strided_slice %178 {offsets = [5, 0], sizes = [1, 128], strides = [1, 1]} : vector<12x128xf32> to vector<1x128xf32>
    %187 = arith.maximumf %185, %186 : vector<1x128xf32>
    %188 = vector.extract_strided_slice %178 {offsets = [6, 0], sizes = [1, 128], strides = [1, 1]} : vector<12x128xf32> to vector<1x128xf32>
    %189 = vector.extract_strided_slice %178 {offsets = [7, 0], sizes = [1, 128], strides = [1, 1]} : vector<12x128xf32> to vector<1x128xf32>
    %190 = arith.maximumf %188, %189 : vector<1x128xf32>
    %191 = vector.extract_strided_slice %178 {offsets = [8, 0], sizes = [1, 128], strides = [1, 1]} : vector<12x128xf32> to vector<1x128xf32>
    %192 = vector.extract_strided_slice %178 {offsets = [9, 0], sizes = [1, 128], strides = [1, 1]} : vector<12x128xf32> to vector<1x128xf32>
    %193 = arith.maximumf %191, %192 : vector<1x128xf32>
    %194 = vector.extract_strided_slice %178 {offsets = [10, 0], sizes = [1, 128], strides = [1, 1]} : vector<12x128xf32> to vector<1x128xf32>
    %195 = vector.extract_strided_slice %178 {offsets = [11, 0], sizes = [1, 128], strides = [1, 1]} : vector<12x128xf32> to vector<1x128xf32>
    %196 = arith.maximumf %194, %195 : vector<1x128xf32>
    %197 = tpu.concatenate %181, %184, %187, %190, %193, %196 in 0 : vector<1x128xf32>, vector<1x128xf32>, vector<1x128xf32>, vector<1x128xf32>, vector<1x128xf32>, vector<1x128xf32> -> vector<6x128xf32>
    %198 = vector.extract_strided_slice %175 {offsets = [24, 0], sizes = [12, 128], strides = [1, 1]} : vector<72x128xf32> to vector<12x128xf32>
    %199 = vector.extract_strided_slice %175 {offsets = [36, 0], sizes = [12, 128], strides = [1, 1]} : vector<72x128xf32> to vector<12x128xf32>
    %200 = arith.maximumf %198, %199 : vector<12x128xf32>
    %201 = vector.extract_strided_slice %200 {offsets = [0, 0], sizes = [1, 128], strides = [1, 1]} : vector<12x128xf32> to vector<1x128xf32>
    %202 = vector.extract_strided_slice %200 {offsets = [1, 0], sizes = [1, 128], strides = [1, 1]} : vector<12x128xf32> to vector<1x128xf32>
    %203 = arith.maximumf %201, %202 : vector<1x128xf32>
    %204 = vector.extract_strided_slice %200 {offsets = [2, 0], sizes = [1, 128], strides = [1, 1]} : vector<12x128xf32> to vector<1x128xf32>
    %205 = vector.extract_strided_slice %200 {offsets = [3, 0], sizes = [1, 128], strides = [1, 1]} : vector<12x128xf32> to vector<1x128xf32>
    %206 = arith.maximumf %204, %205 : vector<1x128xf32>
    %207 = vector.extract_strided_slice %200 {offsets = [4, 0], sizes = [1, 128], strides = [1, 1]} : vector<12x128xf32> to vector<1x128xf32>
    %208 = vector.extract_strided_slice %200 {offsets = [5, 0], sizes = [1, 128], strides = [1, 1]} : vector<12x128xf32> to vector<1x128xf32>
    %209 = arith.maximumf %207, %208 : vector<1x128xf32>
    %210 = vector.extract_strided_slice %200 {offsets = [6, 0], sizes = [1, 128], strides = [1, 1]} : vector<12x128xf32> to vector<1x128xf32>
    %211 = vector.extract_strided_slice %200 {offsets = [7, 0], sizes = [1, 128], strides = [1, 1]} : vector<12x128xf32> to vector<1x128xf32>
    %212 = arith.maximumf %210, %211 : vector<1x128xf32>
    %213 = vector.extract_strided_slice %200 {offsets = [8, 0], sizes = [1, 128], strides = [1, 1]} : vector<12x128xf32> to vector<1x128xf32>
    %214 = vector.extract_strided_slice %200 {offsets = [9, 0], sizes = [1, 128], strides = [1, 1]} : vector<12x128xf32> to vector<1x128xf32>
    %215 = arith.maximumf %213, %214 : vector<1x128xf32>
    %216 = vector.extract_strided_slice %200 {offsets = [10, 0], sizes = [1, 128], strides = [1, 1]} : vector<12x128xf32> to vector<1x128xf32>
    %217 = vector.extract_strided_slice %200 {offsets = [11, 0], sizes = [1, 128], strides = [1, 1]} : vector<12x128xf32> to vector<1x128xf32>
    %218 = arith.maximumf %216, %217 : vector<1x128xf32>
    %219 = tpu.concatenate %203, %206, %209, %212, %215, %218 in 0 : vector<1x128xf32>, vector<1x128xf32>, vector<1x128xf32>, vector<1x128xf32>, vector<1x128xf32>, vector<1x128xf32> -> vector<6x128xf32>
    %220 = vector.extract_strided_slice %175 {offsets = [48, 0], sizes = [12, 128], strides = [1, 1]} : vector<72x128xf32> to vector<12x128xf32>
    %221 = vector.extract_strided_slice %175 {offsets = [60, 0], sizes = [12, 128], strides = [1, 1]} : vector<72x128xf32> to vector<12x128xf32>
    %222 = arith.maximumf %220, %221 : vector<12x128xf32>
    %223 = vector.extract_strided_slice %222 {offsets = [0, 0], sizes = [1, 128], strides = [1, 1]} : vector<12x128xf32> to vector<1x128xf32>
    %224 = vector.extract_strided_slice %222 {offsets = [1, 0], sizes = [1, 128], strides = [1, 1]} : vector<12x128xf32> to vector<1x128xf32>
    %225 = arith.maximumf %223, %224 : vector<1x128xf32>
    %226 = vector.extract_strided_slice %222 {offsets = [2, 0], sizes = [1, 128], strides = [1, 1]} : vector<12x128xf32> to vector<1x128xf32>
    %227 = vector.extract_strided_slice %222 {offsets = [3, 0], sizes = [1, 128], strides = [1, 1]} : vector<12x128xf32> to vector<1x128xf32>
    %228 = arith.maximumf %226, %227 : vector<1x128xf32>
    %229 = vector.extract_strided_slice %222 {offsets = [4, 0], sizes = [1, 128], strides = [1, 1]} : vector<12x128xf32> to vector<1x128xf32>
    %230 = vector.extract_strided_slice %222 {offsets = [5, 0], sizes = [1, 128], strides = [1, 1]} : vector<12x128xf32> to vector<1x128xf32>
    %231 = arith.maximumf %229, %230 : vector<1x128xf32>
    %232 = vector.extract_strided_slice %222 {offsets = [6, 0], sizes = [1, 128], strides = [1, 1]} : vector<12x128xf32> to vector<1x128xf32>
    %233 = vector.extract_strided_slice %222 {offsets = [7, 0], sizes = [1, 128], strides = [1, 1]} : vector<12x128xf32> to vector<1x128xf32>
    %234 = arith.maximumf %232, %233 : vector<1x128xf32>
    %235 = vector.extract_strided_slice %222 {offsets = [8, 0], sizes = [1, 128], strides = [1, 1]} : vector<12x128xf32> to vector<1x128xf32>
    %236 = vector.extract_strided_slice %222 {offsets = [9, 0], sizes = [1, 128], strides = [1, 1]} : vector<12x128xf32> to vector<1x128xf32>
    %237 = arith.maximumf %235, %236 : vector<1x128xf32>
    %238 = vector.extract_strided_slice %222 {offsets = [10, 0], sizes = [1, 128], strides = [1, 1]} : vector<12x128xf32> to vector<1x128xf32>
    %239 = vector.extract_strided_slice %222 {offsets = [11, 0], sizes = [1, 128], strides = [1, 1]} : vector<12x128xf32> to vector<1x128xf32>
    %240 = arith.maximumf %238, %239 : vector<1x128xf32>
    %241 = tpu.concatenate %225, %228, %231, %234, %237, %240 in 0 : vector<1x128xf32>, vector<1x128xf32>, vector<1x128xf32>, vector<1x128xf32>, vector<1x128xf32>, vector<1x128xf32> -> vector<6x128xf32>
    %242 = vector.extract_strided_slice %197 {offsets = [0, 0], sizes = [4, 64], strides = [1, 1]} : vector<6x128xf32> to vector<4x64xf32>
    %243 = vector.extract_strided_slice %197 {offsets = [1, 0], sizes = [4, 64], strides = [1, 1]} : vector<6x128xf32> to vector<4x64xf32>
    %244 = vector.extract_strided_slice %197 {offsets = [2, 0], sizes = [4, 64], strides = [1, 1]} : vector<6x128xf32> to vector<4x64xf32>
    %245 = vector.extract_strided_slice %219 {offsets = [0, 0], sizes = [4, 64], strides = [1, 1]} : vector<6x128xf32> to vector<4x64xf32>
    %246 = vector.extract_strided_slice %219 {offsets = [1, 0], sizes = [4, 64], strides = [1, 1]} : vector<6x128xf32> to vector<4x64xf32>
    %247 = vector.extract_strided_slice %219 {offsets = [2, 0], sizes = [4, 64], strides = [1, 1]} : vector<6x128xf32> to vector<4x64xf32>
    %248 = vector.extract_strided_slice %241 {offsets = [0, 0], sizes = [4, 64], strides = [1, 1]} : vector<6x128xf32> to vector<4x64xf32>
    %249 = vector.extract_strided_slice %241 {offsets = [1, 0], sizes = [4, 64], strides = [1, 1]} : vector<6x128xf32> to vector<4x64xf32>
    %250 = vector.extract_strided_slice %241 {offsets = [2, 0], sizes = [4, 64], strides = [1, 1]} : vector<6x128xf32> to vector<4x64xf32>
    %251 = tpu.concatenate %242, %243, %244, %245, %246, %247, %248, %249, %250 in 1 : vector<4x64xf32>, vector<4x64xf32>, vector<4x64xf32>, vector<4x64xf32>, vector<4x64xf32>, vector<4x64xf32>, vector<4x64xf32>, vector<4x64xf32>, vector<4x64xf32> -> vector<4x576xf32>
    %252 = arith.truncf %251 : vector<4x576xf32> to vector<4x576xbf16>
    %c0_17 = arith.constant 0 : index
    %c0_18 = arith.constant 0 : index
    %253 = vector.load %arg5[%c0_17, %c0_18] : memref<576x128xbf16, #tpu.memory_space<vmem>>, vector<576x128xbf16>
    %cst_19 = arith.constant dense<0.000000e+00> : vector<4x128xf32>
    %254 = tpu.matmul %252, %253, %cst_19 {dimension_numbers = #tpu.dot_dimension_numbers<[1], [0], [0], [1], [0, 0, 1, 1], [], []>} : vector<4x576xbf16>, vector<576x128xbf16>, vector<4x128xf32> -> vector<4x128xf32>
    %c0_20 = arith.constant 0 : index
    %c0_21 = arith.constant 0 : index
    %255 = vector.load %arg6[%c0_20, %c0_21] : memref<1x128xf32, #tpu.memory_space<vmem>>, vector<1x128xf32>
    %256 = vector.broadcast %255 : vector<1x128xf32> to vector<4x128xf32>
    %257 = arith.addf %254, %256 : vector<4x128xf32>
    %cst_22 = arith.constant 0.000000e+00 : f32
    %258 = vector.broadcast %cst_22 : f32 to vector<4x128xf32>
    %259 = arith.maximumf %257, %258 : vector<4x128xf32>
    %c1_23 = arith.constant 1 : index
    %c0_24 = arith.constant 0 : index
    %c0_25 = arith.constant 0 : index
    %260 = vector.load %arg0[%c1_23, %c0_24, %c0_25] : memref<2x29x20xf32, #tpu.memory_space<vmem>>, vector<1x29x20xf32>
    %261 = vector.shape_cast %260 : vector<1x29x20xf32> to vector<29x20xf32>
    %262 = vector.extract_strided_slice %261 {offsets = [0, 0], sizes = [28, 20], strides = [1, 1]} : vector<29x20xf32> to vector<28x20xf32>
    %263 = arith.truncf %262 : vector<28x20xf32> to vector<28x20xbf16>
    %c0_26 = arith.constant 0 : index
    %c0_27 = arith.constant 0 : index
    %c0_28 = arith.constant 0 : index
    %264 = vector.load %arg1[%c0_26, %c0_27, %c0_28] : memref<2x20x576xbf16, #tpu.memory_space<vmem>>, vector<1x20x576xbf16>
    %265 = vector.shape_cast %264 : vector<1x20x576xbf16> to vector<20x576xbf16>
    %cst_29 = arith.constant dense<0.000000e+00> : vector<28x576xf32>
    %266 = tpu.matmul %263, %265, %cst_29 {dimension_numbers = #tpu.dot_dimension_numbers<[1], [0], [0], [1], [0, 0, 1, 1], [], []>} : vector<28x20xbf16>, vector<20x576xbf16>, vector<28x576xf32> -> vector<28x576xf32>
    %267 = vector.extract_strided_slice %261 {offsets = [1, 0], sizes = [28, 20], strides = [1, 1]} : vector<29x20xf32> to vector<28x20xf32>
    %268 = arith.truncf %267 : vector<28x20xf32> to vector<28x20xbf16>
    %c1_30 = arith.constant 1 : index
    %c0_31 = arith.constant 0 : index
    %c0_32 = arith.constant 0 : index
    %269 = vector.load %arg1[%c1_30, %c0_31, %c0_32] : memref<2x20x576xbf16, #tpu.memory_space<vmem>>, vector<1x20x576xbf16>
    %270 = vector.shape_cast %269 : vector<1x20x576xbf16> to vector<20x576xbf16>
    %cst_33 = arith.constant dense<0.000000e+00> : vector<28x576xf32>
    %271 = tpu.matmul %268, %270, %cst_33 {dimension_numbers = #tpu.dot_dimension_numbers<[1], [0], [0], [1], [0, 0, 1, 1], [], []>} : vector<28x20xbf16>, vector<20x576xbf16>, vector<28x576xf32> -> vector<28x576xf32>
    %272 = arith.addf %266, %271 : vector<28x576xf32>
    %c0_34 = arith.constant 0 : index
    %c0_35 = arith.constant 0 : index
    %273 = vector.load %arg2[%c0_34, %c0_35] : memref<1x576xf32, #tpu.memory_space<vmem>>, vector<1x576xf32>
    %274 = vector.broadcast %273 : vector<1x576xf32> to vector<28x576xf32>
    %275 = arith.addf %272, %274 : vector<28x576xf32>
    %cst_36 = arith.constant 0.000000e+00 : f32
    %276 = vector.broadcast %cst_36 : f32 to vector<28x576xf32>
    %277 = arith.maximumf %275, %276 : vector<28x576xf32>
    %278 = vector.extract_strided_slice %277 {offsets = [0, 0], sizes = [28, 32], strides = [1, 1]} : vector<28x576xf32> to vector<28x32xf32>
    %279 = vector.extract_strided_slice %277 {offsets = [0, 32], sizes = [28, 32], strides = [1, 1]} : vector<28x576xf32> to vector<28x32xf32>
    %280 = arith.maximumf %278, %279 : vector<28x32xf32>
    %281 = vector.extract_strided_slice %277 {offsets = [0, 64], sizes = [28, 32], strides = [1, 1]} : vector<28x576xf32> to vector<28x32xf32>
    %282 = vector.extract_strided_slice %277 {offsets = [0, 96], sizes = [28, 32], strides = [1, 1]} : vector<28x576xf32> to vector<28x32xf32>
    %283 = arith.maximumf %281, %282 : vector<28x32xf32>
    %284 = vector.extract_strided_slice %277 {offsets = [0, 128], sizes = [28, 32], strides = [1, 1]} : vector<28x576xf32> to vector<28x32xf32>
    %285 = vector.extract_strided_slice %277 {offsets = [0, 160], sizes = [28, 32], strides = [1, 1]} : vector<28x576xf32> to vector<28x32xf32>
    %286 = arith.maximumf %284, %285 : vector<28x32xf32>
    %287 = vector.extract_strided_slice %277 {offsets = [0, 192], sizes = [28, 32], strides = [1, 1]} : vector<28x576xf32> to vector<28x32xf32>
    %288 = vector.extract_strided_slice %277 {offsets = [0, 224], sizes = [28, 32], strides = [1, 1]} : vector<28x576xf32> to vector<28x32xf32>
    %289 = arith.maximumf %287, %288 : vector<28x32xf32>
    %290 = vector.extract_strided_slice %277 {offsets = [0, 256], sizes = [28, 32], strides = [1, 1]} : vector<28x576xf32> to vector<28x32xf32>
    %291 = vector.extract_strided_slice %277 {offsets = [0, 288], sizes = [28, 32], strides = [1, 1]} : vector<28x576xf32> to vector<28x32xf32>
    %292 = arith.maximumf %290, %291 : vector<28x32xf32>
    %293 = vector.extract_strided_slice %277 {offsets = [0, 320], sizes = [28, 32], strides = [1, 1]} : vector<28x576xf32> to vector<28x32xf32>
    %294 = vector.extract_strided_slice %277 {offsets = [0, 352], sizes = [28, 32], strides = [1, 1]} : vector<28x576xf32> to vector<28x32xf32>
    %295 = arith.maximumf %293, %294 : vector<28x32xf32>
    %296 = vector.extract_strided_slice %277 {offsets = [0, 384], sizes = [28, 32], strides = [1, 1]} : vector<28x576xf32> to vector<28x32xf32>
    %297 = vector.extract_strided_slice %277 {offsets = [0, 416], sizes = [28, 32], strides = [1, 1]} : vector<28x576xf32> to vector<28x32xf32>
    %298 = arith.maximumf %296, %297 : vector<28x32xf32>
    %299 = vector.extract_strided_slice %277 {offsets = [0, 448], sizes = [28, 32], strides = [1, 1]} : vector<28x576xf32> to vector<28x32xf32>
    %300 = vector.extract_strided_slice %277 {offsets = [0, 480], sizes = [28, 32], strides = [1, 1]} : vector<28x576xf32> to vector<28x32xf32>
    %301 = arith.maximumf %299, %300 : vector<28x32xf32>
    %302 = vector.extract_strided_slice %277 {offsets = [0, 512], sizes = [28, 32], strides = [1, 1]} : vector<28x576xf32> to vector<28x32xf32>
    %303 = vector.extract_strided_slice %277 {offsets = [0, 544], sizes = [28, 32], strides = [1, 1]} : vector<28x576xf32> to vector<28x32xf32>
    %304 = arith.maximumf %302, %303 : vector<28x32xf32>
    %305 = tpu.concatenate %280, %283, %286, %289, %292, %295, %298, %301, %304 in 1 : vector<28x32xf32>, vector<28x32xf32>, vector<28x32xf32>, vector<28x32xf32>, vector<28x32xf32>, vector<28x32xf32>, vector<28x32xf32>, vector<28x32xf32>, vector<28x32xf32> -> vector<28x288xf32>
    %306 = vector.extract_strided_slice %305 {offsets = [0, 0], sizes = [1, 288], strides = [1, 1]} : vector<28x288xf32> to vector<1x288xf32>
    %307 = vector.extract_strided_slice %305 {offsets = [1, 0], sizes = [1, 288], strides = [1, 1]} : vector<28x288xf32> to vector<1x288xf32>
    %308 = arith.maximumf %306, %307 : vector<1x288xf32>
    %309 = vector.extract_strided_slice %305 {offsets = [2, 0], sizes = [1, 288], strides = [1, 1]} : vector<28x288xf32> to vector<1x288xf32>
    %310 = vector.extract_strided_slice %305 {offsets = [3, 0], sizes = [1, 288], strides = [1, 1]} : vector<28x288xf32> to vector<1x288xf32>
    %311 = arith.maximumf %309, %310 : vector<1x288xf32>
    %312 = vector.extract_strided_slice %305 {offsets = [4, 0], sizes = [1, 288], strides = [1, 1]} : vector<28x288xf32> to vector<1x288xf32>
    %313 = vector.extract_strided_slice %305 {offsets = [5, 0], sizes = [1, 288], strides = [1, 1]} : vector<28x288xf32> to vector<1x288xf32>
    %314 = arith.maximumf %312, %313 : vector<1x288xf32>
    %315 = vector.extract_strided_slice %305 {offsets = [6, 0], sizes = [1, 288], strides = [1, 1]} : vector<28x288xf32> to vector<1x288xf32>
    %316 = vector.extract_strided_slice %305 {offsets = [7, 0], sizes = [1, 288], strides = [1, 1]} : vector<28x288xf32> to vector<1x288xf32>
    %317 = arith.maximumf %315, %316 : vector<1x288xf32>
    %318 = vector.extract_strided_slice %305 {offsets = [8, 0], sizes = [1, 288], strides = [1, 1]} : vector<28x288xf32> to vector<1x288xf32>
    %319 = vector.extract_strided_slice %305 {offsets = [9, 0], sizes = [1, 288], strides = [1, 1]} : vector<28x288xf32> to vector<1x288xf32>
    %320 = arith.maximumf %318, %319 : vector<1x288xf32>
    %321 = vector.extract_strided_slice %305 {offsets = [10, 0], sizes = [1, 288], strides = [1, 1]} : vector<28x288xf32> to vector<1x288xf32>
    %322 = vector.extract_strided_slice %305 {offsets = [11, 0], sizes = [1, 288], strides = [1, 1]} : vector<28x288xf32> to vector<1x288xf32>
    %323 = arith.maximumf %321, %322 : vector<1x288xf32>
    %324 = vector.extract_strided_slice %305 {offsets = [12, 0], sizes = [1, 288], strides = [1, 1]} : vector<28x288xf32> to vector<1x288xf32>
    %325 = vector.extract_strided_slice %305 {offsets = [13, 0], sizes = [1, 288], strides = [1, 1]} : vector<28x288xf32> to vector<1x288xf32>
    %326 = arith.maximumf %324, %325 : vector<1x288xf32>
    %327 = vector.extract_strided_slice %305 {offsets = [14, 0], sizes = [1, 288], strides = [1, 1]} : vector<28x288xf32> to vector<1x288xf32>
    %328 = vector.extract_strided_slice %305 {offsets = [15, 0], sizes = [1, 288], strides = [1, 1]} : vector<28x288xf32> to vector<1x288xf32>
    %329 = arith.maximumf %327, %328 : vector<1x288xf32>
    %330 = vector.extract_strided_slice %305 {offsets = [16, 0], sizes = [1, 288], strides = [1, 1]} : vector<28x288xf32> to vector<1x288xf32>
    %331 = vector.extract_strided_slice %305 {offsets = [17, 0], sizes = [1, 288], strides = [1, 1]} : vector<28x288xf32> to vector<1x288xf32>
    %332 = arith.maximumf %330, %331 : vector<1x288xf32>
    %333 = vector.extract_strided_slice %305 {offsets = [18, 0], sizes = [1, 288], strides = [1, 1]} : vector<28x288xf32> to vector<1x288xf32>
    %334 = vector.extract_strided_slice %305 {offsets = [19, 0], sizes = [1, 288], strides = [1, 1]} : vector<28x288xf32> to vector<1x288xf32>
    %335 = arith.maximumf %333, %334 : vector<1x288xf32>
    %336 = vector.extract_strided_slice %305 {offsets = [20, 0], sizes = [1, 288], strides = [1, 1]} : vector<28x288xf32> to vector<1x288xf32>
    %337 = vector.extract_strided_slice %305 {offsets = [21, 0], sizes = [1, 288], strides = [1, 1]} : vector<28x288xf32> to vector<1x288xf32>
    %338 = arith.maximumf %336, %337 : vector<1x288xf32>
    %339 = vector.extract_strided_slice %305 {offsets = [22, 0], sizes = [1, 288], strides = [1, 1]} : vector<28x288xf32> to vector<1x288xf32>
    %340 = vector.extract_strided_slice %305 {offsets = [23, 0], sizes = [1, 288], strides = [1, 1]} : vector<28x288xf32> to vector<1x288xf32>
    %341 = arith.maximumf %339, %340 : vector<1x288xf32>
    %342 = vector.extract_strided_slice %305 {offsets = [24, 0], sizes = [1, 288], strides = [1, 1]} : vector<28x288xf32> to vector<1x288xf32>
    %343 = vector.extract_strided_slice %305 {offsets = [25, 0], sizes = [1, 288], strides = [1, 1]} : vector<28x288xf32> to vector<1x288xf32>
    %344 = arith.maximumf %342, %343 : vector<1x288xf32>
    %345 = vector.extract_strided_slice %305 {offsets = [26, 0], sizes = [1, 288], strides = [1, 1]} : vector<28x288xf32> to vector<1x288xf32>
    %346 = vector.extract_strided_slice %305 {offsets = [27, 0], sizes = [1, 288], strides = [1, 1]} : vector<28x288xf32> to vector<1x288xf32>
    %347 = arith.maximumf %345, %346 : vector<1x288xf32>
    %348 = tpu.concatenate %308, %311, %314, %317, %320, %323, %326, %329, %332, %335, %338, %341, %344, %347 in 0 : vector<1x288xf32>, vector<1x288xf32>, vector<1x288xf32>, vector<1x288xf32>, vector<1x288xf32>, vector<1x288xf32>, vector<1x288xf32>, vector<1x288xf32>, vector<1x288xf32>, vector<1x288xf32>, vector<1x288xf32>, vector<1x288xf32>, vector<1x288xf32>, vector<1x288xf32> -> vector<14x288xf32>
    %349 = vector.extract_strided_slice %348 {offsets = [0, 0], sizes = [12, 32], strides = [1, 1]} : vector<14x288xf32> to vector<12x32xf32>
    %350 = vector.extract_strided_slice %348 {offsets = [1, 0], sizes = [12, 32], strides = [1, 1]} : vector<14x288xf32> to vector<12x32xf32>
    %351 = vector.extract_strided_slice %348 {offsets = [2, 0], sizes = [12, 32], strides = [1, 1]} : vector<14x288xf32> to vector<12x32xf32>
    %352 = vector.extract_strided_slice %348 {offsets = [0, 32], sizes = [12, 32], strides = [1, 1]} : vector<14x288xf32> to vector<12x32xf32>
    %353 = vector.extract_strided_slice %348 {offsets = [1, 32], sizes = [12, 32], strides = [1, 1]} : vector<14x288xf32> to vector<12x32xf32>
    %354 = vector.extract_strided_slice %348 {offsets = [2, 32], sizes = [12, 32], strides = [1, 1]} : vector<14x288xf32> to vector<12x32xf32>
    %355 = vector.extract_strided_slice %348 {offsets = [0, 64], sizes = [12, 32], strides = [1, 1]} : vector<14x288xf32> to vector<12x32xf32>
    %356 = vector.extract_strided_slice %348 {offsets = [1, 64], sizes = [12, 32], strides = [1, 1]} : vector<14x288xf32> to vector<12x32xf32>
    %357 = vector.extract_strided_slice %348 {offsets = [2, 64], sizes = [12, 32], strides = [1, 1]} : vector<14x288xf32> to vector<12x32xf32>
    %358 = vector.extract_strided_slice %348 {offsets = [0, 96], sizes = [12, 32], strides = [1, 1]} : vector<14x288xf32> to vector<12x32xf32>
    %359 = vector.extract_strided_slice %348 {offsets = [1, 96], sizes = [12, 32], strides = [1, 1]} : vector<14x288xf32> to vector<12x32xf32>
    %360 = vector.extract_strided_slice %348 {offsets = [2, 96], sizes = [12, 32], strides = [1, 1]} : vector<14x288xf32> to vector<12x32xf32>
    %361 = tpu.concatenate %349, %350, %351, %352, %353, %354, %355, %356, %357, %358, %359, %360 in 1 : vector<12x32xf32>, vector<12x32xf32>, vector<12x32xf32>, vector<12x32xf32>, vector<12x32xf32>, vector<12x32xf32>, vector<12x32xf32>, vector<12x32xf32>, vector<12x32xf32>, vector<12x32xf32>, vector<12x32xf32>, vector<12x32xf32> -> vector<12x384xf32>
    %362 = vector.extract_strided_slice %348 {offsets = [0, 32], sizes = [12, 32], strides = [1, 1]} : vector<14x288xf32> to vector<12x32xf32>
    %363 = vector.extract_strided_slice %348 {offsets = [1, 32], sizes = [12, 32], strides = [1, 1]} : vector<14x288xf32> to vector<12x32xf32>
    %364 = vector.extract_strided_slice %348 {offsets = [2, 32], sizes = [12, 32], strides = [1, 1]} : vector<14x288xf32> to vector<12x32xf32>
    %365 = vector.extract_strided_slice %348 {offsets = [0, 64], sizes = [12, 32], strides = [1, 1]} : vector<14x288xf32> to vector<12x32xf32>
    %366 = vector.extract_strided_slice %348 {offsets = [1, 64], sizes = [12, 32], strides = [1, 1]} : vector<14x288xf32> to vector<12x32xf32>
    %367 = vector.extract_strided_slice %348 {offsets = [2, 64], sizes = [12, 32], strides = [1, 1]} : vector<14x288xf32> to vector<12x32xf32>
    %368 = vector.extract_strided_slice %348 {offsets = [0, 96], sizes = [12, 32], strides = [1, 1]} : vector<14x288xf32> to vector<12x32xf32>
    %369 = vector.extract_strided_slice %348 {offsets = [1, 96], sizes = [12, 32], strides = [1, 1]} : vector<14x288xf32> to vector<12x32xf32>
    %370 = vector.extract_strided_slice %348 {offsets = [2, 96], sizes = [12, 32], strides = [1, 1]} : vector<14x288xf32> to vector<12x32xf32>
    %371 = vector.extract_strided_slice %348 {offsets = [0, 128], sizes = [12, 32], strides = [1, 1]} : vector<14x288xf32> to vector<12x32xf32>
    %372 = vector.extract_strided_slice %348 {offsets = [1, 128], sizes = [12, 32], strides = [1, 1]} : vector<14x288xf32> to vector<12x32xf32>
    %373 = vector.extract_strided_slice %348 {offsets = [2, 128], sizes = [12, 32], strides = [1, 1]} : vector<14x288xf32> to vector<12x32xf32>
    %374 = tpu.concatenate %362, %363, %364, %365, %366, %367, %368, %369, %370, %371, %372, %373 in 1 : vector<12x32xf32>, vector<12x32xf32>, vector<12x32xf32>, vector<12x32xf32>, vector<12x32xf32>, vector<12x32xf32>, vector<12x32xf32>, vector<12x32xf32>, vector<12x32xf32>, vector<12x32xf32>, vector<12x32xf32>, vector<12x32xf32> -> vector<12x384xf32>
    %375 = vector.extract_strided_slice %348 {offsets = [0, 64], sizes = [12, 32], strides = [1, 1]} : vector<14x288xf32> to vector<12x32xf32>
    %376 = vector.extract_strided_slice %348 {offsets = [1, 64], sizes = [12, 32], strides = [1, 1]} : vector<14x288xf32> to vector<12x32xf32>
    %377 = vector.extract_strided_slice %348 {offsets = [2, 64], sizes = [12, 32], strides = [1, 1]} : vector<14x288xf32> to vector<12x32xf32>
    %378 = vector.extract_strided_slice %348 {offsets = [0, 96], sizes = [12, 32], strides = [1, 1]} : vector<14x288xf32> to vector<12x32xf32>
    %379 = vector.extract_strided_slice %348 {offsets = [1, 96], sizes = [12, 32], strides = [1, 1]} : vector<14x288xf32> to vector<12x32xf32>
    %380 = vector.extract_strided_slice %348 {offsets = [2, 96], sizes = [12, 32], strides = [1, 1]} : vector<14x288xf32> to vector<12x32xf32>
    %381 = vector.extract_strided_slice %348 {offsets = [0, 128], sizes = [12, 32], strides = [1, 1]} : vector<14x288xf32> to vector<12x32xf32>
    %382 = vector.extract_strided_slice %348 {offsets = [1, 128], sizes = [12, 32], strides = [1, 1]} : vector<14x288xf32> to vector<12x32xf32>
    %383 = vector.extract_strided_slice %348 {offsets = [2, 128], sizes = [12, 32], strides = [1, 1]} : vector<14x288xf32> to vector<12x32xf32>
    %384 = vector.extract_strided_slice %348 {offsets = [0, 160], sizes = [12, 32], strides = [1, 1]} : vector<14x288xf32> to vector<12x32xf32>
    %385 = vector.extract_strided_slice %348 {offsets = [1, 160], sizes = [12, 32], strides = [1, 1]} : vector<14x288xf32> to vector<12x32xf32>
    %386 = vector.extract_strided_slice %348 {offsets = [2, 160], sizes = [12, 32], strides = [1, 1]} : vector<14x288xf32> to vector<12x32xf32>
    %387 = tpu.concatenate %375, %376, %377, %378, %379, %380, %381, %382, %383, %384, %385, %386 in 1 : vector<12x32xf32>, vector<12x32xf32>, vector<12x32xf32>, vector<12x32xf32>, vector<12x32xf32>, vector<12x32xf32>, vector<12x32xf32>, vector<12x32xf32>, vector<12x32xf32>, vector<12x32xf32>, vector<12x32xf32>, vector<12x32xf32> -> vector<12x384xf32>
    %388 = vector.extract_strided_slice %348 {offsets = [0, 96], sizes = [12, 32], strides = [1, 1]} : vector<14x288xf32> to vector<12x32xf32>
    %389 = vector.extract_strided_slice %348 {offsets = [1, 96], sizes = [12, 32], strides = [1, 1]} : vector<14x288xf32> to vector<12x32xf32>
    %390 = vector.extract_strided_slice %348 {offsets = [2, 96], sizes = [12, 32], strides = [1, 1]} : vector<14x288xf32> to vector<12x32xf32>
    %391 = vector.extract_strided_slice %348 {offsets = [0, 128], sizes = [12, 32], strides = [1, 1]} : vector<14x288xf32> to vector<12x32xf32>
    %392 = vector.extract_strided_slice %348 {offsets = [1, 128], sizes = [12, 32], strides = [1, 1]} : vector<14x288xf32> to vector<12x32xf32>
    %393 = vector.extract_strided_slice %348 {offsets = [2, 128], sizes = [12, 32], strides = [1, 1]} : vector<14x288xf32> to vector<12x32xf32>
    %394 = vector.extract_strided_slice %348 {offsets = [0, 160], sizes = [12, 32], strides = [1, 1]} : vector<14x288xf32> to vector<12x32xf32>
    %395 = vector.extract_strided_slice %348 {offsets = [1, 160], sizes = [12, 32], strides = [1, 1]} : vector<14x288xf32> to vector<12x32xf32>
    %396 = vector.extract_strided_slice %348 {offsets = [2, 160], sizes = [12, 32], strides = [1, 1]} : vector<14x288xf32> to vector<12x32xf32>
    %397 = vector.extract_strided_slice %348 {offsets = [0, 192], sizes = [12, 32], strides = [1, 1]} : vector<14x288xf32> to vector<12x32xf32>
    %398 = vector.extract_strided_slice %348 {offsets = [1, 192], sizes = [12, 32], strides = [1, 1]} : vector<14x288xf32> to vector<12x32xf32>
    %399 = vector.extract_strided_slice %348 {offsets = [2, 192], sizes = [12, 32], strides = [1, 1]} : vector<14x288xf32> to vector<12x32xf32>
    %400 = tpu.concatenate %388, %389, %390, %391, %392, %393, %394, %395, %396, %397, %398, %399 in 1 : vector<12x32xf32>, vector<12x32xf32>, vector<12x32xf32>, vector<12x32xf32>, vector<12x32xf32>, vector<12x32xf32>, vector<12x32xf32>, vector<12x32xf32>, vector<12x32xf32>, vector<12x32xf32>, vector<12x32xf32>, vector<12x32xf32> -> vector<12x384xf32>
    %401 = vector.extract_strided_slice %348 {offsets = [0, 128], sizes = [12, 32], strides = [1, 1]} : vector<14x288xf32> to vector<12x32xf32>
    %402 = vector.extract_strided_slice %348 {offsets = [1, 128], sizes = [12, 32], strides = [1, 1]} : vector<14x288xf32> to vector<12x32xf32>
    %403 = vector.extract_strided_slice %348 {offsets = [2, 128], sizes = [12, 32], strides = [1, 1]} : vector<14x288xf32> to vector<12x32xf32>
    %404 = vector.extract_strided_slice %348 {offsets = [0, 160], sizes = [12, 32], strides = [1, 1]} : vector<14x288xf32> to vector<12x32xf32>
    %405 = vector.extract_strided_slice %348 {offsets = [1, 160], sizes = [12, 32], strides = [1, 1]} : vector<14x288xf32> to vector<12x32xf32>
    %406 = vector.extract_strided_slice %348 {offsets = [2, 160], sizes = [12, 32], strides = [1, 1]} : vector<14x288xf32> to vector<12x32xf32>
    %407 = vector.extract_strided_slice %348 {offsets = [0, 192], sizes = [12, 32], strides = [1, 1]} : vector<14x288xf32> to vector<12x32xf32>
    %408 = vector.extract_strided_slice %348 {offsets = [1, 192], sizes = [12, 32], strides = [1, 1]} : vector<14x288xf32> to vector<12x32xf32>
    %409 = vector.extract_strided_slice %348 {offsets = [2, 192], sizes = [12, 32], strides = [1, 1]} : vector<14x288xf32> to vector<12x32xf32>
    %410 = vector.extract_strided_slice %348 {offsets = [0, 224], sizes = [12, 32], strides = [1, 1]} : vector<14x288xf32> to vector<12x32xf32>
    %411 = vector.extract_strided_slice %348 {offsets = [1, 224], sizes = [12, 32], strides = [1, 1]} : vector<14x288xf32> to vector<12x32xf32>
    %412 = vector.extract_strided_slice %348 {offsets = [2, 224], sizes = [12, 32], strides = [1, 1]} : vector<14x288xf32> to vector<12x32xf32>
    %413 = tpu.concatenate %401, %402, %403, %404, %405, %406, %407, %408, %409, %410, %411, %412 in 1 : vector<12x32xf32>, vector<12x32xf32>, vector<12x32xf32>, vector<12x32xf32>, vector<12x32xf32>, vector<12x32xf32>, vector<12x32xf32>, vector<12x32xf32>, vector<12x32xf32>, vector<12x32xf32>, vector<12x32xf32>, vector<12x32xf32> -> vector<12x384xf32>
    %414 = vector.extract_strided_slice %348 {offsets = [0, 160], sizes = [12, 32], strides = [1, 1]} : vector<14x288xf32> to vector<12x32xf32>
    %415 = vector.extract_strided_slice %348 {offsets = [1, 160], sizes = [12, 32], strides = [1, 1]} : vector<14x288xf32> to vector<12x32xf32>
    %416 = vector.extract_strided_slice %348 {offsets = [2, 160], sizes = [12, 32], strides = [1, 1]} : vector<14x288xf32> to vector<12x32xf32>
    %417 = vector.extract_strided_slice %348 {offsets = [0, 192], sizes = [12, 32], strides = [1, 1]} : vector<14x288xf32> to vector<12x32xf32>
    %418 = vector.extract_strided_slice %348 {offsets = [1, 192], sizes = [12, 32], strides = [1, 1]} : vector<14x288xf32> to vector<12x32xf32>
    %419 = vector.extract_strided_slice %348 {offsets = [2, 192], sizes = [12, 32], strides = [1, 1]} : vector<14x288xf32> to vector<12x32xf32>
    %420 = vector.extract_strided_slice %348 {offsets = [0, 224], sizes = [12, 32], strides = [1, 1]} : vector<14x288xf32> to vector<12x32xf32>
    %421 = vector.extract_strided_slice %348 {offsets = [1, 224], sizes = [12, 32], strides = [1, 1]} : vector<14x288xf32> to vector<12x32xf32>
    %422 = vector.extract_strided_slice %348 {offsets = [2, 224], sizes = [12, 32], strides = [1, 1]} : vector<14x288xf32> to vector<12x32xf32>
    %423 = vector.extract_strided_slice %348 {offsets = [0, 256], sizes = [12, 32], strides = [1, 1]} : vector<14x288xf32> to vector<12x32xf32>
    %424 = vector.extract_strided_slice %348 {offsets = [1, 256], sizes = [12, 32], strides = [1, 1]} : vector<14x288xf32> to vector<12x32xf32>
    %425 = vector.extract_strided_slice %348 {offsets = [2, 256], sizes = [12, 32], strides = [1, 1]} : vector<14x288xf32> to vector<12x32xf32>
    %426 = tpu.concatenate %414, %415, %416, %417, %418, %419, %420, %421, %422, %423, %424, %425 in 1 : vector<12x32xf32>, vector<12x32xf32>, vector<12x32xf32>, vector<12x32xf32>, vector<12x32xf32>, vector<12x32xf32>, vector<12x32xf32>, vector<12x32xf32>, vector<12x32xf32>, vector<12x32xf32>, vector<12x32xf32>, vector<12x32xf32> -> vector<12x384xf32>
    %427 = tpu.concatenate %361, %374, %387, %400, %413, %426 in 0 : vector<12x384xf32>, vector<12x384xf32>, vector<12x384xf32>, vector<12x384xf32>, vector<12x384xf32>, vector<12x384xf32> -> vector<72x384xf32>
    %428 = arith.truncf %427 : vector<72x384xf32> to vector<72x384xbf16>
    %c0_37 = arith.constant 0 : index
    %c0_38 = arith.constant 0 : index
    %429 = vector.load %arg3[%c0_37, %c0_38] : memref<384x128xbf16, #tpu.memory_space<vmem>>, vector<384x128xbf16>
    %cst_39 = arith.constant dense<0.000000e+00> : vector<72x128xf32>
    %430 = tpu.matmul %428, %429, %cst_39 {dimension_numbers = #tpu.dot_dimension_numbers<[1], [0], [0], [1], [0, 0, 1, 1], [], []>} : vector<72x384xbf16>, vector<384x128xbf16>, vector<72x128xf32> -> vector<72x128xf32>
    %c0_40 = arith.constant 0 : index
    %c0_41 = arith.constant 0 : index
    %431 = vector.load %arg4[%c0_40, %c0_41] : memref<1x128xf32, #tpu.memory_space<vmem>>, vector<1x128xf32>
    %432 = vector.broadcast %431 : vector<1x128xf32> to vector<72x128xf32>
    %433 = arith.addf %430, %432 : vector<72x128xf32>
    %cst_42 = arith.constant 0.000000e+00 : f32
    %434 = vector.broadcast %cst_42 : f32 to vector<72x128xf32>
    %435 = arith.maximumf %433, %434 : vector<72x128xf32>
    %436 = vector.extract_strided_slice %435 {offsets = [0, 0], sizes = [12, 128], strides = [1, 1]} : vector<72x128xf32> to vector<12x128xf32>
    %437 = vector.extract_strided_slice %435 {offsets = [12, 0], sizes = [12, 128], strides = [1, 1]} : vector<72x128xf32> to vector<12x128xf32>
    %438 = arith.maximumf %436, %437 : vector<12x128xf32>
    %439 = vector.extract_strided_slice %438 {offsets = [0, 0], sizes = [1, 128], strides = [1, 1]} : vector<12x128xf32> to vector<1x128xf32>
    %440 = vector.extract_strided_slice %438 {offsets = [1, 0], sizes = [1, 128], strides = [1, 1]} : vector<12x128xf32> to vector<1x128xf32>
    %441 = arith.maximumf %439, %440 : vector<1x128xf32>
    %442 = vector.extract_strided_slice %438 {offsets = [2, 0], sizes = [1, 128], strides = [1, 1]} : vector<12x128xf32> to vector<1x128xf32>
    %443 = vector.extract_strided_slice %438 {offsets = [3, 0], sizes = [1, 128], strides = [1, 1]} : vector<12x128xf32> to vector<1x128xf32>
    %444 = arith.maximumf %442, %443 : vector<1x128xf32>
    %445 = vector.extract_strided_slice %438 {offsets = [4, 0], sizes = [1, 128], strides = [1, 1]} : vector<12x128xf32> to vector<1x128xf32>
    %446 = vector.extract_strided_slice %438 {offsets = [5, 0], sizes = [1, 128], strides = [1, 1]} : vector<12x128xf32> to vector<1x128xf32>
    %447 = arith.maximumf %445, %446 : vector<1x128xf32>
    %448 = vector.extract_strided_slice %438 {offsets = [6, 0], sizes = [1, 128], strides = [1, 1]} : vector<12x128xf32> to vector<1x128xf32>
    %449 = vector.extract_strided_slice %438 {offsets = [7, 0], sizes = [1, 128], strides = [1, 1]} : vector<12x128xf32> to vector<1x128xf32>
    %450 = arith.maximumf %448, %449 : vector<1x128xf32>
    %451 = vector.extract_strided_slice %438 {offsets = [8, 0], sizes = [1, 128], strides = [1, 1]} : vector<12x128xf32> to vector<1x128xf32>
    %452 = vector.extract_strided_slice %438 {offsets = [9, 0], sizes = [1, 128], strides = [1, 1]} : vector<12x128xf32> to vector<1x128xf32>
    %453 = arith.maximumf %451, %452 : vector<1x128xf32>
    %454 = vector.extract_strided_slice %438 {offsets = [10, 0], sizes = [1, 128], strides = [1, 1]} : vector<12x128xf32> to vector<1x128xf32>
    %455 = vector.extract_strided_slice %438 {offsets = [11, 0], sizes = [1, 128], strides = [1, 1]} : vector<12x128xf32> to vector<1x128xf32>
    %456 = arith.maximumf %454, %455 : vector<1x128xf32>
    %457 = tpu.concatenate %441, %444, %447, %450, %453, %456 in 0 : vector<1x128xf32>, vector<1x128xf32>, vector<1x128xf32>, vector<1x128xf32>, vector<1x128xf32>, vector<1x128xf32> -> vector<6x128xf32>
    %458 = vector.extract_strided_slice %435 {offsets = [24, 0], sizes = [12, 128], strides = [1, 1]} : vector<72x128xf32> to vector<12x128xf32>
    %459 = vector.extract_strided_slice %435 {offsets = [36, 0], sizes = [12, 128], strides = [1, 1]} : vector<72x128xf32> to vector<12x128xf32>
    %460 = arith.maximumf %458, %459 : vector<12x128xf32>
    %461 = vector.extract_strided_slice %460 {offsets = [0, 0], sizes = [1, 128], strides = [1, 1]} : vector<12x128xf32> to vector<1x128xf32>
    %462 = vector.extract_strided_slice %460 {offsets = [1, 0], sizes = [1, 128], strides = [1, 1]} : vector<12x128xf32> to vector<1x128xf32>
    %463 = arith.maximumf %461, %462 : vector<1x128xf32>
    %464 = vector.extract_strided_slice %460 {offsets = [2, 0], sizes = [1, 128], strides = [1, 1]} : vector<12x128xf32> to vector<1x128xf32>
    %465 = vector.extract_strided_slice %460 {offsets = [3, 0], sizes = [1, 128], strides = [1, 1]} : vector<12x128xf32> to vector<1x128xf32>
    %466 = arith.maximumf %464, %465 : vector<1x128xf32>
    %467 = vector.extract_strided_slice %460 {offsets = [4, 0], sizes = [1, 128], strides = [1, 1]} : vector<12x128xf32> to vector<1x128xf32>
    %468 = vector.extract_strided_slice %460 {offsets = [5, 0], sizes = [1, 128], strides = [1, 1]} : vector<12x128xf32> to vector<1x128xf32>
    %469 = arith.maximumf %467, %468 : vector<1x128xf32>
    %470 = vector.extract_strided_slice %460 {offsets = [6, 0], sizes = [1, 128], strides = [1, 1]} : vector<12x128xf32> to vector<1x128xf32>
    %471 = vector.extract_strided_slice %460 {offsets = [7, 0], sizes = [1, 128], strides = [1, 1]} : vector<12x128xf32> to vector<1x128xf32>
    %472 = arith.maximumf %470, %471 : vector<1x128xf32>
    %473 = vector.extract_strided_slice %460 {offsets = [8, 0], sizes = [1, 128], strides = [1, 1]} : vector<12x128xf32> to vector<1x128xf32>
    %474 = vector.extract_strided_slice %460 {offsets = [9, 0], sizes = [1, 128], strides = [1, 1]} : vector<12x128xf32> to vector<1x128xf32>
    %475 = arith.maximumf %473, %474 : vector<1x128xf32>
    %476 = vector.extract_strided_slice %460 {offsets = [10, 0], sizes = [1, 128], strides = [1, 1]} : vector<12x128xf32> to vector<1x128xf32>
    %477 = vector.extract_strided_slice %460 {offsets = [11, 0], sizes = [1, 128], strides = [1, 1]} : vector<12x128xf32> to vector<1x128xf32>
    %478 = arith.maximumf %476, %477 : vector<1x128xf32>
    %479 = tpu.concatenate %463, %466, %469, %472, %475, %478 in 0 : vector<1x128xf32>, vector<1x128xf32>, vector<1x128xf32>, vector<1x128xf32>, vector<1x128xf32>, vector<1x128xf32> -> vector<6x128xf32>
    %480 = vector.extract_strided_slice %435 {offsets = [48, 0], sizes = [12, 128], strides = [1, 1]} : vector<72x128xf32> to vector<12x128xf32>
    %481 = vector.extract_strided_slice %435 {offsets = [60, 0], sizes = [12, 128], strides = [1, 1]} : vector<72x128xf32> to vector<12x128xf32>
    %482 = arith.maximumf %480, %481 : vector<12x128xf32>
    %483 = vector.extract_strided_slice %482 {offsets = [0, 0], sizes = [1, 128], strides = [1, 1]} : vector<12x128xf32> to vector<1x128xf32>
    %484 = vector.extract_strided_slice %482 {offsets = [1, 0], sizes = [1, 128], strides = [1, 1]} : vector<12x128xf32> to vector<1x128xf32>
    %485 = arith.maximumf %483, %484 : vector<1x128xf32>
    %486 = vector.extract_strided_slice %482 {offsets = [2, 0], sizes = [1, 128], strides = [1, 1]} : vector<12x128xf32> to vector<1x128xf32>
    %487 = vector.extract_strided_slice %482 {offsets = [3, 0], sizes = [1, 128], strides = [1, 1]} : vector<12x128xf32> to vector<1x128xf32>
    %488 = arith.maximumf %486, %487 : vector<1x128xf32>
    %489 = vector.extract_strided_slice %482 {offsets = [4, 0], sizes = [1, 128], strides = [1, 1]} : vector<12x128xf32> to vector<1x128xf32>
    %490 = vector.extract_strided_slice %482 {offsets = [5, 0], sizes = [1, 128], strides = [1, 1]} : vector<12x128xf32> to vector<1x128xf32>
    %491 = arith.maximumf %489, %490 : vector<1x128xf32>
    %492 = vector.extract_strided_slice %482 {offsets = [6, 0], sizes = [1, 128], strides = [1, 1]} : vector<12x128xf32> to vector<1x128xf32>
    %493 = vector.extract_strided_slice %482 {offsets = [7, 0], sizes = [1, 128], strides = [1, 1]} : vector<12x128xf32> to vector<1x128xf32>
    %494 = arith.maximumf %492, %493 : vector<1x128xf32>
    %495 = vector.extract_strided_slice %482 {offsets = [8, 0], sizes = [1, 128], strides = [1, 1]} : vector<12x128xf32> to vector<1x128xf32>
    %496 = vector.extract_strided_slice %482 {offsets = [9, 0], sizes = [1, 128], strides = [1, 1]} : vector<12x128xf32> to vector<1x128xf32>
    %497 = arith.maximumf %495, %496 : vector<1x128xf32>
    %498 = vector.extract_strided_slice %482 {offsets = [10, 0], sizes = [1, 128], strides = [1, 1]} : vector<12x128xf32> to vector<1x128xf32>
    %499 = vector.extract_strided_slice %482 {offsets = [11, 0], sizes = [1, 128], strides = [1, 1]} : vector<12x128xf32> to vector<1x128xf32>
    %500 = arith.maximumf %498, %499 : vector<1x128xf32>
    %501 = tpu.concatenate %485, %488, %491, %494, %497, %500 in 0 : vector<1x128xf32>, vector<1x128xf32>, vector<1x128xf32>, vector<1x128xf32>, vector<1x128xf32>, vector<1x128xf32> -> vector<6x128xf32>
    %502 = vector.extract_strided_slice %457 {offsets = [0, 0], sizes = [4, 64], strides = [1, 1]} : vector<6x128xf32> to vector<4x64xf32>
    %503 = vector.extract_strided_slice %457 {offsets = [1, 0], sizes = [4, 64], strides = [1, 1]} : vector<6x128xf32> to vector<4x64xf32>
    %504 = vector.extract_strided_slice %457 {offsets = [2, 0], sizes = [4, 64], strides = [1, 1]} : vector<6x128xf32> to vector<4x64xf32>
    %505 = vector.extract_strided_slice %479 {offsets = [0, 0], sizes = [4, 64], strides = [1, 1]} : vector<6x128xf32> to vector<4x64xf32>
    %506 = vector.extract_strided_slice %479 {offsets = [1, 0], sizes = [4, 64], strides = [1, 1]} : vector<6x128xf32> to vector<4x64xf32>
    %507 = vector.extract_strided_slice %479 {offsets = [2, 0], sizes = [4, 64], strides = [1, 1]} : vector<6x128xf32> to vector<4x64xf32>
    %508 = vector.extract_strided_slice %501 {offsets = [0, 0], sizes = [4, 64], strides = [1, 1]} : vector<6x128xf32> to vector<4x64xf32>
    %509 = vector.extract_strided_slice %501 {offsets = [1, 0], sizes = [4, 64], strides = [1, 1]} : vector<6x128xf32> to vector<4x64xf32>
    %510 = vector.extract_strided_slice %501 {offsets = [2, 0], sizes = [4, 64], strides = [1, 1]} : vector<6x128xf32> to vector<4x64xf32>
    %511 = tpu.concatenate %502, %503, %504, %505, %506, %507, %508, %509, %510 in 1 : vector<4x64xf32>, vector<4x64xf32>, vector<4x64xf32>, vector<4x64xf32>, vector<4x64xf32>, vector<4x64xf32>, vector<4x64xf32>, vector<4x64xf32>, vector<4x64xf32> -> vector<4x576xf32>
    %512 = arith.truncf %511 : vector<4x576xf32> to vector<4x576xbf16>
    %c0_43 = arith.constant 0 : index
    %c0_44 = arith.constant 0 : index
    %513 = vector.load %arg5[%c0_43, %c0_44] : memref<576x128xbf16, #tpu.memory_space<vmem>>, vector<576x128xbf16>
    %cst_45 = arith.constant dense<0.000000e+00> : vector<4x128xf32>
    %514 = tpu.matmul %512, %513, %cst_45 {dimension_numbers = #tpu.dot_dimension_numbers<[1], [0], [0], [1], [0, 0, 1, 1], [], []>} : vector<4x576xbf16>, vector<576x128xbf16>, vector<4x128xf32> -> vector<4x128xf32>
    %c0_46 = arith.constant 0 : index
    %c0_47 = arith.constant 0 : index
    %515 = vector.load %arg6[%c0_46, %c0_47] : memref<1x128xf32, #tpu.memory_space<vmem>>, vector<1x128xf32>
    %516 = vector.broadcast %515 : vector<1x128xf32> to vector<4x128xf32>
    %517 = arith.addf %514, %516 : vector<4x128xf32>
    %cst_48 = arith.constant 0.000000e+00 : f32
    %518 = vector.broadcast %cst_48 : f32 to vector<4x128xf32>
    %519 = arith.maximumf %517, %518 : vector<4x128xf32>
    %520 = vector.extract_strided_slice %259 {offsets = [0, 0], sizes = [1, 128], strides = [1, 1]} : vector<4x128xf32> to vector<1x128xf32>
    %521 = vector.extract_strided_slice %519 {offsets = [0, 0], sizes = [1, 128], strides = [1, 1]} : vector<4x128xf32> to vector<1x128xf32>
    %522 = vector.extract_strided_slice %259 {offsets = [1, 0], sizes = [1, 128], strides = [1, 1]} : vector<4x128xf32> to vector<1x128xf32>
    %523 = vector.extract_strided_slice %519 {offsets = [1, 0], sizes = [1, 128], strides = [1, 1]} : vector<4x128xf32> to vector<1x128xf32>
    %524 = vector.extract_strided_slice %259 {offsets = [2, 0], sizes = [1, 128], strides = [1, 1]} : vector<4x128xf32> to vector<1x128xf32>
    %525 = vector.extract_strided_slice %519 {offsets = [2, 0], sizes = [1, 128], strides = [1, 1]} : vector<4x128xf32> to vector<1x128xf32>
    %526 = vector.extract_strided_slice %259 {offsets = [3, 0], sizes = [1, 128], strides = [1, 1]} : vector<4x128xf32> to vector<1x128xf32>
    %527 = vector.extract_strided_slice %519 {offsets = [3, 0], sizes = [1, 128], strides = [1, 1]} : vector<4x128xf32> to vector<1x128xf32>
    %528 = tpu.concatenate %520, %521, %522, %523, %524, %525, %526, %527 in 0 : vector<1x128xf32>, vector<1x128xf32>, vector<1x128xf32>, vector<1x128xf32>, vector<1x128xf32>, vector<1x128xf32>, vector<1x128xf32>, vector<1x128xf32> -> vector<8x128xf32>
    %529 = arith.truncf %528 : vector<8x128xf32> to vector<8x128xbf16>
    %c0_49 = arith.constant 0 : index
    %c0_50 = arith.constant 0 : index
    %530 = vector.load %arg7[%c0_49, %c0_50] : memref<128x384xbf16, #tpu.memory_space<vmem>>, vector<128x384xbf16>
    %cst_51 = arith.constant dense<0.000000e+00> : vector<8x384xf32>
    %531 = tpu.matmul %529, %530, %cst_51 {dimension_numbers = #tpu.dot_dimension_numbers<[1], [0], [0], [1], [0, 0, 1, 1], [], []>} : vector<8x128xbf16>, vector<128x384xbf16>, vector<8x384xf32> -> vector<8x384xf32>
    %c0_52 = arith.constant 0 : index
    %c0_53 = arith.constant 0 : index
    %532 = vector.load %arg8[%c0_52, %c0_53] : memref<1x384xf32, #tpu.memory_space<vmem>>, vector<1x384xf32>
    %533 = vector.broadcast %532 : vector<1x384xf32> to vector<8x384xf32>
    %534 = arith.addf %531, %533 : vector<8x384xf32>
    %c0_54 = arith.constant 0 : index
    %c0_55 = arith.constant 0 : index
    %535 = vector.load %arg9[%c0_54, %c0_55] : memref<128x384xbf16, #tpu.memory_space<vmem>>, vector<128x384xbf16>
    %c0_56 = arith.constant 0 : index
    %c0_57 = arith.constant 0 : index
    %536 = vector.load %arg10[%c0_56, %c0_57] : memref<1x384xf32, #tpu.memory_space<vmem>>, vector<1x384xf32>
    %cst_58 = arith.constant 0.000000e+00 : f32
    %537 = vector.broadcast %cst_58 : f32 to vector<2x128xf32>
    %538 = vector.extract_strided_slice %534 {offsets = [0, 0], sizes = [2, 384], strides = [1, 1]} : vector<8x384xf32> to vector<2x384xf32>
    %539 = arith.truncf %537 : vector<2x128xf32> to vector<2x128xbf16>
    %cst_59 = arith.constant dense<0.000000e+00> : vector<2x384xf32>
    %540 = tpu.matmul %539, %535, %cst_59 {dimension_numbers = #tpu.dot_dimension_numbers<[1], [0], [0], [1], [0, 0, 1, 1], [], []>} : vector<2x128xbf16>, vector<128x384xbf16>, vector<2x384xf32> -> vector<2x384xf32>
    %541 = vector.broadcast %536 : vector<1x384xf32> to vector<2x384xf32>
    %542 = arith.addf %540, %541 : vector<2x384xf32>
    %543 = vector.extract_strided_slice %538 {offsets = [0, 0], sizes = [2, 128], strides = [1, 1]} : vector<2x384xf32> to vector<2x128xf32>
    %544 = vector.extract_strided_slice %542 {offsets = [0, 0], sizes = [2, 128], strides = [1, 1]} : vector<2x384xf32> to vector<2x128xf32>
    %545 = arith.addf %543, %544 : vector<2x128xf32>
    %546 = arith.negf %545 : vector<2x128xf32>
    %547 = math.exp %546 : vector<2x128xf32>
    %cst_60 = arith.constant 1.000000e+00 : f32
    %548 = vector.broadcast %cst_60 : f32 to vector<2x128xf32>
    %549 = arith.addf %548, %547 : vector<2x128xf32>
    %550 = arith.divf %548, %549 : vector<2x128xf32>
    %551 = vector.extract_strided_slice %538 {offsets = [0, 128], sizes = [2, 128], strides = [1, 1]} : vector<2x384xf32> to vector<2x128xf32>
    %552 = vector.extract_strided_slice %542 {offsets = [0, 128], sizes = [2, 128], strides = [1, 1]} : vector<2x384xf32> to vector<2x128xf32>
    %553 = arith.addf %551, %552 : vector<2x128xf32>
    %554 = arith.negf %553 : vector<2x128xf32>
    %555 = math.exp %554 : vector<2x128xf32>
    %cst_61 = arith.constant 1.000000e+00 : f32
    %556 = vector.broadcast %cst_61 : f32 to vector<2x128xf32>
    %557 = arith.addf %556, %555 : vector<2x128xf32>
    %558 = arith.divf %556, %557 : vector<2x128xf32>
    %559 = vector.extract_strided_slice %538 {offsets = [0, 256], sizes = [2, 128], strides = [1, 1]} : vector<2x384xf32> to vector<2x128xf32>
    %560 = vector.extract_strided_slice %542 {offsets = [0, 256], sizes = [2, 128], strides = [1, 1]} : vector<2x384xf32> to vector<2x128xf32>
    %561 = arith.mulf %550, %560 : vector<2x128xf32>
    %562 = arith.addf %559, %561 : vector<2x128xf32>
    %563 = math.tanh %562 : vector<2x128xf32>
    %cst_62 = arith.constant 1.000000e+00 : f32
    %564 = vector.broadcast %cst_62 : f32 to vector<2x128xf32>
    %565 = arith.subf %564, %558 : vector<2x128xf32>
    %566 = arith.mulf %565, %563 : vector<2x128xf32>
    %567 = arith.mulf %558, %537 : vector<2x128xf32>
    %568 = arith.addf %566, %567 : vector<2x128xf32>
    %569 = vector.extract_strided_slice %534 {offsets = [2, 0], sizes = [2, 384], strides = [1, 1]} : vector<8x384xf32> to vector<2x384xf32>
    %570 = arith.truncf %568 : vector<2x128xf32> to vector<2x128xbf16>
    %cst_63 = arith.constant dense<0.000000e+00> : vector<2x384xf32>
    %571 = tpu.matmul %570, %535, %cst_63 {dimension_numbers = #tpu.dot_dimension_numbers<[1], [0], [0], [1], [0, 0, 1, 1], [], []>} : vector<2x128xbf16>, vector<128x384xbf16>, vector<2x384xf32> -> vector<2x384xf32>
    %572 = vector.broadcast %536 : vector<1x384xf32> to vector<2x384xf32>
    %573 = arith.addf %571, %572 : vector<2x384xf32>
    %574 = vector.extract_strided_slice %569 {offsets = [0, 0], sizes = [2, 128], strides = [1, 1]} : vector<2x384xf32> to vector<2x128xf32>
    %575 = vector.extract_strided_slice %573 {offsets = [0, 0], sizes = [2, 128], strides = [1, 1]} : vector<2x384xf32> to vector<2x128xf32>
    %576 = arith.addf %574, %575 : vector<2x128xf32>
    %577 = arith.negf %576 : vector<2x128xf32>
    %578 = math.exp %577 : vector<2x128xf32>
    %cst_64 = arith.constant 1.000000e+00 : f32
    %579 = vector.broadcast %cst_64 : f32 to vector<2x128xf32>
    %580 = arith.addf %579, %578 : vector<2x128xf32>
    %581 = arith.divf %579, %580 : vector<2x128xf32>
    %582 = vector.extract_strided_slice %569 {offsets = [0, 128], sizes = [2, 128], strides = [1, 1]} : vector<2x384xf32> to vector<2x128xf32>
    %583 = vector.extract_strided_slice %573 {offsets = [0, 128], sizes = [2, 128], strides = [1, 1]} : vector<2x384xf32> to vector<2x128xf32>
    %584 = arith.addf %582, %583 : vector<2x128xf32>
    %585 = arith.negf %584 : vector<2x128xf32>
    %586 = math.exp %585 : vector<2x128xf32>
    %cst_65 = arith.constant 1.000000e+00 : f32
    %587 = vector.broadcast %cst_65 : f32 to vector<2x128xf32>
    %588 = arith.addf %587, %586 : vector<2x128xf32>
    %589 = arith.divf %587, %588 : vector<2x128xf32>
    %590 = vector.extract_strided_slice %569 {offsets = [0, 256], sizes = [2, 128], strides = [1, 1]} : vector<2x384xf32> to vector<2x128xf32>
    %591 = vector.extract_strided_slice %573 {offsets = [0, 256], sizes = [2, 128], strides = [1, 1]} : vector<2x384xf32> to vector<2x128xf32>
    %592 = arith.mulf %581, %591 : vector<2x128xf32>
    %593 = arith.addf %590, %592 : vector<2x128xf32>
    %594 = math.tanh %593 : vector<2x128xf32>
    %cst_66 = arith.constant 1.000000e+00 : f32
    %595 = vector.broadcast %cst_66 : f32 to vector<2x128xf32>
    %596 = arith.subf %595, %589 : vector<2x128xf32>
    %597 = arith.mulf %596, %594 : vector<2x128xf32>
    %598 = arith.mulf %589, %568 : vector<2x128xf32>
    %599 = arith.addf %597, %598 : vector<2x128xf32>
    %600 = arith.maximumf %568, %599 : vector<2x128xf32>
    %601 = vector.extract_strided_slice %534 {offsets = [4, 0], sizes = [2, 384], strides = [1, 1]} : vector<8x384xf32> to vector<2x384xf32>
    %602 = arith.truncf %599 : vector<2x128xf32> to vector<2x128xbf16>
    %cst_67 = arith.constant dense<0.000000e+00> : vector<2x384xf32>
    %603 = tpu.matmul %602, %535, %cst_67 {dimension_numbers = #tpu.dot_dimension_numbers<[1], [0], [0], [1], [0, 0, 1, 1], [], []>} : vector<2x128xbf16>, vector<128x384xbf16>, vector<2x384xf32> -> vector<2x384xf32>
    %604 = vector.broadcast %536 : vector<1x384xf32> to vector<2x384xf32>
    %605 = arith.addf %603, %604 : vector<2x384xf32>
    %606 = vector.extract_strided_slice %601 {offsets = [0, 0], sizes = [2, 128], strides = [1, 1]} : vector<2x384xf32> to vector<2x128xf32>
    %607 = vector.extract_strided_slice %605 {offsets = [0, 0], sizes = [2, 128], strides = [1, 1]} : vector<2x384xf32> to vector<2x128xf32>
    %608 = arith.addf %606, %607 : vector<2x128xf32>
    %609 = arith.negf %608 : vector<2x128xf32>
    %610 = math.exp %609 : vector<2x128xf32>
    %cst_68 = arith.constant 1.000000e+00 : f32
    %611 = vector.broadcast %cst_68 : f32 to vector<2x128xf32>
    %612 = arith.addf %611, %610 : vector<2x128xf32>
    %613 = arith.divf %611, %612 : vector<2x128xf32>
    %614 = vector.extract_strided_slice %601 {offsets = [0, 128], sizes = [2, 128], strides = [1, 1]} : vector<2x384xf32> to vector<2x128xf32>
    %615 = vector.extract_strided_slice %605 {offsets = [0, 128], sizes = [2, 128], strides = [1, 1]} : vector<2x384xf32> to vector<2x128xf32>
    %616 = arith.addf %614, %615 : vector<2x128xf32>
    %617 = arith.negf %616 : vector<2x128xf32>
    %618 = math.exp %617 : vector<2x128xf32>
    %cst_69 = arith.constant 1.000000e+00 : f32
    %619 = vector.broadcast %cst_69 : f32 to vector<2x128xf32>
    %620 = arith.addf %619, %618 : vector<2x128xf32>
    %621 = arith.divf %619, %620 : vector<2x128xf32>
    %622 = vector.extract_strided_slice %601 {offsets = [0, 256], sizes = [2, 128], strides = [1, 1]} : vector<2x384xf32> to vector<2x128xf32>
    %623 = vector.extract_strided_slice %605 {offsets = [0, 256], sizes = [2, 128], strides = [1, 1]} : vector<2x384xf32> to vector<2x128xf32>
    %624 = arith.mulf %613, %623 : vector<2x128xf32>
    %625 = arith.addf %622, %624 : vector<2x128xf32>
    %626 = math.tanh %625 : vector<2x128xf32>
    %cst_70 = arith.constant 1.000000e+00 : f32
    %627 = vector.broadcast %cst_70 : f32 to vector<2x128xf32>
    %628 = arith.subf %627, %621 : vector<2x128xf32>
    %629 = arith.mulf %628, %626 : vector<2x128xf32>
    %630 = arith.mulf %621, %599 : vector<2x128xf32>
    %631 = arith.addf %629, %630 : vector<2x128xf32>
    %632 = arith.maximumf %600, %631 : vector<2x128xf32>
    %633 = vector.extract_strided_slice %534 {offsets = [6, 0], sizes = [2, 384], strides = [1, 1]} : vector<8x384xf32> to vector<2x384xf32>
    %634 = arith.truncf %631 : vector<2x128xf32> to vector<2x128xbf16>
    %cst_71 = arith.constant dense<0.000000e+00> : vector<2x384xf32>
    %635 = tpu.matmul %634, %535, %cst_71 {dimension_numbers = #tpu.dot_dimension_numbers<[1], [0], [0], [1], [0, 0, 1, 1], [], []>} : vector<2x128xbf16>, vector<128x384xbf16>, vector<2x384xf32> -> vector<2x384xf32>
    %636 = vector.broadcast %536 : vector<1x384xf32> to vector<2x384xf32>
    %637 = arith.addf %635, %636 : vector<2x384xf32>
    %638 = vector.extract_strided_slice %633 {offsets = [0, 0], sizes = [2, 128], strides = [1, 1]} : vector<2x384xf32> to vector<2x128xf32>
    %639 = vector.extract_strided_slice %637 {offsets = [0, 0], sizes = [2, 128], strides = [1, 1]} : vector<2x384xf32> to vector<2x128xf32>
    %640 = arith.addf %638, %639 : vector<2x128xf32>
    %641 = arith.negf %640 : vector<2x128xf32>
    %642 = math.exp %641 : vector<2x128xf32>
    %cst_72 = arith.constant 1.000000e+00 : f32
    %643 = vector.broadcast %cst_72 : f32 to vector<2x128xf32>
    %644 = arith.addf %643, %642 : vector<2x128xf32>
    %645 = arith.divf %643, %644 : vector<2x128xf32>
    %646 = vector.extract_strided_slice %633 {offsets = [0, 128], sizes = [2, 128], strides = [1, 1]} : vector<2x384xf32> to vector<2x128xf32>
    %647 = vector.extract_strided_slice %637 {offsets = [0, 128], sizes = [2, 128], strides = [1, 1]} : vector<2x384xf32> to vector<2x128xf32>
    %648 = arith.addf %646, %647 : vector<2x128xf32>
    %649 = arith.negf %648 : vector<2x128xf32>
    %650 = math.exp %649 : vector<2x128xf32>
    %cst_73 = arith.constant 1.000000e+00 : f32
    %651 = vector.broadcast %cst_73 : f32 to vector<2x128xf32>
    %652 = arith.addf %651, %650 : vector<2x128xf32>
    %653 = arith.divf %651, %652 : vector<2x128xf32>
    %654 = vector.extract_strided_slice %633 {offsets = [0, 256], sizes = [2, 128], strides = [1, 1]} : vector<2x384xf32> to vector<2x128xf32>
    %655 = vector.extract_strided_slice %637 {offsets = [0, 256], sizes = [2, 128], strides = [1, 1]} : vector<2x384xf32> to vector<2x128xf32>
    %656 = arith.mulf %645, %655 : vector<2x128xf32>
    %657 = arith.addf %654, %656 : vector<2x128xf32>
    %658 = math.tanh %657 : vector<2x128xf32>
    %cst_74 = arith.constant 1.000000e+00 : f32
    %659 = vector.broadcast %cst_74 : f32 to vector<2x128xf32>
    %660 = arith.subf %659, %653 : vector<2x128xf32>
    %661 = arith.mulf %660, %658 : vector<2x128xf32>
    %662 = arith.mulf %653, %631 : vector<2x128xf32>
    %663 = arith.addf %661, %662 : vector<2x128xf32>
    %664 = arith.maximumf %632, %663 : vector<2x128xf32>
    %665 = arith.truncf %664 : vector<2x128xf32> to vector<2x128xbf16>
    %c0_75 = arith.constant 0 : index
    %c0_76 = arith.constant 0 : index
    %666 = vector.load %arg11[%c0_75, %c0_76] : memref<128x128xbf16, #tpu.memory_space<vmem>>, vector<128x128xbf16>
    %cst_77 = arith.constant dense<0.000000e+00> : vector<2x128xf32>
    %667 = tpu.matmul %665, %666, %cst_77 {dimension_numbers = #tpu.dot_dimension_numbers<[1], [0], [0], [1], [0, 0, 1, 1], [], []>} : vector<2x128xbf16>, vector<128x128xbf16>, vector<2x128xf32> -> vector<2x128xf32>
    %c0_78 = arith.constant 0 : index
    %c0_79 = arith.constant 0 : index
    %668 = vector.load %arg12[%c0_78, %c0_79] : memref<1x128xf32, #tpu.memory_space<vmem>>, vector<1x128xf32>
    %669 = vector.broadcast %668 : vector<1x128xf32> to vector<2x128xf32>
    %670 = arith.addf %667, %669 : vector<2x128xf32>
    %c0_80 = arith.constant 0 : index
    %c0_81 = arith.constant 0 : index
    %671 = vector.load %arg13[%c0_80, %c0_81] : memref<2x128xf32, #tpu.memory_space<vmem>>, vector<2x128xf32>
    tpu.vector_store %arg13[%c0_80, %c0_81], %670 {strides = array<i32>} : memref<2x128xf32, #tpu.memory_space<vmem>>, vector<2x128xf32>,
    return
  }
}

</mosaic_0001>

<llo_original>
// kernel: crnn2_forward.1
$region0: #{crnn2_forward.1}
  #allocation0 [shape = 'u32[]', space=smem, size = 0x4, offset = 0x4, fixed_abs, tag = 'smem constant byte address 0x4 - core index']
  #allocation1 [shape = 'u32[144,128]{1,0:T(1,128)}', space=vmem, size = 0x12000, scoped, tag = 'internal scratch']
  %s0 = inlined_call_operand.vmem [shape: f32[2,29,20], index: 0, kind: input, shape index: {}]
  %s1 = inlined_call_operand.vmem [shape: bf16[2,20,576], index: 1, kind: input, shape index: {}]
  %s2 = inlined_call_operand.vmem [shape: f32[1,576], index: 2, kind: input, shape index: {}]
  %s3 = inlined_call_operand.hbm [shape: bf16[384,128], index: 3, kind: input, shape index: {}]
  %s4 = inlined_call_operand.vmem [shape: f32[1,128], index: 4, kind: input, shape index: {}]
  %s5 = inlined_call_operand.vmem [shape: bf16[576,128], index: 5, kind: input, shape index: {}]
  %s6 = inlined_call_operand.hbm [shape: f32[1,128], index: 6, kind: input, shape index: {}]
  %s7 = inlined_call_operand.hbm [shape: bf16[128,384], index: 7, kind: input, shape index: {}]
  %s8 = inlined_call_operand.hbm [shape: f32[1,384], index: 8, kind: input, shape index: {}]
  %s9 = inlined_call_operand.hbm [shape: bf16[128,384], index: 9, kind: input, shape index: {}]
  %s10 = inlined_call_operand.hbm [shape: f32[1,384], index: 10, kind: input, shape index: {}]
  %s11 = inlined_call_operand.vmem [shape: bf16[128,128], index: 11, kind: input, shape index: {}]
  %s12 = inlined_call_operand.hbm [shape: f32[1,128], index: 12, kind: input, shape index: {}]
  %s13 = inlined_call_operand.hbm [shape: f32[2,128], index: 13, kind: output, shape index: {}]
  %s14 = sld [smem:[#allocation0]]
  $region90: #{crnn2_forward.1} parent=0
    _
  %s16 = ssub.s32 1, %s14
  %s17 = scalar_select 0, %s16, %s14
  $region1: #{crnn2_forward.1} parent=0
    #allocation2 [shape = 'u8[98304]{0}', space=vmem, size = 0x18000, scoped, tag = 'input window, operand 3, single buffered']
    #allocation3 [shape = 's32[1]{0}', space=sflag, size = 0x4, scoped, tag = 'scoped memory for crnn2_forward.1']
    #allocation4 [shape = 's32[1]{0}', space=sflag, size = 0x4, scoped, tag = 'scoped memory for crnn2_forward.1']
    #allocation5 [shape = 'u8[512]{0}', space=vmem, size = 0x400, scoped, tag = 'input window, operand 6, single buffered']
    #allocation6 [shape = 's32[1]{0}', space=sflag, size = 0x4, scoped, tag = 'scoped memory for crnn2_forward.1']
    #allocation7 [shape = 'u8[98304]{0}', space=vmem, size = 0x18000, scoped, tag = 'input window, operand 7, single buffered']
    #allocation8 [shape = 'u8[1536]{0}', space=vmem, size = 0x800, scoped, tag = 'input window, operand 8, single buffered']
    #allocation9 [shape = 's32[1]{0}', space=sflag, size = 0x4, scoped, tag = 'scoped memory for crnn2_forward.1']
    #allocation10 [shape = 'u8[98304]{0}', space=vmem, size = 0x18000, scoped, tag = 'input window, operand 9, single buffered']
    #allocation11 [shape = 'u8[1536]{0}', space=vmem, size = 0x800, scoped, tag = 'input window, operand 10, single buffered']
    #allocation12 [shape = 's32[1]{0}', space=sflag, size = 0x4, scoped, tag = 'scoped memory for crnn2_forward.1']
    #allocation13 [shape = 'u8[512]{0}', space=vmem, size = 0x400, scoped, tag = 'input window, operand 12, single buffered']
    #allocation14 [shape = 'u8[1024]{0}', space=vmem, size = 0x400, scoped, tag = 'output window, operand 0, single buffered']
    %18 = vsyncpa [#allocation3], 0
    %19 = vsyncpa [#allocation6], 0
    %20 = vsyncpa [#allocation9], 0
    %21 = vsyncpa [#allocation12], 0
    %22 = vsyncpa [#allocation4], 0
    // Predicated region
    $region2: #{crnn2_forward.1} parent=1 // pred_check
      _
    $region3: #{crnn2_forward.1} parent=1 // pred_check_branch
      %24 = sbr.rel (0) target = $region5
    $region4: #{crnn2_forward.1} parent=1 // pred_region
      _
    $region5: #{crnn2_forward.1} parent=1 // pred_fallthru
      _
    // Predicated region
    $region6: #{crnn2_forward.1} parent=1 // pred_check
      _
    $region7: #{crnn2_forward.1} parent=1 // pred_check_branch
      %26 = sbr.rel (0) target = $region9
    $region8: #{crnn2_forward.1} parent=1 // pred_region
      _
    $region9: #{crnn2_forward.1} parent=1 // pred_fallthru
      _
    // Predicated region
    $region10: #{crnn2_forward.1} parent=1 // pred_check
      _
    $region11: #{crnn2_forward.1} parent=1 // pred_check_branch
      %28 = sbr.rel (0) target = $region13
    $region12: #{crnn2_forward.1} parent=1 // pred_region
      _
    $region13: #{crnn2_forward.1} parent=1 // pred_fallthru
      _
    // Predicated region
    $region14: #{crnn2_forward.1} parent=1 // pred_check
      _
    $region15: #{crnn2_forward.1} parent=1 // pred_check_branch
      %30 = sbr.rel (0) target = $region17
    $region16: #{crnn2_forward.1} parent=1 // pred_region
      %s32 = ssub.s32 3072, 3072
      %33 = vsyncadd [#allocation3], %s32
      %s34 = sshll.u32 [#allocation2], 4
      %s35 = int_to_ptr.vmem [resolvable:$true] %s34
      %40 = dma.hbm_to_vmem [thread:$0]  %s3, 3072, %s35, [#allocation3], 64, 64, 4
    $region17: #{crnn2_forward.1} parent=1 // pred_fallthru
      _
    // Predicated region
    $region18: #{crnn2_forward.1} parent=1 // pred_check
      _
    $region19: #{crnn2_forward.1} parent=1 // pred_check_branch
      %42 = sbr.rel (0) target = $region21
    $region20: #{crnn2_forward.1} parent=1 // pred_region
      _
    $region21: #{crnn2_forward.1} parent=1 // pred_fallthru
      _
    // Predicated region
    $region22: #{crnn2_forward.1} parent=1 // pred_check
      _
    $region23: #{crnn2_forward.1} parent=1 // pred_check_branch
      %44 = sbr.rel (0) target = $region25
    $region24: #{crnn2_forward.1} parent=1 // pred_region
      _
    $region25: #{crnn2_forward.1} parent=1 // pred_fallthru
      _
    // Predicated region
    $region26: #{crnn2_forward.1} parent=1 // pred_check
      _
    $region27: #{crnn2_forward.1} parent=1 // pred_check_branch
      %46 = sbr.rel (0) target = $region29
    $region28: #{crnn2_forward.1} parent=1 // pred_region
      %s48 = ssub.s32 16, 16
      %49 = vsyncadd [#allocation6], %s48
      %s51 = sshll.u32 [#allocation5], 4
      %s52 = int_to_ptr.vmem [resolvable:$true] %s51
      %54 = dma.hbm_to_vmem [thread:$0]  %s6, 16, %s52, [#allocation6]
    $region29: #{crnn2_forward.1} parent=1 // pred_fallthru
      _
    // Predicated region
    $region30: #{crnn2_forward.1} parent=1 // pred_check
      _
    $region31: #{crnn2_forward.1} parent=1 // pred_check_branch
      %56 = sbr.rel (0) target = $region33
    $region32: #{crnn2_forward.1} parent=1 // pred_region
      %s58 = ssub.s32 3072, 3072
      %59 = vsyncadd [#allocation6], %s58
      %s60 = sshll.u32 [#allocation7], 4
      %s61 = int_to_ptr.vmem [resolvable:$true] %s60
      %66 = dma.hbm_to_vmem [thread:$0]  %s7, 3072, %s61, [#allocation6], 192, 192, 12
    $region33: #{crnn2_forward.1} parent=1 // pred_fallthru
      _
    // Predicated region
    $region34: #{crnn2_forward.1} parent=1 // pred_check
      _
    $region35: #{crnn2_forward.1} parent=1 // pred_check_branch
      %68 = sbr.rel (0) target = $region37
    $region36: #{crnn2_forward.1} parent=1 // pred_region
      %s70 = ssub.s32 48, 48
      %71 = vsyncadd [#allocation9], %s70
      %s73 = sshll.u32 [#allocation8], 4
      %s74 = int_to_ptr.vmem [resolvable:$true] %s73
      %76 = dma.hbm_to_vmem [thread:$0]  %s8, 48, %s74, [#allocation9]
    $region37: #{crnn2_forward.1} parent=1 // pred_fallthru
      _
    // Predicated region
    $region38: #{crnn2_forward.1} parent=1 // pred_check
      _
    $region39: #{crnn2_forward.1} parent=1 // pred_check_branch
      %78 = sbr.rel (0) target = $region41
    $region40: #{crnn2_forward.1} parent=1 // pred_region
      %s80 = ssub.s32 3072, 3072
      %81 = vsyncadd [#allocation9], %s80
      %s82 = sshll.u32 [#allocation10], 4
      %s83 = int_to_ptr.vmem [resolvable:$true] %s82
      %88 = dma.hbm_to_vmem [thread:$0]  %s9, 3072, %s83, [#allocation9], 192, 192, 12
    $region41: #{crnn2_forward.1} parent=1 // pred_fallthru
      _
    // Predicated region
    $region42: #{crnn2_forward.1} parent=1 // pred_check
      _
    $region43: #{crnn2_forward.1} parent=1 // pred_check_branch
      %90 = sbr.rel (0) target = $region45
    $region44: #{crnn2_forward.1} parent=1 // pred_region
      %s92 = ssub.s32 48, 48
      %93 = vsyncadd [#allocation12], %s92
      %s95 = sshll.u32 [#allocation11], 4
      %s96 = int_to_ptr.vmem [resolvable:$true] %s95
      %98 = dma.hbm_to_vmem [thread:$0]  %s10, 48, %s96, [#allocation12]
    $region45: #{crnn2_forward.1} parent=1 // pred_fallthru
      _
    // Predicated region
    $region46: #{crnn2_forward.1} parent=1 // pred_check
      _
    $region47: #{crnn2_forward.1} parent=1 // pred_check_branch
      %100 = sbr.rel (0) target = $region49
    $region48: #{crnn2_forward.1} parent=1 // pred_region
      _
    $region49: #{crnn2_forward.1} parent=1 // pred_fallthru
      _
    // Predicated region
    $region50: #{crnn2_forward.1} parent=1 // pred_check
      _
    $region51: #{crnn2_forward.1} parent=1 // pred_check_branch
      %102 = sbr.rel (0) target = $region53
    $region52: #{crnn2_forward.1} parent=1 // pred_region
      %s104 = ssub.s32 16, 16
      %105 = vsyncadd [#allocation12], %s104
      %s107 = sshll.u32 [#allocation13], 4
      %s108 = int_to_ptr.vmem [resolvable:$true] %s107
      %110 = dma.hbm_to_vmem [thread:$0]  %s12, 16, %s108, [#allocation12]
    $region53: #{crnn2_forward.1} parent=1 // pred_fallthru
      _
    // Predicated region
    $region54: #{crnn2_forward.1} parent=1 // pred_check
      _
    $region55: #{crnn2_forward.1} parent=1 // pred_check_branch
      %112 = sbr.rel (0) target = $region57
    $region56: #{crnn2_forward.1} parent=1 // pred_region
      %113 = dma.done [#allocation3], 3072
    $region57: #{crnn2_forward.1} parent=1 // pred_fallthru
      _
    // Predicated region
    $region58: #{crnn2_forward.1} parent=1 // pred_check
      _
    $region59: #{crnn2_forward.1} parent=1 // pred_check_branch
      %115 = sbr.rel (0) target = $region61
    $region60: #{crnn2_forward.1} parent=1 // pred_region
      %116 = dma.done [#allocation6], 16
    $region61: #{crnn2_forward.1} parent=1 // pred_fallthru
      _
    // Predicated region
    $region62: #{crnn2_forward.1} parent=1 // pred_check
      _
    $region63: #{crnn2_forward.1} parent=1 // pred_check_branch
      %118 = sbr.rel (0) target = $region65
    $region64: #{crnn2_forward.1} parent=1 // pred_region
      %119 = dma.done [#allocation6], 3072
    $region65: #{crnn2_forward.1} parent=1 // pred_fallthru
      _
    // Predicated region
    $region66: #{crnn2_forward.1} parent=1 // pred_check
      _
    $region67: #{crnn2_forward.1} parent=1 // pred_check_branch
      %121 = sbr.rel (0) target = $region69
    $region68: #{crnn2_forward.1} parent=1 // pred_region
      %122 = dma.done [#allocation9], 48
    $region69: #{crnn2_forward.1} parent=1 // pred_fallthru
      _
    // Predicated region
    $region70: #{crnn2_forward.1} parent=1 // pred_check
      _
    $region71: #{crnn2_forward.1} parent=1 // pred_check_branch
      %124 = sbr.rel (0) target = $region73
    $region72: #{crnn2_forward.1} parent=1 // pred_region
      %125 = dma.done [#allocation9], 3072
    $region73: #{crnn2_forward.1} parent=1 // pred_fallthru
      _
    // Predicated region
    $region74: #{crnn2_forward.1} parent=1 // pred_check
      _
    $region75: #{crnn2_forward.1} parent=1 // pred_check_branch
      %127 = sbr.rel (0) target = $region77
    $region76: #{crnn2_forward.1} parent=1 // pred_region
      %128 = dma.done [#allocation12], 48
    $region77: #{crnn2_forward.1} parent=1 // pred_fallthru
      _
    // Predicated region
    $region78: #{crnn2_forward.1} parent=1 // pred_check
      _
    $region79: #{crnn2_forward.1} parent=1 // pred_check_branch
      %130 = sbr.rel (0) target = $region81
    $region80: #{crnn2_forward.1} parent=1 // pred_region
      %131 = dma.done [#allocation12], 16
    $region81: #{crnn2_forward.1} parent=1 // pred_fallthru
      _
    %v133 = vld [vmem:[%s0] sm:$0xff]
    %v134 = vld [vmem:[%s0 + $0x8] sm:$0xff]
    %v135 = vld [vmem:[%s0 + $0x10] sm:$0xff]
    %v136 = vld [vmem:[%s0 + $0x18] sm:$0x1f]
    %v137 = vpack.c.bf16 %v134, %v133
    %v138 = vpack.c.bf16 %v136, %v135
    %v139 = vld [vmem:[%s1] sm:$0xff]
    %v140 = vld [vmem:[%s1 + $0x8] sm:$0xff]
    %v141 = vld [vmem:[%s1 + $0x10] sm:$0xf]
    %v142 = vld [vmem:[%s1 + $0x14] sm:$0xff]
    %v143 = vld [vmem:[%s1 + $0x1c] sm:$0xff]
    %v144 = vld [vmem:[%s1 + $0x24] sm:$0xf]
    %v145 = vld [vmem:[%s1 + $0x28] sm:$0x33]
    %v146 = vld [vmem:[%s1 + $0x30] sm:$0x33]
    %v147 = vld [vmem:[%s1 + $0x38] sm:$0x3]
    %s148 = scalar_lea.vmem %s1, 60
    %v149 = vld [vmem:[%s148] sm:$0xff]
    %v150 = vld [vmem:[%s148 + $0x8] sm:$0xff]
    %v151 = vld [vmem:[%s148 + $0x10] sm:$0xf]
    %v152 = vld [vmem:[%s148 + $0x14] sm:$0xff]
    %v153 = vld [vmem:[%s148 + $0x1c] sm:$0xff]
    %v154 = vld [vmem:[%s148 + $0x24] sm:$0xf]
    %v155 = vld [vmem:[%s148 + $0x28] sm:$0x33]
    %v156 = vld [vmem:[%s148 + $0x30] sm:$0x33]
    %v157 = vld [vmem:[%s148 + $0x38] sm:$0x3]
    %vm158 = vsmask.f32 7424
    %v160 = vshrl.u32 %v137, 16
    %v162 = vshll.u32 %v137, 16
    %v164 = vrot.slane %v162, 1
    %v165 = vor.u32 %v160, %v164
    %v167 = vshll.u32 %v138, 16
    %v169 = vrot.slane %v167, 1
    %v170 = vsel %vm158, %v165, %v169
    %v171 = vshrl.u32 %v138, 16
    %v173 = vor.u32 %v171, %v169
    %v183 = vunpack.c.l.b16 %v149
    %v184 = vunpack.c.h.b16 %v149
    %v185 = vunpack.c.l.b16 %v150
    %v186 = vunpack.c.h.b16 %v150
    %v187 = vunpack.c.l.b16 %v151
    %v188 = vunpack.c.l.b16 %v152
    %v189 = vunpack.c.h.b16 %v152
    %v190 = vunpack.c.l.b16 %v153
    %v191 = vunpack.c.h.b16 %v153
    %v192 = vunpack.c.l.b16 %v154
    %v193 = vunpack.c.l.b16 %v155
    %v194 = vunpack.c.h.b16 %v155
    %v195 = vunpack.c.l.b16 %v156
    %v196 = vunpack.c.h.b16 %v156
    %v197 = vunpack.c.l.b16 %v157
    %v198 = vpack.c.b16 %v188, %v183
    %v199 = vpack.c.b16 %v189, %v184
    %v200 = vpack.c.b16 %v190, %v185
    %v201 = vpack.c.b16 %v191, %v186
    %v202 = vpack.c.b16 %v192, %v187
    %v203 = vpack.c.b16 %v193, %v193
    %v204 = vpack.c.b16 %v194, %v194
    %v205 = vpack.c.b16 %v195, %v195
    %v206 = vpack.c.b16 %v196, %v196
    %v207 = vpack.c.b16 %v197, %v197
    %vm213 = vcmask 162816
    %v215 = vsel %vm213, %v170, 0
    %v218 = vsel %vm213, %v173, 0
    %vm220 = vcmask 1041408
    %v222 = vsel %vm220, %v203, 0
    %v225 = vsel %vm220, %v204, 0
    %v228 = vsel %vm220, %v205, 0
    %v231 = vsel %vm220, %v206, 0
    %v234 = vsel %vm220, %v207, 0
    %236 = vmatprep.subr.bf16.mxu0 %v199
    %237 = vmatpush1.bf16.msra.mxu0 %v198
    %238 = vmatprep.subr.bf16.mxu0 %v225
    %239 = vmatpush1.bf16.msra.mxu0 %v222
    %240 = vmatprep.subr.bf16.mxu0 0
    %241 = vmatpush1.bf16.msra.mxu0 0
    %242 = vmatprep.subr.bf16.mxu0 0
    %243 = vmatpush1.bf16.msra.mxu0 0
    %244 = vmatprep.subr.bf16.mxu0 0
    %245 = vmatpush1.bf16.msra.mxu0 0
    %246 = vmatprep.subr.bf16.mxu0 0
    %247 = vmatpush1.bf16.msra.mxu0 0
    %248 = vmatprep.subr.bf16.mxu0 0
    %249 = vmatpush1.bf16.msra.mxu0 0
    %250 = vmatprep.subr.bf16.mxu0 0
    %251 = vmatpush1.bf16.msra.mxu0 0
    %252 = vmatprep.subr.bf16.mxu0 0
    %253 = vmatpush1.bf16.msra.mxu0 0
    %254 = vmatprep.subr.bf16.mxu0 0
    %255 = vmatpush1.bf16.msra.mxu0 0
    %256 = vmatprep.subr.bf16.mxu0 0
    %257 = vmatpush1.bf16.msra.mxu0 0
    %258 = vmatprep.subr.bf16.mxu0 0
    %259 = vmatpush1.bf16.msra.mxu0 0
    %260 = vmatprep.subr.bf16.mxu0 0
    %261 = vmatpush1.bf16.msra.mxu0 0
    %262 = vmatprep.subr.bf16.mxu0 0
    %263 = vmatpush1.bf16.msra.mxu0 0
    %264 = vmatprep.subr.bf16.mxu0 0
    %265 = vmatpush1.bf16.msra.mxu0 0
    %266 = vmatprep.subr.bf16.mxu0 0
    %267 = vmatpush1.bf16.msra.mxu0 0
    %268 = vmatprep.mubr.bf16.mxu0 0
    %269 = vmatmul.mubr.bf16.gmra.mrb[0].mxu0 %v215
    %v270 = vpop.f32.mrb[0].mxu0
    %v271 = vadd.f32 0.0, %v270
    %v272 = vpop.f32.mrb[0].mxu0
    %v273 = vadd.f32 0.0, %v272
    %v274 = vpop.f32.mrb[0].mxu0
    %v275 = vadd.f32 0.0, %v274
    %v276 = vpop.f32.mrb[0].mxu0
    %v277 = vadd.f32 0.0, %v276
    %278 = vmatprep.mubr.bf16.mxu0 0
    %279 = vmatmul.mubr.bf16.gmra.mrb[0].mxu0 %v218
    %v280 = vpop.f32.mrb[0].mxu0
    %v281 = vadd.f32 0.0, %v280
    %v282 = vpop.f32.mrb[0].mxu0
    %v283 = vadd.f32 0.0, %v282
    %v284 = vpop.f32.mrb[0].mxu0
    %v285 = vadd.f32 0.0, %v284
    %v286 = vpop.f32.mrb[0].mxu0
    %v287 = vadd.f32 0.0, %v286
    %288 = vdwg.mxu0
    %289 = vmatprep.subr.bf16.mxu0 %v201
    %290 = vmatpush1.bf16.msra.mxu0 %v200
    %291 = vmatprep.subr.bf16.mxu0 %v231
    %292 = vmatpush1.bf16.msra.mxu0 %v228
    %293 = vmatprep.subr.bf16.mxu0 0
    %294 = vmatpush1.bf16.msra.mxu0 0
    %295 = vmatprep.subr.bf16.mxu0 0
    %296 = vmatpush1.bf16.msra.mxu0 0
    %297 = vmatprep.subr.bf16.mxu0 0
    %298 = vmatpush1.bf16.msra.mxu0 0
    %299 = vmatprep.subr.bf16.mxu0 0
    %300 = vmatpush1.bf16.msra.mxu0 0
    %301 = vmatprep.subr.bf16.mxu0 0
    %302 = vmatpush1.bf16.msra.mxu0 0
    %303 = vmatprep.subr.bf16.mxu0 0
    %304 = vmatpush1.bf16.msra.mxu0 0
    %305 = vmatprep.subr.bf16.mxu0 0
    %306 = vmatpush1.bf16.msra.mxu0 0
    %307 = vmatprep.subr.bf16.mxu0 0
    %308 = vmatpush1.bf16.msra.mxu0 0
    %309 = vmatprep.subr.bf16.mxu0 0
    %310 = vmatpush1.bf16.msra.mxu0 0
    %311 = vmatprep.subr.bf16.mxu0 0
    %312 = vmatpush1.bf16.msra.mxu0 0
    %313 = vmatprep.subr.bf16.mxu0 0
    %314 = vmatpush1.bf16.msra.mxu0 0
    %315 = vmatprep.subr.bf16.mxu0 0
    %316 = vmatpush1.bf16.msra.mxu0 0
    %317 = vmatprep.subr.bf16.mxu0 0
    %318 = vmatpush1.bf16.msra.mxu0 0
    %319 = vmatprep.subr.bf16.mxu0 0
    %320 = vmatpush1.bf16.msra.mxu0 0
    %321 = vmatprep.mubr.bf16.mxu0 0
    %322 = vmatmul.mubr.bf16.gmra.mrb[0].mxu0 %v215
    %v323 = vpop.f32.mrb[0].mxu0
    %v324 = vadd.f32 0.0, %v323
    %v325 = vpop.f32.mrb[0].mxu0
    %v326 = vadd.f32 0.0, %v325
    %v327 = vpop.f32.mrb[0].mxu0
    %v328 = vadd.f32 0.0, %v327
    %v329 = vpop.f32.mrb[0].mxu0
    %v330 = vadd.f32 0.0, %v329
    %331 = vmatprep.mubr.bf16.mxu0 0
    %332 = vmatmul.mubr.bf16.gmra.mrb[0].mxu0 %v218
    %v333 = vpop.f32.mrb[0].mxu0
    %v334 = vadd.f32 0.0, %v333
    %v335 = vpop.f32.mrb[0].mxu0
    %v336 = vadd.f32 0.0, %v335
    %v337 = vpop.f32.mrb[0].mxu0
    %v338 = vadd.f32 0.0, %v337
    %v339 = vpop.f32.mrb[0].mxu0
    %v340 = vadd.f32 0.0, %v339
    %341 = vdwg.mxu0
    %342 = vmatprep.subr.bf16.mxu0 0
    %343 = vmatpush1.bf16.msra.mxu0 %v202
    %344 = vmatprep.subr.bf16.mxu0 0
    %345 = vmatpush1.bf16.msra.mxu0 %v234
    %346 = vmatprep.subr.bf16.mxu0 0
    %347 = vmatpush1.bf16.msra.mxu0 0
    %348 = vmatprep.subr.bf16.mxu0 0
    %349 = vmatpush1.bf16.msra.mxu0 0
    %350 = vmatprep.subr.bf16.mxu0 0
    %351 = vmatpush1.bf16.msra.mxu0 0
    %352 = vmatprep.subr.bf16.mxu0 0
    %353 = vmatpush1.bf16.msra.mxu0 0
    %354 = vmatprep.subr.bf16.mxu0 0
    %355 = vmatpush1.bf16.msra.mxu0 0
    %356 = vmatprep.subr.bf16.mxu0 0
    %357 = vmatpush1.bf16.msra.mxu0 0
    %358 = vmatprep.subr.bf16.mxu0 0
    %359 = vmatpush1.bf16.msra.mxu0 0
    %360 = vmatprep.subr.bf16.mxu0 0
    %361 = vmatpush1.bf16.msra.mxu0 0
    %362 = vmatprep.subr.bf16.mxu0 0
    %363 = vmatpush1.bf16.msra.mxu0 0
    %364 = vmatprep.subr.bf16.mxu0 0
    %365 = vmatpush1.bf16.msra.mxu0 0
    %366 = vmatprep.subr.bf16.mxu0 0
    %367 = vmatpush1.bf16.msra.mxu0 0
    %368 = vmatprep.subr.bf16.mxu0 0
    %369 = vmatpush1.bf16.msra.mxu0 0
    %370 = vmatprep.subr.bf16.mxu0 0
    %371 = vmatpush1.bf16.msra.mxu0 0
    %372 = vmatprep.subr.bf16.mxu0 0
    %373 = vmatpush1.bf16.msra.mxu0 0
    %374 = vmatprep.mubr.bf16.mxu0 0
    %375 = vmatmul.mubr.bf16.gmra.mrb[0].mxu0 %v215
    %v376 = vpop.f32.mrb[0].mxu0
    %v377 = vadd.f32 0.0, %v376
    %v378 = vpop.f32.mrb[0].mxu0
    %v379 = vpop.f32.mrb[0].mxu0
    %v380 = vadd.f32 0.0, %v379
    %v381 = vpop.f32.mrb[0].mxu0
    %382 = vmatprep.mubr.bf16.mxu0 0
    %383 = vmatmul.mubr.bf16.gmra.mrb[0].mxu0 %v218
    %v384 = vpop.f32.mrb[0].mxu0
    %v385 = vadd.f32 0.0, %v384
    %v386 = vpop.f32.mrb[0].mxu0
    %v387 = vpop.f32.mrb[0].mxu0
    %v388 = vadd.f32 0.0, %v387
    %v389 = vpop.f32.mrb[0].mxu0
    %390 = vdwg.mxu0
    %v400 = vunpack.c.l.b16 %v139
    %v401 = vunpack.c.h.b16 %v139
    %v402 = vunpack.c.l.b16 %v140
    %v403 = vunpack.c.h.b16 %v140
    %v404 = vunpack.c.l.b16 %v141
    %v405 = vunpack.c.l.b16 %v142
    %v406 = vunpack.c.h.b16 %v142
    %v407 = vunpack.c.l.b16 %v143
    %v408 = vunpack.c.h.b16 %v143
    %v409 = vunpack.c.l.b16 %v144
    %v410 = vunpack.c.l.b16 %v145
    %v411 = vunpack.c.h.b16 %v145
    %v412 = vunpack.c.l.b16 %v146
    %v413 = vunpack.c.h.b16 %v146
    %v414 = vunpack.c.l.b16 %v147
    %v415 = vpack.c.b16 %v405, %v400
    %v416 = vpack.c.b16 %v406, %v401
    %v417 = vpack.c.b16 %v407, %v402
    %v418 = vpack.c.b16 %v408, %v403
    %v419 = vpack.c.b16 %v409, %v404
    %v420 = vpack.c.b16 %v410, %v410
    %v421 = vpack.c.b16 %v411, %v411
    %v422 = vpack.c.b16 %v412, %v412
    %v423 = vpack.c.b16 %v413, %v413
    %v424 = vpack.c.b16 %v414, %v414
    %v430 = vsel %vm213, %v137, 0
    %v432 = vsel %vm213, %v138, 0
    %v435 = vsel %vm220, %v420, 0
    %v438 = vsel %vm220, %v421, 0
    %v441 = vsel %vm220, %v422, 0
    %v444 = vsel %vm220, %v423, 0
    %v447 = vsel %vm220, %v424, 0
    %449 = vmatprep.subr.bf16.mxu0 %v416
    %450 = vmatpush1.bf16.msra.mxu0 %v415
    %451 = vmatprep.subr.bf16.mxu0 %v438
    %452 = vmatpush1.bf16.msra.mxu0 %v435
    %453 = vmatprep.subr.bf16.mxu0 0
    %454 = vmatpush1.bf16.msra.mxu0 0
    %455 = vmatprep.subr.bf16.mxu0 0
    %456 = vmatpush1.bf16.msra.mxu0 0
    %457 = vmatprep.subr.bf16.mxu0 0
    %458 = vmatpush1.bf16.msra.mxu0 0
    %459 = vmatprep.subr.bf16.mxu0 0
    %460 = vmatpush1.bf16.msra.mxu0 0
    %461 = vmatprep.subr.bf16.mxu0 0
    %462 = vmatpush1.bf16.msra.mxu0 0
    %463 = vmatprep.subr.bf16.mxu0 0
    %464 = vmatpush1.bf16.msra.mxu0 0
    %465 = vmatprep.subr.bf16.mxu0 0
    %466 = vmatpush1.bf16.msra.mxu0 0
    %467 = vmatprep.subr.bf16.mxu0 0
    %468 = vmatpush1.bf16.msra.mxu0 0
    %469 = vmatprep.subr.bf16.mxu0 0
    %470 = vmatpush1.bf16.msra.mxu0 0
    %471 = vmatprep.subr.bf16.mxu0 0
    %472 = vmatpush1.bf16.msra.mxu0 0
    %473 = vmatprep.subr.bf16.mxu0 0
    %474 = vmatpush1.bf16.msra.mxu0 0
    %475 = vmatprep.subr.bf16.mxu0 0
    %476 = vmatpush1.bf16.msra.mxu0 0
    %477 = vmatprep.subr.bf16.mxu0 0
    %478 = vmatpush1.bf16.msra.mxu0 0
    %479 = vmatprep.subr.bf16.mxu0 0
    %480 = vmatpush1.bf16.msra.mxu0 0
    %481 = vmatprep.mubr.bf16.mxu0 0
    %482 = vmatmul.mubr.bf16.gmra.mrb[0].mxu0 %v430
    %v483 = vpop.f32.mrb[0].mxu0
    %v484 = vadd.f32 %v271, %v483
    %v485 = vpop.f32.mrb[0].mxu0
    %v486 = vadd.f32 %v273, %v485
    %v487 = vpop.f32.mrb[0].mxu0
    %v488 = vadd.f32 %v275, %v487
    %v489 = vpop.f32.mrb[0].mxu0
    %v490 = vadd.f32 %v277, %v489
    %491 = vmatprep.mubr.bf16.mxu0 0
    %492 = vmatmul.mubr.bf16.gmra.mrb[0].mxu0 %v432
    %v493 = vpop.f32.mrb[0].mxu0
    %v494 = vadd.f32 %v281, %v493
    %v495 = vpop.f32.mrb[0].mxu0
    %v496 = vadd.f32 %v283, %v495
    %v497 = vpop.f32.mrb[0].mxu0
    %v498 = vadd.f32 %v285, %v497
    %v499 = vpop.f32.mrb[0].mxu0
    %v500 = vadd.f32 %v287, %v499
    %501 = vdwg.mxu0
    %502 = vmatprep.subr.bf16.mxu0 %v418
    %503 = vmatpush1.bf16.msra.mxu0 %v417
    %504 = vmatprep.subr.bf16.mxu0 %v444
    %505 = vmatpush1.bf16.msra.mxu0 %v441
    %506 = vmatprep.subr.bf16.mxu0 0
    %507 = vmatpush1.bf16.msra.mxu0 0
    %508 = vmatprep.subr.bf16.mxu0 0
    %509 = vmatpush1.bf16.msra.mxu0 0
    %510 = vmatprep.subr.bf16.mxu0 0
    %511 = vmatpush1.bf16.msra.mxu0 0
    %512 = vmatprep.subr.bf16.mxu0 0
    %513 = vmatpush1.bf16.msra.mxu0 0
    %514 = vmatprep.subr.bf16.mxu0 0
    %515 = vmatpush1.bf16.msra.mxu0 0
    %516 = vmatprep.subr.bf16.mxu0 0
    %517 = vmatpush1.bf16.msra.mxu0 0
    %518 = vmatprep.subr.bf16.mxu0 0
    %519 = vmatpush1.bf16.msra.mxu0 0
    %520 = vmatprep.subr.bf16.mxu0 0
    %521 = vmatpush1.bf16.msra.mxu0 0
    %522 = vmatprep.subr.bf16.mxu0 0
    %523 = vmatpush1.bf16.msra.mxu0 0
    %524 = vmatprep.subr.bf16.mxu0 0
    %525 = vmatpush1.bf16.msra.mxu0 0
    %526 = vmatprep.subr.bf16.mxu0 0
    %527 = vmatpush1.bf16.msra.mxu0 0
    %528 = vmatprep.subr.bf16.mxu0 0
    %529 = vmatpush1.bf16.msra.mxu0 0
    %530 = vmatprep.subr.bf16.mxu0 0
    %531 = vmatpush1.bf16.msra.mxu0 0
    %532 = vmatprep.subr.bf16.mxu0 0
    %533 = vmatpush1.bf16.msra.mxu0 0
    %534 = vmatprep.mubr.bf16.mxu0 0
    %535 = vmatmul.mubr.bf16.gmra.mrb[0].mxu0 %v430
    %v536 = vpop.f32.mrb[0].mxu0
    %v537 = vadd.f32 %v324, %v536
    %v538 = vpop.f32.mrb[0].mxu0
    %v539 = vadd.f32 %v326, %v538
    %v540 = vpop.f32.mrb[0].mxu0
    %v541 = vadd.f32 %v328, %v540
    %v542 = vpop.f32.mrb[0].mxu0
    %v543 = vadd.f32 %v330, %v542
    %544 = vmatprep.mubr.bf16.mxu0 0
    %545 = vmatmul.mubr.bf16.gmra.mrb[0].mxu0 %v432
    %v546 = vpop.f32.mrb[0].mxu0
    %v547 = vadd.f32 %v334, %v546
    %v548 = vpop.f32.mrb[0].mxu0
    %v549 = vadd.f32 %v336, %v548
    %v550 = vpop.f32.mrb[0].mxu0
    %v551 = vadd.f32 %v338, %v550
    %v552 = vpop.f32.mrb[0].mxu0
    %v553 = vadd.f32 %v340, %v552
    %554 = vdwg.mxu0
    %555 = vmatprep.subr.bf16.mxu0 0
    %556 = vmatpush1.bf16.msra.mxu0 %v419
    %557 = vmatprep.subr.bf16.mxu0 0
    %558 = vmatpush1.bf16.msra.mxu0 %v447
    %559 = vmatprep.subr.bf16.mxu0 0
    %560 = vmatpush1.bf16.msra.mxu0 0
    %561 = vmatprep.subr.bf16.mxu0 0
    %562 = vmatpush1.bf16.msra.mxu0 0
    %563 = vmatprep.subr.bf16.mxu0 0
    %564 = vmatpush1.bf16.msra.mxu0 0
    %565 = vmatprep.subr.bf16.mxu0 0
    %566 = vmatpush1.bf16.msra.mxu0 0
    %567 = vmatprep.subr.bf16.mxu0 0
    %568 = vmatpush1.bf16.msra.mxu0 0
    %569 = vmatprep.subr.bf16.mxu0 0
    %570 = vmatpush1.bf16.msra.mxu0 0
    %571 = vmatprep.subr.bf16.mxu0 0
    %572 = vmatpush1.bf16.msra.mxu0 0
    %573 = vmatprep.subr.bf16.mxu0 0
    %574 = vmatpush1.bf16.msra.mxu0 0
    %575 = vmatprep.subr.bf16.mxu0 0
    %576 = vmatpush1.bf16.msra.mxu0 0
    %577 = vmatprep.subr.bf16.mxu0 0
    %578 = vmatpush1.bf16.msra.mxu0 0
    %579 = vmatprep.subr.bf16.mxu0 0
    %580 = vmatpush1.bf16.msra.mxu0 0
    %581 = vmatprep.subr.bf16.mxu0 0
    %582 = vmatpush1.bf16.msra.mxu0 0
    %583 = vmatprep.subr.bf16.mxu0 0
    %584 = vmatpush1.bf16.msra.mxu0 0
    %585 = vmatprep.subr.bf16.mxu0 0
    %586 = vmatpush1.bf16.msra.mxu0 0
    %587 = vmatprep.mubr.bf16.mxu0 0
    %588 = vmatmul.mubr.bf16.gmra.mrb[0].mxu0 %v430
    %v589 = vpop.f32.mrb[0].mxu0
    %v590 = vadd.f32 %v377, %v589
    %v591 = vpop.f32.mrb[0].mxu0
    %v592 = vpop.f32.mrb[0].mxu0
    %v593 = vadd.f32 %v380, %v592
    %v594 = vpop.f32.mrb[0].mxu0
    %595 = vmatprep.mubr.bf16.mxu0 0
    %596 = vmatmul.mubr.bf16.gmra.mrb[0].mxu0 %v432
    %v597 = vpop.f32.mrb[0].mxu0
    %v598 = vadd.f32 %v385, %v597
    %v599 = vpop.f32.mrb[0].mxu0
    %v600 = vpop.f32.mrb[0].mxu0
    %v601 = vadd.f32 %v388, %v600
    %v602 = vpop.f32.mrb[0].mxu0
    %603 = vdwg.mxu0
    %v604 = vld [vmem:[%s2] sm:$0x1f]
    %v606 = vlaneseq
    %v607 = vshrl.u32 %v606, 7
    %v608 = vsub.s32 0, %v607
    %v609 = vrot.slane %v604, %v608
    %v610 = vlaneseq
    %v611 = vshrl.u32 %v610, 7
    %v612 = vsub.s32 1, %v611
    %v613 = vrot.slane %v604, %v612
    %v614 = vlaneseq
    %v615 = vshrl.u32 %v614, 7
    %v616 = vsub.s32 2, %v615
    %v617 = vrot.slane %v604, %v616
    %v618 = vlaneseq
    %v619 = vshrl.u32 %v618, 7
    %v620 = vsub.s32 3, %v619
    %v621 = vrot.slane %v604, %v620
    %v622 = vlaneseq
    %v623 = vshrl.u32 %v622, 7
    %v624 = vsub.s32 4, %v623
    %v625 = vrot.slane %v604, %v624
    %v631 = vadd.f32 %v484, %v609
    %v632 = vadd.f32 %v486, %v613
    %v633 = vadd.f32 %v537, %v617
    %v634 = vadd.f32 %v539, %v621
    %v635 = vadd.f32 %v590, %v625
    %v636 = vadd.f32 %v488, %v609
    %v637 = vadd.f32 %v490, %v613
    %v638 = vadd.f32 %v541, %v617
    %v639 = vadd.f32 %v543, %v621
    %v640 = vadd.f32 %v593, %v625
    %v641 = vadd.f32 %v494, %v609
    %v642 = vadd.f32 %v496, %v613
    %v643 = vadd.f32 %v547, %v617
    %v644 = vadd.f32 %v549, %v621
    %v645 = vadd.f32 %v598, %v625
    %v646 = vadd.f32 %v498, %v609
    %v647 = vadd.f32 %v500, %v613
    %v648 = vadd.f32 %v551, %v617
    %v649 = vadd.f32 %v553, %v621
    %v650 = vadd.f32 %v601, %v625
    %v651 = vmax.f32 %v631, 0.0
    %v652 = vmax.f32 %v632, 0.0
    %v653 = vmax.f32 %v633, 0.0
    %v654 = vmax.f32 %v634, 0.0
    %v655 = vmax.f32 %v635, 0.0
    %v656 = vmax.f32 %v636, 0.0
    %v657 = vmax.f32 %v637, 0.0
    %v658 = vmax.f32 %v638, 0.0
    %v659 = vmax.f32 %v639, 0.0
    %v660 = vmax.f32 %v640, 0.0
    %v661 = vmax.f32 %v641, 0.0
    %v662 = vmax.f32 %v642, 0.0
    %v663 = vmax.f32 %v643, 0.0
    %v664 = vmax.f32 %v644, 0.0
    %v665 = vmax.f32 %v645, 0.0
    %v666 = vmax.f32 %v646, 0.0
    %v667 = vmax.f32 %v647, 0.0
    %v668 = vmax.f32 %v648, 0.0
    %v669 = vmax.f32 %v649, 0.0
    %v670 = vmax.f32 %v650, 0.0
    %675 = vrot.lane.b32.xlu0 %v651, 96
    %v676 = vpop.permute.xlu0 %675
    %677 = vrot.lane.b32.xlu0 %v656, 96
    %v678 = vpop.permute.xlu0 %677
    %679 = vrot.lane.b32.xlu0 %v661, 96
    %v680 = vpop.permute.xlu0 %679
    %681 = vrot.lane.b32.xlu0 %v666, 96
    %v682 = vpop.permute.xlu0 %681
    %v687 = vmax.f32 %v651, %v676
    %v688 = vmax.f32 %v656, %v678
    %v689 = vmax.f32 %v661, %v680
    %v690 = vmax.f32 %v666, %v682
    %695 = vrot.lane.b32.xlu0 %v652, 96
    %v696 = vpop.permute.xlu0 %695
    %697 = vrot.lane.b32.xlu0 %v657, 96
    %v698 = vpop.permute.xlu0 %697
    %699 = vrot.lane.b32.xlu0 %v662, 96
    %v700 = vpop.permute.xlu0 %699
    %701 = vrot.lane.b32.xlu0 %v667, 96
    %v702 = vpop.permute.xlu0 %701
    %v707 = vmax.f32 %v652, %v696
    %v708 = vmax.f32 %v657, %v698
    %v709 = vmax.f32 %v662, %v700
    %v710 = vmax.f32 %v667, %v702
    %715 = vrot.lane.b32.xlu0 %v653, 96
    %v716 = vpop.permute.xlu0 %715
    %717 = vrot.lane.b32.xlu0 %v658, 96
    %v718 = vpop.permute.xlu0 %717
    %719 = vrot.lane.b32.xlu0 %v663, 96
    %v720 = vpop.permute.xlu0 %719
    %721 = vrot.lane.b32.xlu0 %v668, 96
    %v722 = vpop.permute.xlu0 %721
    %v727 = vmax.f32 %v653, %v716
    %v728 = vmax.f32 %v658, %v718
    %v729 = vmax.f32 %v663, %v720
    %v730 = vmax.f32 %v668, %v722
    %735 = vrot.lane.b32.xlu0 %v654, 96
    %v736 = vpop.permute.xlu0 %735
    %737 = vrot.lane.b32.xlu0 %v659, 96
    %v738 = vpop.permute.xlu0 %737
    %739 = vrot.lane.b32.xlu0 %v664, 96
    %v740 = vpop.permute.xlu0 %739
    %741 = vrot.lane.b32.xlu0 %v669, 96
    %v742 = vpop.permute.xlu0 %741
    %v747 = vmax.f32 %v654, %v736
    %v748 = vmax.f32 %v659, %v738
    %v749 = vmax.f32 %v664, %v740
    %v750 = vmax.f32 %v669, %v742
    %755 = vrot.lane.b32.xlu0 %v655, 96
    %v756 = vpop.permute.xlu0 %755
    %757 = vrot.lane.b32.xlu0 %v660, 96
    %v758 = vpop.permute.xlu0 %757
    %759 = vrot.lane.b32.xlu0 %v665, 96
    %v760 = vpop.permute.xlu0 %759
    %761 = vrot.lane.b32.xlu0 %v670, 96
    %v762 = vpop.permute.xlu0 %761
    %v767 = vmax.f32 %v655, %v756
    %v768 = vmax.f32 %v660, %v758
    %v769 = vmax.f32 %v665, %v760
    %v770 = vmax.f32 %v670, %v762
    %775 = vrot.lane.b32.xlu0 %v687, 96
    %v776 = vpop.permute.xlu0 %775
    %777 = vrot.lane.b32.xlu0 %v688, 96
    %v778 = vpop.permute.xlu0 %777
    %779 = vrot.lane.b32.xlu0 %v689, 96
    %v780 = vpop.permute.xlu0 %779
    %781 = vrot.lane.b32.xlu0 %v690, 96
    %v782 = vpop.permute.xlu0 %781
    %791 = vrot.lane.b32.xlu0 %v707, 64
    %v792 = vpop.permute.xlu0 %791
    %793 = vrot.lane.b32.xlu0 %v708, 64
    %v794 = vpop.permute.xlu0 %793
    %795 = vrot.lane.b32.xlu0 %v709, 64
    %v796 = vpop.permute.xlu0 %795
    %797 = vrot.lane.b32.xlu0 %v710, 64
    %v798 = vpop.permute.xlu0 %797
    %803 = vrot.lane.b32.xlu0 %v707, 32
    %v804 = vpop.permute.xlu0 %803
    %805 = vrot.lane.b32.xlu0 %v708, 32
    %v806 = vpop.permute.xlu0 %805
    %807 = vrot.lane.b32.xlu0 %v709, 32
    %v808 = vpop.permute.xlu0 %807
    %809 = vrot.lane.b32.xlu0 %v710, 32
    %v810 = vpop.permute.xlu0 %809
    %819 = vrot.lane.b32.xlu0 %v727, 96
    %v820 = vpop.permute.xlu0 %819
    %821 = vrot.lane.b32.xlu0 %v728, 96
    %v822 = vpop.permute.xlu0 %821
    %823 = vrot.lane.b32.xlu0 %v729, 96
    %v824 = vpop.permute.xlu0 %823
    %825 = vrot.lane.b32.xlu0 %v730, 96
    %v826 = vpop.permute.xlu0 %825
    %835 = vrot.lane.b32.xlu0 %v747, 64
    %v836 = vpop.permute.xlu0 %835
    %837 = vrot.lane.b32.xlu0 %v748, 64
    %v838 = vpop.permute.xlu0 %837
    %839 = vrot.lane.b32.xlu0 %v749, 64
    %v840 = vpop.permute.xlu0 %839
    %841 = vrot.lane.b32.xlu0 %v750, 64
    %v842 = vpop.permute.xlu0 %841
    %847 = vrot.lane.b32.xlu0 %v747, 32
    %v848 = vpop.permute.xlu0 %847
    %849 = vrot.lane.b32.xlu0 %v748, 32
    %v850 = vpop.permute.xlu0 %849
    %851 = vrot.lane.b32.xlu0 %v749, 32
    %v852 = vpop.permute.xlu0 %851
    %853 = vrot.lane.b32.xlu0 %v750, 32
    %v854 = vpop.permute.xlu0 %853
    %vm859 = vcmask 261120
    %v860 = vsel %vm859, %v687, %v776
    %v861 = vsel %vm859, %v688, %v778
    %v862 = vsel %vm859, %v689, %v780
    %v863 = vsel %vm859, %v690, %v782
    %vm864 = vcmask 523264
    %v865 = vsel %vm864, %v860, %v792
    %v866 = vsel %vm864, %v861, %v794
    %v867 = vsel %vm864, %v862, %v796
    %v868 = vsel %vm864, %v863, %v798
    %vm869 = vcmask 785408
    %v870 = vsel %vm869, %v865, %v804
    %v871 = vsel %vm869, %v866, %v806
    %v872 = vsel %vm869, %v867, %v808
    %v873 = vsel %vm869, %v868, %v810
    %v874 = vsel %vm859, %v727, %v820
    %v875 = vsel %vm859, %v728, %v822
    %v876 = vsel %vm859, %v729, %v824
    %v877 = vsel %vm859, %v730, %v826
    %v878 = vsel %vm864, %v874, %v836
    %v879 = vsel %vm864, %v875, %v838
    %v880 = vsel %vm864, %v876, %v840
    %v881 = vsel %vm864, %v877, %v842
    %v882 = vsel %vm869, %v878, %v848
    %v883 = vsel %vm869, %v879, %v850
    %v884 = vsel %vm869, %v880, %v852
    %v885 = vsel %vm869, %v881, %v854
    %v889 = vrot.slane %v870, 1
    %v890 = vrot.slane %v882, 1
    %v891 = vrot.slane %v767, 1
    %v895 = vmax.f32 %v870, %v889
    %v896 = vmax.f32 %v882, %v890
    %v897 = vmax.f32 %v767, %v891
    %v901 = vrot.slane %v871, 1
    %v902 = vrot.slane %v883, 1
    %v903 = vrot.slane %v768, 1
    %v907 = vmax.f32 %v871, %v901
    %v908 = vmax.f32 %v883, %v902
    %v909 = vmax.f32 %v768, %v903
    %v913 = vrot.slane %v872, 1
    %v914 = vrot.slane %v884, 1
    %v915 = vrot.slane %v769, 1
    %v919 = vmax.f32 %v872, %v913
    %v920 = vmax.f32 %v884, %v914
    %v921 = vmax.f32 %v769, %v915
    %v925 = vrot.slane %v873, 1
    %v926 = vrot.slane %v885, 1
    %v927 = vrot.slane %v770, 1
    %v931 = vmax.f32 %v873, %v925
    %v932 = vmax.f32 %v885, %v926
    %v933 = vmax.f32 %v770, %v927
    %v937 = vrot.slane %v895, 1
    %v938 = vrot.slane %v896, 1
    %v939 = vrot.slane %v897, 1
    %v943 = vrot.slane %v895, 2
    %v944 = vrot.slane %v896, 2
    %v945 = vrot.slane %v897, 2
    %v949 = vrot.slane %v895, 3
    %v950 = vrot.slane %v896, 3
    %v951 = vrot.slane %v897, 3
    %v958 = vrot.slane %v907, 4
    %v959 = vrot.slane %v908, 4
    %v960 = vrot.slane %v909, 4
    %v964 = vrot.slane %v907, 5
    %v965 = vrot.slane %v908, 5
    %v966 = vrot.slane %v909, 5
    %v970 = vrot.slane %v907, 6
    %v971 = vrot.slane %v908, 6
    %v972 = vrot.slane %v909, 6
    %v976 = vrot.slane %v907, 7
    %v977 = vrot.slane %v908, 7
    %v978 = vrot.slane %v909, 7
    %v985 = vrot.slane %v919, 1
    %v986 = vrot.slane %v920, 1
    %v987 = vrot.slane %v921, 1
    %v991 = vrot.slane %v919, 2
    %v992 = vrot.slane %v920, 2
    %v993 = vrot.slane %v921, 2
    %v997 = vrot.slane %v919, 3
    %v998 = vrot.slane %v920, 3
    %v999 = vrot.slane %v921, 3
    %v1006 = vrot.slane %v931, 4
    %v1007 = vrot.slane %v932, 4
    %v1008 = vrot.slane %v933, 4
    %v1012 = vrot.slane %v931, 5
    %v1013 = vrot.slane %v932, 5
    %v1014 = vrot.slane %v933, 5
    %vm1018 = vcmask 1040384
    %v1019 = vsel %vm1018, %v895, %v937
    %v1020 = vsel %vm1018, %v896, %v938
    %v1021 = vsel %vm1018, %v897, %v939
    %v1022 = vsel %vm220, %v1019, %v943
    %v1023 = vsel %vm220, %v1020, %v944
    %v1024 = vsel %vm220, %v1021, %v945
    %vm1025 = vcmask 1042432
    %v1026 = vsel %vm1025, %v1022, %v949
    %v1027 = vsel %vm1025, %v1023, %v950
    %v1028 = vsel %vm1025, %v1024, %v951
    %vm1029 = vcmask 1043456
    %v1030 = vsel %vm1029, %v1026, %v958
    %v1031 = vsel %vm1029, %v1027, %v959
    %v1032 = vsel %vm1029, %v1028, %v960
    %vm1033 = vcmask 1044480
    %v1034 = vsel %vm1033, %v1030, %v964
    %v1035 = vsel %vm1033, %v1031, %v965
    %v1036 = vsel %vm1033, %v1032, %v966
    %vm1037 = vcmask 1045504
    %v1038 = vsel %vm1037, %v1034, %v970
    %v1039 = vsel %vm1037, %v1035, %v971
    %v1040 = vsel %vm1037, %v1036, %v972
    %vm1041 = vcmask 1046528
    %v1042 = vsel %vm1041, %v1038, %v976
    %v1043 = vsel %vm1041, %v1039, %v977
    %v1044 = vsel %vm1041, %v1040, %v978
    %v1045 = vsel %vm1018, %v919, %v985
    %v1046 = vsel %vm1018, %v920, %v986
    %v1047 = vsel %vm1018, %v921, %v987
    %v1048 = vsel %vm220, %v1045, %v991
    %v1049 = vsel %vm220, %v1046, %v992
    %v1050 = vsel %vm220, %v1047, %v993
    %v1051 = vsel %vm1025, %v1048, %v997
    %v1052 = vsel %vm1025, %v1049, %v998
    %v1053 = vsel %vm1025, %v1050, %v999
    %v1054 = vsel %vm1029, %v1051, %v1006
    %v1055 = vsel %vm1029, %v1052, %v1007
    %v1056 = vsel %vm1029, %v1053, %v1008
    %v1057 = vsel %vm1033, %v1054, %v1012
    %v1058 = vsel %vm1033, %v1055, %v1013
    %v1059 = vsel %vm1033, %v1056, %v1014
    %v1062 = vrot.slane %v1042, 1
    %v1063 = vrot.slane %v1057, 1
    %v1064 = vsel %vm1041, %v1062, %v1063
    %1065 = vrot.lane.b32.xlu0 %v1064, 32
    %v1066 = vpop.permute.xlu0 %1065
    %1067 = vrot.lane.b32.xlu0 %v1063, 32
    %v1068 = vpop.permute.xlu0 %1067
    %v1071 = vrot.slane %v1042, 2
    %v1072 = vrot.slane %v1057, 2
    %v1073 = vsel %vm1037, %v1071, %v1072
    %1074 = vrot.lane.b32.xlu0 %v1073, 64
    %v1075 = vpop.permute.xlu0 %1074
    %1076 = vrot.lane.b32.xlu0 %v1072, 64
    %v1077 = vpop.permute.xlu0 %1076
    %1080 = vrot.lane.b32.xlu0 %v1042, 64
    %v1081 = vpop.permute.xlu0 %1080
    %1082 = vrot.lane.b32.xlu0 %v1057, 64
    %v1083 = vpop.permute.xlu0 %1082
    %1086 = vrot.lane.b32.xlu0 %v1064, 96
    %v1087 = vpop.permute.xlu0 %1086
    %1088 = vrot.lane.b32.xlu0 %v1063, 96
    %v1089 = vpop.permute.xlu0 %1088
    %v1094 = vsel %vm859, %v1042, %v1066
    %v1095 = vsel %vm859, %v1057, %v1068
    %v1096 = vsel %vm864, %v1094, %v1075
    %v1097 = vsel %vm864, %v1095, %v1077
    %v1098 = vsel %vm869, %v1096, %v1081
    %v1099 = vsel %vm869, %v1097, %v1083
    %v1100 = vsel %vm859, %v1087, %v1073
    %v1101 = vsel %vm859, %v1089, %v1072
    %v1102 = vsel %vm864, %v1100, %v1042
    %v1103 = vsel %vm864, %v1101, %v1057
    %v1104 = vsel %vm869, %v1102, %v1066
    %v1105 = vsel %vm869, %v1103, %v1068
    %v1106 = vsel %vm859, %v1075, %v1081
    %v1107 = vsel %vm859, %v1077, %v1083
    %v1108 = vsel %vm864, %v1106, %v1087
    %v1109 = vsel %vm864, %v1107, %v1089
    %v1110 = vsel %vm869, %v1108, %v1073
    %v1111 = vsel %vm869, %v1109, %v1072
    %1112 = vrot.lane.b32.xlu0 %v1042, 96
    %v1113 = vpop.permute.xlu0 %1112
    %1114 = vrot.lane.b32.xlu0 %v1057, 96
    %v1115 = vpop.permute.xlu0 %1114
    %1120 = vrot.lane.b32.xlu0 %v1073, 32
    %v1121 = vpop.permute.xlu0 %1120
    %1122 = vrot.lane.b32.xlu0 %v1072, 32
    %v1123 = vpop.permute.xlu0 %1122
    %1126 = vrot.lane.b32.xlu0 %v1042, 32
    %v1127 = vpop.permute.xlu0 %1126
    %1128 = vrot.lane.b32.xlu0 %v1057, 32
    %v1129 = vpop.permute.xlu0 %1128
    %1132 = vrot.lane.b32.xlu0 %v1064, 64
    %v1133 = vpop.permute.xlu0 %1132
    %1134 = vrot.lane.b32.xlu0 %v1063, 64
    %v1135 = vpop.permute.xlu0 %1134
    %1138 = vrot.lane.b32.xlu0 %v1073, 96
    %v1139 = vpop.permute.xlu0 %1138
    %1140 = vrot.lane.b32.xlu0 %v1072, 96
    %v1141 = vpop.permute.xlu0 %1140
    %1146 = vrot.lane.b32.xlu0 %v1043, 32
    %v1147 = vpop.permute.xlu0 %1146
    %1148 = vrot.lane.b32.xlu0 %v1058, 32
    %v1149 = vpop.permute.xlu0 %1148
    %v1152 = vrot.slane %v1043, 1
    %v1153 = vrot.slane %v1058, 1
    %v1154 = vsel %vm1041, %v1152, %v1153
    %1155 = vrot.lane.b32.xlu0 %v1154, 64
    %v1156 = vpop.permute.xlu0 %1155
    %1157 = vrot.lane.b32.xlu0 %v1153, 64
    %v1158 = vpop.permute.xlu0 %1157
    %v1161 = vrot.slane %v1043, 2
    %v1162 = vrot.slane %v1058, 2
    %v1163 = vsel %vm1037, %v1161, %v1162
    %1164 = vrot.lane.b32.xlu0 %v1163, 96
    %v1165 = vpop.permute.xlu0 %1164
    %1166 = vrot.lane.b32.xlu0 %v1162, 96
    %v1167 = vpop.permute.xlu0 %1166
    %v1170 = vsel %vm859, %v1113, %v1064
    %v1171 = vsel %vm859, %v1115, %v1063
    %v1172 = vsel %vm864, %v1170, %v1121
    %v1173 = vsel %vm864, %v1171, %v1123
    %v1174 = vsel %vm869, %v1172, %v1127
    %v1175 = vsel %vm869, %v1173, %v1129
    %v1176 = vsel %vm859, %v1133, %v1139
    %v1177 = vsel %vm859, %v1135, %v1141
    %v1178 = vsel %vm864, %v1176, %v1113
    %v1179 = vsel %vm864, %v1177, %v1115
    %v1180 = vsel %vm869, %v1178, %v1064
    %v1181 = vsel %vm869, %v1179, %v1063
    %v1182 = vsel %vm859, %v1121, %v1147
    %v1183 = vsel %vm859, %v1123, %v1149
    %v1184 = vsel %vm864, %v1182, %v1156
    %v1185 = vsel %vm864, %v1183, %v1158
    %v1186 = vsel %vm869, %v1184, %v1165
    %v1187 = vsel %vm869, %v1185, %v1167
    %1188 = vrot.lane.b32.xlu0 %v1043, 64
    %v1189 = vpop.permute.xlu0 %1188
    %1190 = vrot.lane.b32.xlu0 %v1058, 64
    %v1191 = vpop.permute.xlu0 %1190
    %1194 = vrot.lane.b32.xlu0 %v1154, 96
    %v1195 = vpop.permute.xlu0 %1194
    %1196 = vrot.lane.b32.xlu0 %v1153, 96
    %v1197 = vpop.permute.xlu0 %1196
    %1202 = vrot.lane.b32.xlu0 %v1154, 32
    %v1203 = vpop.permute.xlu0 %1202
    %1204 = vrot.lane.b32.xlu0 %v1153, 32
    %v1205 = vpop.permute.xlu0 %1204
    %1208 = vrot.lane.b32.xlu0 %v1163, 64
    %v1209 = vpop.permute.xlu0 %1208
    %1210 = vrot.lane.b32.xlu0 %v1162, 64
    %v1211 = vpop.permute.xlu0 %1210
    %v1214 = vsel %vm859, %v1081, %v1087
    %v1215 = vsel %vm859, %v1083, %v1089
    %v1216 = vsel %vm864, %v1214, %v1073
    %v1217 = vsel %vm864, %v1215, %v1072
    %v1218 = vsel %vm869, %v1216, %v1042
    %v1219 = vsel %vm869, %v1217, %v1057
    %v1220 = vsel %vm859, %v1066, %v1075
    %v1221 = vsel %vm859, %v1068, %v1077
    %v1222 = vsel %vm864, %v1220, %v1189
    %v1223 = vsel %vm864, %v1221, %v1191
    %v1224 = vsel %vm869, %v1222, %v1195
    %v1225 = vsel %vm869, %v1223, %v1197
    %v1226 = vsel %vm859, %v1163, %v1043
    %v1227 = vsel %vm859, %v1162, %v1058
    %v1228 = vsel %vm864, %v1226, %v1203
    %v1229 = vsel %vm864, %v1227, %v1205
    %v1230 = vsel %vm869, %v1228, %v1209
    %v1231 = vsel %vm869, %v1229, %v1211
    %1232 = vrot.lane.b32.xlu0 %v1043, 96
    %v1233 = vpop.permute.xlu0 %1232
    %1234 = vrot.lane.b32.xlu0 %v1058, 96
    %v1235 = vpop.permute.xlu0 %1234
    %1240 = vrot.lane.b32.xlu0 %v1163, 32
    %v1241 = vpop.permute.xlu0 %1240
    %1242 = vrot.lane.b32.xlu0 %v1162, 32
    %v1243 = vpop.permute.xlu0 %1242
    %v1246 = vsel %vm859, %v1127, %v1133
    %v1247 = vsel %vm859, %v1129, %v1135
    %v1248 = vsel %vm864, %v1246, %v1139
    %v1249 = vsel %vm864, %v1247, %v1141
    %v1250 = vsel %vm869, %v1248, %v1233
    %v1251 = vsel %vm869, %v1249, %v1235
    %v1252 = vsel %vm859, %v1154, %v1241
    %v1253 = vsel %vm859, %v1153, %v1243
    %v1254 = vsel %vm864, %v1252, %v1147
    %v1255 = vsel %vm864, %v1253, %v1149
    %v1256 = vsel %vm869, %v1254, %v1156
    %v1257 = vsel %vm869, %v1255, %v1158
    %v1258 = vsel %vm859, %v1165, %v1233
    %v1259 = vsel %vm859, %v1167, %v1235
    %v1260 = vsel %vm864, %v1258, %v1154
    %v1261 = vsel %vm864, %v1259, %v1153
    %v1262 = vsel %vm869, %v1260, %v1241
    %v1263 = vsel %vm869, %v1261, %v1243
    %v1264 = vsel %vm859, %v1043, %v1203
    %v1265 = vsel %vm859, %v1058, %v1205
    %v1266 = vsel %vm864, %v1264, %v1209
    %v1267 = vsel %vm864, %v1265, %v1211
    %v1268 = vsel %vm869, %v1266, %v1189
    %v1269 = vsel %vm869, %v1267, %v1191
    %v1270 = vsel %vm859, %v1195, %v1163
    %v1271 = vsel %vm859, %v1197, %v1162
    %v1272 = vsel %vm864, %v1270, %v1043
    %v1273 = vsel %vm864, %v1271, %v1058
    %v1274 = vsel %vm869, %v1272, %v1203
    %v1275 = vsel %vm869, %v1273, %v1205
    %v1276 = vsel %vm859, %v1209, %v1189
    %v1277 = vsel %vm859, %v1211, %v1191
    %v1278 = vsel %vm864, %v1276, %v1195
    %v1279 = vsel %vm864, %v1277, %v1197
    %v1280 = vsel %vm869, %v1278, %v1163
    %v1281 = vsel %vm869, %v1279, %v1162
    %1284 = vrot.lane.b32.xlu0 %v1044, 32
    %v1285 = vpop.permute.xlu0 %1284
    %1286 = vrot.lane.b32.xlu0 %v1059, 32
    %v1287 = vpop.permute.xlu0 %1286
    %v1290 = vrot.slane %v1044, 1
    %v1291 = vrot.slane %v1059, 1
    %v1292 = vsel %vm1041, %v1290, %v1291
    %1293 = vrot.lane.b32.xlu0 %v1292, 64
    %v1294 = vpop.permute.xlu0 %1293
    %1295 = vrot.lane.b32.xlu0 %v1291, 64
    %v1296 = vpop.permute.xlu0 %1295
    %v1299 = vrot.slane %v1044, 2
    %v1300 = vrot.slane %v1059, 2
    %v1301 = vsel %vm1037, %v1299, %v1300
    %1302 = vrot.lane.b32.xlu0 %v1301, 96
    %v1303 = vpop.permute.xlu0 %1302
    %1304 = vrot.lane.b32.xlu0 %v1300, 96
    %v1305 = vpop.permute.xlu0 %1304
    %v1308 = vsel %vm859, %v1233, %v1154
    %v1309 = vsel %vm859, %v1235, %v1153
    %v1310 = vsel %vm864, %v1308, %v1241
    %v1311 = vsel %vm864, %v1309, %v1243
    %v1312 = vsel %vm869, %v1310, %v1147
    %v1313 = vsel %vm869, %v1311, %v1149
    %v1314 = vsel %vm859, %v1156, %v1165
    %v1315 = vsel %vm859, %v1158, %v1167
    %v1316 = vsel %vm864, %v1314, %v1233
    %v1317 = vsel %vm864, %v1315, %v1235
    %v1318 = vsel %vm869, %v1316, %v1154
    %v1319 = vsel %vm869, %v1317, %v1153
    %v1320 = vsel %vm859, %v1241, %v1285
    %v1321 = vsel %vm859, %v1243, %v1287
    %v1322 = vsel %vm864, %v1320, %v1294
    %v1323 = vsel %vm864, %v1321, %v1296
    %v1324 = vsel %vm869, %v1322, %v1303
    %v1325 = vsel %vm869, %v1323, %v1305
    %v1332 = vrot.slane %v1174, 4
    %v1333 = vrot.slane %v1180, 4
    %v1334 = vrot.slane %v1186, 4
    %v1335 = vrot.slane %v1175, 4
    %v1336 = vsel %vm1029, %v1332, %v1335
    %v1337 = vrot.slane %v1181, 4
    %v1338 = vsel %vm1029, %v1333, %v1337
    %v1339 = vrot.slane %v1187, 4
    %v1340 = vsel %vm1029, %v1334, %v1339
    %v1353 = vrot.slane %v1250, 4
    %v1354 = vrot.slane %v1256, 4
    %v1355 = vrot.slane %v1262, 4
    %v1356 = vrot.slane %v1251, 4
    %v1357 = vsel %vm1029, %v1353, %v1356
    %v1358 = vrot.slane %v1257, 4
    %v1359 = vsel %vm1029, %v1354, %v1358
    %v1360 = vrot.slane %v1263, 4
    %v1361 = vsel %vm1029, %v1355, %v1360
    %v1374 = vrot.slane %v1312, 4
    %v1375 = vrot.slane %v1318, 4
    %v1376 = vrot.slane %v1324, 4
    %v1377 = vrot.slane %v1313, 4
    %v1378 = vsel %vm1029, %v1374, %v1377
    %v1379 = vrot.slane %v1319, 4
    %v1380 = vsel %vm1029, %v1375, %v1379
    %v1381 = vrot.slane %v1325, 4
    %v1382 = vsel %vm1029, %v1376, %v1381
    %v1389 = vsel %vm1029, %v1099, %v1332
    %v1390 = vsel %vm1029, %v1105, %v1333
    %v1391 = vsel %vm1029, %v1111, %v1334
    %v1392 = vsel %vm1029, %v1219, %v1353
    %v1393 = vsel %vm1029, %v1225, %v1354
    %v1394 = vsel %vm1029, %v1231, %v1355
    %v1395 = vsel %vm1029, %v1269, %v1374
    %v1396 = vsel %vm1029, %v1275, %v1375
    %v1397 = vsel %vm1029, %v1281, %v1376
    %v1398 = vpack.c.bf16 %v1389, %v1098
    %v1399 = vpack.c.bf16 %v1390, %v1104
    %v1400 = vpack.c.bf16 %v1391, %v1110
    %v1401 = vpack.c.bf16 %v1218, %v1336
    %v1402 = vpack.c.bf16 %v1224, %v1338
    %v1403 = vpack.c.bf16 %v1230, %v1340
    %v1404 = vpack.c.bf16 %v1357, %v1392
    %v1405 = vpack.c.bf16 %v1359, %v1393
    %v1406 = vpack.c.bf16 %v1361, %v1394
    %v1407 = vpack.c.bf16 %v1395, %v1268
    %v1408 = vpack.c.bf16 %v1396, %v1274
    %v1409 = vpack.c.bf16 %v1397, %v1280
    %v1410 = vpack.c.bf16 %v1378, %v1378
    %v1411 = vpack.c.bf16 %v1380, %v1380
    %v1412 = vpack.c.bf16 %v1382, %v1382
    %v1413 = vld [vmem:[#allocation2] sm:$0xf]
    %v1414 = vld [vmem:[#allocation2 + $0x4] sm:$0xf]
    %v1415 = vld [vmem:[#allocation2 + $0x8] sm:$0xf]
    %v1416 = vld [vmem:[#allocation2 + $0xc] sm:$0xf]
    %v1417 = vld [vmem:[#allocation2 + $0x10] sm:$0xf]
    %v1418 = vld [vmem:[#allocation2 + $0x14] sm:$0xf]
    %v1419 = vld [vmem:[#allocation2 + $0x18] sm:$0xf]
    %v1420 = vld [vmem:[#allocation2 + $0x1c] sm:$0xf]
    %v1421 = vld [vmem:[#allocation2 + $0x20] sm:$0xf]
    %v1422 = vld [vmem:[#allocation2 + $0x24] sm:$0xf]
    %v1423 = vld [vmem:[#allocation2 + $0x28] sm:$0xf]
    %v1424 = vld [vmem:[#allocation2 + $0x2c] sm:$0xf]
    %v1425 = vld [vmem:[#allocation2 + $0x30] sm:$0xf]
    %v1426 = vld [vmem:[#allocation2 + $0x34] sm:$0xf]
    %v1427 = vld [vmem:[#allocation2 + $0x38] sm:$0xf]
    %v1428 = vld [vmem:[#allocation2 + $0x3c] sm:$0xf]
    %v1429 = vld [vmem:[#allocation2 + $0x40] sm:$0xf]
    %v1430 = vld [vmem:[#allocation2 + $0x44] sm:$0xf]
    %v1431 = vld [vmem:[#allocation2 + $0x48] sm:$0xf]
    %v1432 = vld [vmem:[#allocation2 + $0x4c] sm:$0xf]
    %v1433 = vld [vmem:[#allocation2 + $0x50] sm:$0xf]
    %v1434 = vld [vmem:[#allocation2 + $0x54] sm:$0xf]
    %v1435 = vld [vmem:[#allocation2 + $0x58] sm:$0xf]
    %v1436 = vld [vmem:[#allocation2 + $0x5c] sm:$0xf]
    %v1437 = vld [vmem:[#allocation2 + $0x60] sm:$0xf]
    %v1438 = vld [vmem:[#allocation2 + $0x64] sm:$0xf]
    %v1439 = vld [vmem:[#allocation2 + $0x68] sm:$0xf]
    %v1440 = vld [vmem:[#allocation2 + $0x6c] sm:$0xf]
    %v1441 = vld [vmem:[#allocation2 + $0x70] sm:$0xf]
    %v1442 = vld [vmem:[#allocation2 + $0x74] sm:$0xf]
    %v1443 = vld [vmem:[#allocation2 + $0x78] sm:$0xf]
    %v1444 = vld [vmem:[#allocation2 + $0x7c] sm:$0xf]
    %v1445 = vld [vmem:[#allocation2 + $0x80] sm:$0xf]
    %v1446 = vld [vmem:[#allocation2 + $0x84] sm:$0xf]
    %v1447 = vld [vmem:[#allocation2 + $0x88] sm:$0xf]
    %v1448 = vld [vmem:[#allocation2 + $0x8c] sm:$0xf]
    %v1449 = vld [vmem:[#allocation2 + $0x90] sm:$0xf]
    %v1450 = vld [vmem:[#allocation2 + $0x94] sm:$0xf]
    %v1451 = vld [vmem:[#allocation2 + $0x98] sm:$0xf]
    %v1452 = vld [vmem:[#allocation2 + $0x9c] sm:$0xf]
    %v1453 = vld [vmem:[#allocation2 + $0xa0] sm:$0xf]
    %v1454 = vld [vmem:[#allocation2 + $0xa4] sm:$0xf]
    %v1455 = vld [vmem:[#allocation2 + $0xa8] sm:$0xf]
    %v1456 = vld [vmem:[#allocation2 + $0xac] sm:$0xf]
    %v1457 = vld [vmem:[#allocation2 + $0xb0] sm:$0xf]
    %v1458 = vld [vmem:[#allocation2 + $0xb4] sm:$0xf]
    %v1459 = vld [vmem:[#allocation2 + $0xb8] sm:$0xf]
    %v1460 = vld [vmem:[#allocation2 + $0xbc] sm:$0xf]
    %v1461 = vld [vmem:[%s4] sm:$0x1]
    %v1463 = vlaneseq
    %v1464 = vshrl.u32 %v1463, 7
    %v1465 = vsub.s32 0, %v1464
    %v1466 = vrot.slane %v1461, %v1465
    %v1516 = vunpack.c.l.b16 %v1413
    %v1517 = vunpack.c.l.b16 %v1414
    %v1518 = vunpack.c.l.b16 %v1415
    %v1519 = vunpack.c.l.b16 %v1416
    %v1520 = vunpack.c.l.b16 %v1417
    %v1521 = vunpack.c.l.b16 %v1418
    %v1522 = vunpack.c.l.b16 %v1419
    %v1523 = vunpack.c.l.b16 %v1420
    %v1524 = vunpack.c.l.b16 %v1421
    %v1525 = vunpack.c.l.b16 %v1422
    %v1526 = vunpack.c.l.b16 %v1423
    %v1527 = vunpack.c.l.b16 %v1424
    %v1528 = vunpack.c.l.b16 %v1425
    %v1529 = vunpack.c.l.b16 %v1426
    %v1530 = vunpack.c.l.b16 %v1427
    %v1531 = vunpack.c.l.b16 %v1428
    %v1532 = vunpack.c.l.b16 %v1429
    %v1533 = vunpack.c.l.b16 %v1430
    %v1534 = vunpack.c.l.b16 %v1431
    %v1535 = vunpack.c.l.b16 %v1432
    %v1536 = vunpack.c.l.b16 %v1433
    %v1537 = vunpack.c.l.b16 %v1434
    %v1538 = vunpack.c.l.b16 %v1435
    %v1539 = vunpack.c.l.b16 %v1436
    %v1540 = vunpack.c.l.b16 %v1437
    %v1541 = vunpack.c.l.b16 %v1438
    %v1542 = vunpack.c.l.b16 %v1439
    %v1543 = vunpack.c.l.b16 %v1440
    %v1544 = vunpack.c.l.b16 %v1441
    %v1545 = vunpack.c.l.b16 %v1442
    %v1546 = vunpack.c.l.b16 %v1443
    %v1547 = vunpack.c.l.b16 %v1444
    %v1548 = vunpack.c.l.b16 %v1445
    %v1549 = vunpack.c.l.b16 %v1446
    %v1550 = vunpack.c.l.b16 %v1447
    %v1551 = vunpack.c.l.b16 %v1448
    %v1552 = vunpack.c.l.b16 %v1449
    %v1553 = vunpack.c.l.b16 %v1450
    %v1554 = vunpack.c.l.b16 %v1451
    %v1555 = vunpack.c.l.b16 %v1452
    %v1556 = vunpack.c.l.b16 %v1453
    %v1557 = vunpack.c.l.b16 %v1454
    %v1558 = vunpack.c.l.b16 %v1455
    %v1559 = vunpack.c.l.b16 %v1456
    %v1560 = vunpack.c.l.b16 %v1457
    %v1561 = vunpack.c.l.b16 %v1458
    %v1562 = vunpack.c.l.b16 %v1459
    %v1563 = vunpack.c.l.b16 %v1460
    %v1564 = vpack.c.b16 %v1517, %v1516
    %v1565 = vpack.c.b16 %v1519, %v1518
    %v1566 = vpack.c.b16 %v1521, %v1520
    %v1567 = vpack.c.b16 %v1523, %v1522
    %v1568 = vpack.c.b16 %v1525, %v1524
    %v1569 = vpack.c.b16 %v1527, %v1526
    %v1570 = vpack.c.b16 %v1529, %v1528
    %v1571 = vpack.c.b16 %v1531, %v1530
    %v1572 = vpack.c.b16 %v1533, %v1532
    %v1573 = vpack.c.b16 %v1535, %v1534
    %v1574 = vpack.c.b16 %v1537, %v1536
    %v1575 = vpack.c.b16 %v1539, %v1538
    %v1576 = vpack.c.b16 %v1541, %v1540
    %v1577 = vpack.c.b16 %v1543, %v1542
    %v1578 = vpack.c.b16 %v1545, %v1544
    %v1579 = vpack.c.b16 %v1547, %v1546
    %v1580 = vpack.c.b16 %v1549, %v1548
    %v1581 = vpack.c.b16 %v1551, %v1550
    %v1582 = vpack.c.b16 %v1553, %v1552
    %v1583 = vpack.c.b16 %v1555, %v1554
    %v1584 = vpack.c.b16 %v1557, %v1556
    %v1585 = vpack.c.b16 %v1559, %v1558
    %v1586 = vpack.c.b16 %v1561, %v1560
    %v1587 = vpack.c.b16 %v1563, %v1562
    %1612 = vmatprep.subr.bf16.mxu0 0
    %1613 = vmatpush1.bf16.msra.mxu0 %v1564
    %1614 = vmatprep.subr.bf16.mxu0 0
    %1615 = vmatpush1.bf16.msra.mxu0 %v1565
    %1616 = vmatprep.subr.bf16.mxu0 0
    %1617 = vmatpush1.bf16.msra.mxu0 %v1566
    %1618 = vmatprep.subr.bf16.mxu0 0
    %1619 = vmatpush1.bf16.msra.mxu0 %v1567
    %1620 = vmatprep.subr.bf16.mxu0 0
    %1621 = vmatpush1.bf16.msra.mxu0 %v1568
    %1622 = vmatprep.subr.bf16.mxu0 0
    %1623 = vmatpush1.bf16.msra.mxu0 %v1569
    %1624 = vmatprep.subr.bf16.mxu0 0
    %1625 = vmatpush1.bf16.msra.mxu0 %v1570
    %1626 = vmatprep.subr.bf16.mxu0 0
    %1627 = vmatpush1.bf16.msra.mxu0 %v1571
    %1628 = vmatprep.subr.bf16.mxu0 0
    %1629 = vmatpush1.bf16.msra.mxu0 %v1572
    %1630 = vmatprep.subr.bf16.mxu0 0
    %1631 = vmatpush1.bf16.msra.mxu0 %v1573
    %1632 = vmatprep.subr.bf16.mxu0 0
    %1633 = vmatpush1.bf16.msra.mxu0 %v1574
    %1634 = vmatprep.subr.bf16.mxu0 0
    %1635 = vmatpush1.bf16.msra.mxu0 %v1575
    %1636 = vmatprep.subr.bf16.mxu0 0
    %1637 = vmatpush1.bf16.msra.mxu0 %v1576
    %1638 = vmatprep.subr.bf16.mxu0 0
    %1639 = vmatpush1.bf16.msra.mxu0 %v1577
    %1640 = vmatprep.subr.bf16.mxu0 0
    %1641 = vmatpush1.bf16.msra.mxu0 %v1578
    %1642 = vmatprep.subr.bf16.mxu0 0
    %1643 = vmatpush1.bf16.msra.mxu0 %v1579
    %1644 = vmatprep.mubr.bf16.mxu0 %v1399
    %1645 = vmatmul.mubr.bf16.gmra.mrb[0].mxu0 %v1398
    %v1646 = vpop.f32.mrb[0].mxu0
    %v1647 = vadd.f32 %v1466, %v1646
    %v1648 = vpop.f32.mrb[0].mxu0
    %v1649 = vpop.f32.mrb[0].mxu0
    %v1650 = vadd.f32 %v1466, %v1649
    %v1651 = vpop.f32.mrb[0].mxu0
    %1652 = vmatprep.mubr.bf16.mxu0 %v1402
    %1653 = vmatmul.mubr.bf16.gmra.mrb[0].mxu0 %v1401
    %v1654 = vpop.f32.mrb[0].mxu0
    %v1655 = vadd.f32 %v1466, %v1654
    %v1656 = vpop.f32.mrb[0].mxu0
    %v1657 = vpop.f32.mrb[0].mxu0
    %v1658 = vadd.f32 %v1466, %v1657
    %v1659 = vpop.f32.mrb[0].mxu0
    %1660 = vmatprep.mubr.bf16.mxu0 %v1405
    %1661 = vmatmul.mubr.bf16.gmra.mrb[0].mxu0 %v1404
    %v1662 = vpop.f32.mrb[0].mxu0
    %v1663 = vadd.f32 %v1466, %v1662
    %v1664 = vpop.f32.mrb[0].mxu0
    %v1665 = vpop.f32.mrb[0].mxu0
    %v1666 = vadd.f32 %v1466, %v1665
    %v1667 = vpop.f32.mrb[0].mxu0
    %1668 = vmatprep.mubr.bf16.mxu0 %v1408
    %1669 = vmatmul.mubr.bf16.gmra.mrb[0].mxu0 %v1407
    %v1670 = vpop.f32.mrb[0].mxu0
    %v1671 = vadd.f32 %v1466, %v1670
    %v1672 = vpop.f32.mrb[0].mxu0
    %v1673 = vpop.f32.mrb[0].mxu0
    %v1674 = vadd.f32 %v1466, %v1673
    %v1675 = vpop.f32.mrb[0].mxu0
    %1676 = vmatprep.mubr.bf16.mxu0 %v1411
    %1677 = vmatmul.mubr.bf16.gmra.mrb[0].mxu0 %v1410
    %v1678 = vpop.f32.mrb[0].mxu0
    %v1679 = vadd.f32 %v1466, %v1678
    %v1680 = vpop.f32.mrb[0].mxu0
    %v1681 = vpop.f32.mrb[0].mxu0
    %v1682 = vpop.f32.mrb[0].mxu0
    %1683 = vdwg.mxu0
    %1684 = vmatprep.subr.bf16.mxu0 0
    %1685 = vmatpush1.bf16.msra.mxu0 %v1580
    %1686 = vmatprep.subr.bf16.mxu0 0
    %1687 = vmatpush1.bf16.msra.mxu0 %v1581
    %1688 = vmatprep.subr.bf16.mxu0 0
    %1689 = vmatpush1.bf16.msra.mxu0 %v1582
    %1690 = vmatprep.subr.bf16.mxu0 0
    %1691 = vmatpush1.bf16.msra.mxu0 %v1583
    %1692 = vmatprep.subr.bf16.mxu0 0
    %1693 = vmatpush1.bf16.msra.mxu0 %v1584
    %1694 = vmatprep.subr.bf16.mxu0 0
    %1695 = vmatpush1.bf16.msra.mxu0 %v1585
    %1696 = vmatprep.subr.bf16.mxu0 0
    %1697 = vmatpush1.bf16.msra.mxu0 %v1586
    %1698 = vmatprep.subr.bf16.mxu0 0
    %1699 = vmatpush1.bf16.msra.mxu0 %v1587
    %1700 = vmatprep.subr.bf16.mxu0 0
    %1701 = vmatpush1.bf16.msra.mxu0 0
    %1702 = vmatprep.subr.bf16.mxu0 0
    %1703 = vmatpush1.bf16.msra.mxu0 0
    %1704 = vmatprep.subr.bf16.mxu0 0
    %1705 = vmatpush1.bf16.msra.mxu0 0
    %1706 = vmatprep.subr.bf16.mxu0 0
    %1707 = vmatpush1.bf16.msra.mxu0 0
    %1708 = vmatprep.subr.bf16.mxu0 0
    %1709 = vmatpush1.bf16.msra.mxu0 0
    %1710 = vmatprep.subr.bf16.mxu0 0
    %1711 = vmatpush1.bf16.msra.mxu0 0
    %1712 = vmatprep.subr.bf16.mxu0 0
    %1713 = vmatpush1.bf16.msra.mxu0 0
    %1714 = vmatprep.subr.bf16.mxu0 0
    %1715 = vmatpush1.bf16.msra.mxu0 0
    %1716 = vmatprep.mubr.bf16.mxu0 0
    %1717 = vmatmul.mubr.bf16.gmra.mrb[0].mxu0 %v1400
    %v1718 = vpop.f32.mrb[0].mxu0
    %v1719 = vadd.f32 %v1647, %v1718
    %v1720 = vpop.f32.mrb[0].mxu0
    %v1721 = vpop.f32.mrb[0].mxu0
    %v1722 = vadd.f32 %v1650, %v1721
    %v1723 = vpop.f32.mrb[0].mxu0
    %1724 = vmatprep.mubr.bf16.mxu0 0
    %1725 = vmatmul.mubr.bf16.gmra.mrb[0].mxu0 %v1403
    %v1726 = vpop.f32.mrb[0].mxu0
    %v1727 = vadd.f32 %v1655, %v1726
    %v1728 = vpop.f32.mrb[0].mxu0
    %v1729 = vpop.f32.mrb[0].mxu0
    %v1730 = vadd.f32 %v1658, %v1729
    %v1731 = vpop.f32.mrb[0].mxu0
    %1732 = vmatprep.mubr.bf16.mxu0 0
    %1733 = vmatmul.mubr.bf16.gmra.mrb[0].mxu0 %v1406
    %v1734 = vpop.f32.mrb[0].mxu0
    %v1735 = vadd.f32 %v1663, %v1734
    %v1736 = vpop.f32.mrb[0].mxu0
    %v1737 = vpop.f32.mrb[0].mxu0
    %v1738 = vadd.f32 %v1666, %v1737
    %v1739 = vpop.f32.mrb[0].mxu0
    %1740 = vmatprep.mubr.bf16.mxu0 0
    %1741 = vmatmul.mubr.bf16.gmra.mrb[0].mxu0 %v1409
    %v1742 = vpop.f32.mrb[0].mxu0
    %v1743 = vadd.f32 %v1671, %v1742
    %v1744 = vpop.f32.mrb[0].mxu0
    %v1745 = vpop.f32.mrb[0].mxu0
    %v1746 = vadd.f32 %v1674, %v1745
    %v1747 = vpop.f32.mrb[0].mxu0
    %1748 = vmatprep.mubr.bf16.mxu0 0
    %1749 = vmatmul.mubr.bf16.gmra.mrb[0].mxu0 %v1412
    %v1750 = vpop.f32.mrb[0].mxu0
    %v1751 = vadd.f32 %v1679, %v1750
    %v1752 = vpop.f32.mrb[0].mxu0
    %v1753 = vpop.f32.mrb[0].mxu0
    %v1754 = vpop.f32.mrb[0].mxu0
    %1755 = vdwg.mxu0
    %v1756 = vmax.f32 %v1719, 0.0
    %v1757 = vmax.f32 %v1722, 0.0
    %v1758 = vmax.f32 %v1727, 0.0
    %v1759 = vmax.f32 %v1730, 0.0
    %v1760 = vmax.f32 %v1735, 0.0
    %v1761 = vmax.f32 %v1738, 0.0
    %v1762 = vmax.f32 %v1743, 0.0
    %v1763 = vmax.f32 %v1746, 0.0
    %v1764 = vmax.f32 %v1751, 0.0
    %v1767 = vrot.slane %v1757, 4
    %v1768 = vrot.slane %v1758, 4
    %v1769 = vsel %vm1029, %v1767, %v1768
    %v1772 = vmax.f32 %v1756, %v1769
    %v1773 = vmax.f32 %v1757, %v1768
    %v1775 = vrot.slane %v1772, 1
    %v1777 = vmax.f32 %v1772, %v1775
    %v1779 = vrot.slane %v1773, 1
    %v1781 = vmax.f32 %v1773, %v1779
    %v1783 = vrot.slane %v1777, 1
    %v1785 = vrot.slane %v1777, 2
    %v1787 = vrot.slane %v1777, 3
    %v1790 = vrot.slane %v1781, 4
    %v1792 = vrot.slane %v1781, 5
    %v1794 = vsel %vm1018, %v1777, %v1783
    %v1795 = vsel %vm220, %v1794, %v1785
    %v1796 = vsel %vm1025, %v1795, %v1787
    %v1797 = vsel %vm1029, %v1796, %v1790
    %v1798 = vsel %vm1033, %v1797, %v1792
    %v1801 = vrot.slane %v1760, 4
    %v1802 = vrot.slane %v1761, 4
    %v1803 = vsel %vm1029, %v1801, %v1802
    %v1806 = vmax.f32 %v1759, %v1803
    %v1807 = vmax.f32 %v1760, %v1802
    %v1809 = vrot.slane %v1806, 1
    %v1811 = vmax.f32 %v1806, %v1809
    %v1813 = vrot.slane %v1807, 1
    %v1815 = vmax.f32 %v1807, %v1813
    %v1817 = vrot.slane %v1811, 1
    %v1819 = vrot.slane %v1811, 2
    %v1821 = vrot.slane %v1811, 3
    %v1824 = vrot.slane %v1815, 4
    %v1826 = vrot.slane %v1815, 5
    %v1828 = vsel %vm1018, %v1811, %v1817
    %v1829 = vsel %vm220, %v1828, %v1819
    %v1830 = vsel %vm1025, %v1829, %v1821
    %v1831 = vsel %vm1029, %v1830, %v1824
    %v1832 = vsel %vm1033, %v1831, %v1826
    %v1835 = vrot.slane %v1763, 4
    %v1836 = vrot.slane %v1764, 4
    %v1837 = vsel %vm1029, %v1835, %v1836
    %v1840 = vmax.f32 %v1762, %v1837
    %v1841 = vmax.f32 %v1763, %v1836
    %v1843 = vrot.slane %v1840, 1
    %v1845 = vmax.f32 %v1840, %v1843
    %v1847 = vrot.slane %v1841, 1
    %v1849 = vmax.f32 %v1841, %v1847
    %v1851 = vrot.slane %v1845, 1
    %v1853 = vrot.slane %v1845, 2
    %v1855 = vrot.slane %v1845, 3
    %v1858 = vrot.slane %v1849, 4
    %v1860 = vrot.slane %v1849, 5
    %v1862 = vsel %vm1018, %v1845, %v1851
    %v1863 = vsel %vm220, %v1862, %v1853
    %v1864 = vsel %vm1025, %v1863, %v1855
    %v1865 = vsel %vm1029, %v1864, %v1858
    %v1866 = vsel %vm1033, %v1865, %v1860
    %v1868 = vrot.slane %v1798, 1
    %1869 = vrot.lane.b32.xlu0 %v1868, 64
    %v1870 = vpop.permute.xlu0 %1869
    %v1872 = vrot.slane %v1798, 2
    %1875 = vrot.lane.b32.xlu0 %v1832, 64
    %v1876 = vpop.permute.xlu0 %1875
    %v1878 = vrot.slane %v1832, 1
    %v1880 = vrot.slane %v1832, 2
    %1881 = vrot.lane.b32.xlu0 %v1880, 64
    %v1882 = vpop.permute.xlu0 %1881
    %v1885 = vrot.slane %v1866, 1
    %1886 = vrot.lane.b32.xlu0 %v1885, 64
    %v1887 = vpop.permute.xlu0 %1886
    %v1889 = vrot.slane %v1866, 2
    %v1891 = vsel %vm864, %v1798, %v1870
    %v1892 = vsel %vm864, %v1872, %v1876
    %v1893 = vsel %vm864, %v1878, %v1882
    %v1894 = vsel %vm864, %v1866, %v1887
    %v1895 = vpack.c.bf16 %v1891, %v1891
    %v1896 = vpack.c.bf16 %v1892, %v1892
    %v1897 = vpack.c.bf16 %v1893, %v1893
    %v1898 = vpack.c.bf16 %v1894, %v1894
    %v1899 = vpack.c.bf16 %v1889, %v1889
    %v1900 = vld [vmem:[%s5] sm:$0xf]
    %v1901 = vld [vmem:[%s5 + $0x4] sm:$0xf]
    %v1902 = vld [vmem:[%s5 + $0x8] sm:$0xf]
    %v1903 = vld [vmem:[%s5 + $0xc] sm:$0xf]
    %v1904 = vld [vmem:[%s5 + $0x10] sm:$0xf]
    %v1905 = vld [vmem:[%s5 + $0x14] sm:$0xf]
    %v1906 = vld [vmem:[%s5 + $0x18] sm:$0xf]
    %v1907 = vld [vmem:[%s5 + $0x1c] sm:$0xf]
    %v1908 = vld [vmem:[%s5 + $0x20] sm:$0xf]
    %v1909 = vld [vmem:[%s5 + $0x24] sm:$0xf]
    %v1910 = vld [vmem:[%s5 + $0x28] sm:$0xf]
    %v1911 = vld [vmem:[%s5 + $0x2c] sm:$0xf]
    %v1912 = vld [vmem:[%s5 + $0x30] sm:$0xf]
    %v1913 = vld [vmem:[%s5 + $0x34] sm:$0xf]
    %v1914 = vld [vmem:[%s5 + $0x38] sm:$0xf]
    %v1915 = vld [vmem:[%s5 + $0x3c] sm:$0xf]
    %v1916 = vld [vmem:[%s5 + $0x40] sm:$0xf]
    %v1917 = vld [vmem:[%s5 + $0x44] sm:$0xf]
    %v1918 = vld [vmem:[%s5 + $0x48] sm:$0xf]
    %v1919 = vld [vmem:[%s5 + $0x4c] sm:$0xf]
    %v1920 = vld [vmem:[%s5 + $0x50] sm:$0xf]
    %v1921 = vld [vmem:[%s5 + $0x54] sm:$0xf]
    %v1922 = vld [vmem:[%s5 + $0x58] sm:$0xf]
    %v1923 = vld [vmem:[%s5 + $0x5c] sm:$0xf]
    %v1924 = vld [vmem:[%s5 + $0x60] sm:$0xf]
    %v1925 = vld [vmem:[%s5 + $0x64] sm:$0xf]
    %v1926 = vld [vmem:[%s5 + $0x68] sm:$0xf]
    %v1927 = vld [vmem:[%s5 + $0x6c] sm:$0xf]
    %v1928 = vld [vmem:[%s5 + $0x70] sm:$0xf]
    %v1929 = vld [vmem:[%s5 + $0x74] sm:$0xf]
    %v1930 = vld [vmem:[%s5 + $0x78] sm:$0xf]
    %v1931 = vld [vmem:[%s5 + $0x7c] sm:$0xf]
    %v1932 = vld [vmem:[%s5 + $0x80] sm:$0xf]
    %v1933 = vld [vmem:[%s5 + $0x84] sm:$0xf]
    %v1934 = vld [vmem:[%s5 + $0x88] sm:$0xf]
    %v1935 = vld [vmem:[%s5 + $0x8c] sm:$0xf]
    %v1936 = vld [vmem:[%s5 + $0x90] sm:$0xf]
    %v1937 = vld [vmem:[%s5 + $0x94] sm:$0xf]
    %v1938 = vld [vmem:[%s5 + $0x98] sm:$0xf]
    %v1939 = vld [vmem:[%s5 + $0x9c] sm:$0xf]
    %v1940 = vld [vmem:[%s5 + $0xa0] sm:$0xf]
    %v1941 = vld [vmem:[%s5 + $0xa4] sm:$0xf]
    %v1942 = vld [vmem:[%s5 + $0xa8] sm:$0xf]
    %v1943 = vld [vmem:[%s5 + $0xac] sm:$0xf]
    %v1944 = vld [vmem:[%s5 + $0xb0] sm:$0xf]
    %v1945 = vld [vmem:[%s5 + $0xb4] sm:$0xf]
    %v1946 = vld [vmem:[%s5 + $0xb8] sm:$0xf]
    %v1947 = vld [vmem:[%s5 + $0xbc] sm:$0xf]
    %v1948 = vld [vmem:[%s5 + $0xc0] sm:$0xf]
    %v1949 = vld [vmem:[%s5 + $0xc4] sm:$0xf]
    %v1950 = vld [vmem:[%s5 + $0xc8] sm:$0xf]
    %v1951 = vld [vmem:[%s5 + $0xcc] sm:$0xf]
    %v1952 = vld [vmem:[%s5 + $0xd0] sm:$0xf]
    %v1953 = vld [vmem:[%s5 + $0xd4] sm:$0xf]
    %v1954 = vld [vmem:[%s5 + $0xd8] sm:$0xf]
    %v1955 = vld [vmem:[%s5 + $0xdc] sm:$0xf]
    %v1956 = vld [vmem:[%s5 + $0xe0] sm:$0xf]
    %v1957 = vld [vmem:[%s5 + $0xe4] sm:$0xf]
    %v1958 = vld [vmem:[%s5 + $0xe8] sm:$0xf]
    %v1959 = vld [vmem:[%s5 + $0xec] sm:$0xf]
    %v1960 = vld [vmem:[%s5 + $0xf0] sm:$0xf]
    %v1961 = vld [vmem:[%s5 + $0xf4] sm:$0xf]
    %v1962 = vld [vmem:[%s5 + $0xf8] sm:$0xf]
    %v1963 = vld [vmem:[%s5 + $0xfc] sm:$0xf]
    %v1964 = vld [vmem:[%s5 + $0x100] sm:$0xf]
    %v1965 = vld [vmem:[%s5 + $0x104] sm:$0xf]
    %v1966 = vld [vmem:[%s5 + $0x108] sm:$0xf]
    %v1967 = vld [vmem:[%s5 + $0x10c] sm:$0xf]
    %v1968 = vld [vmem:[%s5 + $0x110] sm:$0xf]
    %v1969 = vld [vmem:[%s5 + $0x114] sm:$0xf]
    %v1970 = vld [vmem:[%s5 + $0x118] sm:$0xf]
    %v1971 = vld [vmem:[%s5 + $0x11c] sm:$0xf]
    %v1972 = vld [vmem:[#allocation5] sm:$0x1]
    %v1974 = vlaneseq
    %v1975 = vshrl.u32 %v1974, 7
    %v1976 = vsub.s32 0, %v1975
    %v1977 = vrot.slane %v1972, %v1976
    %v2051 = vunpack.c.l.b16 %v1900
    %v2052 = vunpack.c.l.b16 %v1901
    %v2053 = vunpack.c.l.b16 %v1902
    %v2054 = vunpack.c.l.b16 %v1903
    %v2055 = vunpack.c.l.b16 %v1904
    %v2056 = vunpack.c.l.b16 %v1905
    %v2057 = vunpack.c.l.b16 %v1906
    %v2058 = vunpack.c.l.b16 %v1907
    %v2059 = vunpack.c.l.b16 %v1908
    %v2060 = vunpack.c.l.b16 %v1909
    %v2061 = vunpack.c.l.b16 %v1910
    %v2062 = vunpack.c.l.b16 %v1911
    %v2063 = vunpack.c.l.b16 %v1912
    %v2064 = vunpack.c.l.b16 %v1913
    %v2065 = vunpack.c.l.b16 %v1914
    %v2066 = vunpack.c.l.b16 %v1915
    %v2067 = vunpack.c.l.b16 %v1916
    %v2068 = vunpack.c.l.b16 %v1917
    %v2069 = vunpack.c.l.b16 %v1918
    %v2070 = vunpack.c.l.b16 %v1919
    %v2071 = vunpack.c.l.b16 %v1920
    %v2072 = vunpack.c.l.b16 %v1921
    %v2073 = vunpack.c.l.b16 %v1922
    %v2074 = vunpack.c.l.b16 %v1923
    %v2075 = vunpack.c.l.b16 %v1924
    %v2076 = vunpack.c.l.b16 %v1925
    %v2077 = vunpack.c.l.b16 %v1926
    %v2078 = vunpack.c.l.b16 %v1927
    %v2079 = vunpack.c.l.b16 %v1928
    %v2080 = vunpack.c.l.b16 %v1929
    %v2081 = vunpack.c.l.b16 %v1930
    %v2082 = vunpack.c.l.b16 %v1931
    %v2083 = vunpack.c.l.b16 %v1932
    %v2084 = vunpack.c.l.b16 %v1933
    %v2085 = vunpack.c.l.b16 %v1934
    %v2086 = vunpack.c.l.b16 %v1935
    %v2087 = vunpack.c.l.b16 %v1936
    %v2088 = vunpack.c.l.b16 %v1937
    %v2089 = vunpack.c.l.b16 %v1938
    %v2090 = vunpack.c.l.b16 %v1939
    %v2091 = vunpack.c.l.b16 %v1940
    %v2092 = vunpack.c.l.b16 %v1941
    %v2093 = vunpack.c.l.b16 %v1942
    %v2094 = vunpack.c.l.b16 %v1943
    %v2095 = vunpack.c.l.b16 %v1944
    %v2096 = vunpack.c.l.b16 %v1945
    %v2097 = vunpack.c.l.b16 %v1946
    %v2098 = vunpack.c.l.b16 %v1947
    %v2099 = vunpack.c.l.b16 %v1948
    %v2100 = vunpack.c.l.b16 %v1949
    %v2101 = vunpack.c.l.b16 %v1950
    %v2102 = vunpack.c.l.b16 %v1951
    %v2103 = vunpack.c.l.b16 %v1952
    %v2104 = vunpack.c.l.b16 %v1953
    %v2105 = vunpack.c.l.b16 %v1954
    %v2106 = vunpack.c.l.b16 %v1955
    %v2107 = vunpack.c.l.b16 %v1956
    %v2108 = vunpack.c.l.b16 %v1957
    %v2109 = vunpack.c.l.b16 %v1958
    %v2110 = vunpack.c.l.b16 %v1959
    %v2111 = vunpack.c.l.b16 %v1960
    %v2112 = vunpack.c.l.b16 %v1961
    %v2113 = vunpack.c.l.b16 %v1962
    %v2114 = vunpack.c.l.b16 %v1963
    %v2115 = vunpack.c.l.b16 %v1964
    %v2116 = vunpack.c.l.b16 %v1965
    %v2117 = vunpack.c.l.b16 %v1966
    %v2118 = vunpack.c.l.b16 %v1967
    %v2119 = vunpack.c.l.b16 %v1968
    %v2120 = vunpack.c.l.b16 %v1969
    %v2121 = vunpack.c.l.b16 %v1970
    %v2122 = vunpack.c.l.b16 %v1971
    %v2123 = vpack.c.b16 %v2052, %v2051
    %v2124 = vpack.c.b16 %v2054, %v2053
    %v2125 = vpack.c.b16 %v2056, %v2055
    %v2126 = vpack.c.b16 %v2058, %v2057
    %v2127 = vpack.c.b16 %v2060, %v2059
    %v2128 = vpack.c.b16 %v2062, %v2061
    %v2129 = vpack.c.b16 %v2064, %v2063
    %v2130 = vpack.c.b16 %v2066, %v2065
    %v2131 = vpack.c.b16 %v2068, %v2067
    %v2132 = vpack.c.b16 %v2070, %v2069
    %v2133 = vpack.c.b16 %v2072, %v2071
    %v2134 = vpack.c.b16 %v2074, %v2073
    %v2135 = vpack.c.b16 %v2076, %v2075
    %v2136 = vpack.c.b16 %v2078, %v2077
    %v2137 = vpack.c.b16 %v2080, %v2079
    %v2138 = vpack.c.b16 %v2082, %v2081
    %v2139 = vpack.c.b16 %v2084, %v2083
    %v2140 = vpack.c.b16 %v2086, %v2085
    %v2141 = vpack.c.b16 %v2088, %v2087
    %v2142 = vpack.c.b16 %v2090, %v2089
    %v2143 = vpack.c.b16 %v2092, %v2091
    %v2144 = vpack.c.b16 %v2094, %v2093
    %v2145 = vpack.c.b16 %v2096, %v2095
    %v2146 = vpack.c.b16 %v2098, %v2097
    %v2147 = vpack.c.b16 %v2100, %v2099
    %v2148 = vpack.c.b16 %v2102, %v2101
    %v2149 = vpack.c.b16 %v2104, %v2103
    %v2150 = vpack.c.b16 %v2106, %v2105
    %v2151 = vpack.c.b16 %v2108, %v2107
    %v2152 = vpack.c.b16 %v2110, %v2109
    %v2153 = vpack.c.b16 %v2112, %v2111
    %v2154 = vpack.c.b16 %v2114, %v2113
    %v2155 = vpack.c.b16 %v2116, %v2115
    %v2156 = vpack.c.b16 %v2118, %v2117
    %v2157 = vpack.c.b16 %v2120, %v2119
    %v2158 = vpack.c.b16 %v2122, %v2121
    %v2196 = vsel %vm864, %v1899, 0
    %2198 = vmatprep.subr.bf16.mxu0 0
    %2199 = vmatpush1.bf16.msra.mxu0 %v2123
    %2200 = vmatprep.subr.bf16.mxu0 0
    %2201 = vmatpush1.bf16.msra.mxu0 %v2124
    %2202 = vmatprep.subr.bf16.mxu0 0
    %2203 = vmatpush1.bf16.msra.mxu0 %v2125
    %2204 = vmatprep.subr.bf16.mxu0 0
    %2205 = vmatpush1.bf16.msra.mxu0 %v2126
    %2206 = vmatprep.subr.bf16.mxu0 0
    %2207 = vmatpush1.bf16.msra.mxu0 %v2127
    %2208 = vmatprep.subr.bf16.mxu0 0
    %2209 = vmatpush1.bf16.msra.mxu0 %v2128
    %2210 = vmatprep.subr.bf16.mxu0 0
    %2211 = vmatpush1.bf16.msra.mxu0 %v2129
    %2212 = vmatprep.subr.bf16.mxu0 0
    %2213 = vmatpush1.bf16.msra.mxu0 %v2130
    %2214 = vmatprep.subr.bf16.mxu0 0
    %2215 = vmatpush1.bf16.msra.mxu0 %v2131
    %2216 = vmatprep.subr.bf16.mxu0 0
    %2217 = vmatpush1.bf16.msra.mxu0 %v2132
    %2218 = vmatprep.subr.bf16.mxu0 0
    %2219 = vmatpush1.bf16.msra.mxu0 %v2133
    %2220 = vmatprep.subr.bf16.mxu0 0
    %2221 = vmatpush1.bf16.msra.mxu0 %v2134
    %2222 = vmatprep.subr.bf16.mxu0 0
    %2223 = vmatpush1.bf16.msra.mxu0 %v2135
    %2224 = vmatprep.subr.bf16.mxu0 0
    %2225 = vmatpush1.bf16.msra.mxu0 %v2136
    %2226 = vmatprep.subr.bf16.mxu0 0
    %2227 = vmatpush1.bf16.msra.mxu0 %v2137
    %2228 = vmatprep.subr.bf16.mxu0 0
    %2229 = vmatpush1.bf16.msra.mxu0 %v2138
    %2230 = vmatprep.mubr.bf16.mxu0 %v1896
    %2231 = vmatmul.mubr.bf16.gmra.mrb[0].mxu0 %v1895
    %v2232 = vpop.f32.mrb[0].mxu0
    %v2233 = vadd.f32 %v1977, %v2232
    %v2234 = vpop.f32.mrb[0].mxu0
    %v2235 = vpop.f32.mrb[0].mxu0
    %v2236 = vpop.f32.mrb[0].mxu0
    %2237 = vdwg.mxu0
    %2238 = vmatprep.subr.bf16.mxu0 0
    %2239 = vmatpush1.bf16.msra.mxu0 %v2139
    %2240 = vmatprep.subr.bf16.mxu0 0
    %2241 = vmatpush1.bf16.msra.mxu0 %v2140
    %2242 = vmatprep.subr.bf16.mxu0 0
    %2243 = vmatpush1.bf16.msra.mxu0 %v2141
    %2244 = vmatprep.subr.bf16.mxu0 0
    %2245 = vmatpush1.bf16.msra.mxu0 %v2142
    %2246 = vmatprep.subr.bf16.mxu0 0
    %2247 = vmatpush1.bf16.msra.mxu0 %v2143
    %2248 = vmatprep.subr.bf16.mxu0 0
    %2249 = vmatpush1.bf16.msra.mxu0 %v2144
    %2250 = vmatprep.subr.bf16.mxu0 0
    %2251 = vmatpush1.bf16.msra.mxu0 %v2145
    %2252 = vmatprep.subr.bf16.mxu0 0
    %2253 = vmatpush1.bf16.msra.mxu0 %v2146
    %2254 = vmatprep.subr.bf16.mxu0 0
    %2255 = vmatpush1.bf16.msra.mxu0 %v2147
    %2256 = vmatprep.subr.bf16.mxu0 0
    %2257 = vmatpush1.bf16.msra.mxu0 %v2148
    %2258 = vmatprep.subr.bf16.mxu0 0
    %2259 = vmatpush1.bf16.msra.mxu0 %v2149
    %2260 = vmatprep.subr.bf16.mxu0 0
    %2261 = vmatpush1.bf16.msra.mxu0 %v2150
    %2262 = vmatprep.subr.bf16.mxu0 0
    %2263 = vmatpush1.bf16.msra.mxu0 %v2151
    %2264 = vmatprep.subr.bf16.mxu0 0
    %2265 = vmatpush1.bf16.msra.mxu0 %v2152
    %2266 = vmatprep.subr.bf16.mxu0 0
    %2267 = vmatpush1.bf16.msra.mxu0 %v2153
    %2268 = vmatprep.subr.bf16.mxu0 0
    %2269 = vmatpush1.bf16.msra.mxu0 %v2154
    %2270 = vmatprep.mubr.bf16.mxu0 %v1898
    %2271 = vmatmul.mubr.bf16.gmra.mrb[0].mxu0 %v1897
    %v2272 = vpop.f32.mrb[0].mxu0
    %v2273 = vadd.f32 %v2233, %v2272
    %v2274 = vpop.f32.mrb[0].mxu0
    %v2275 = vpop.f32.mrb[0].mxu0
    %v2276 = vpop.f32.mrb[0].mxu0
    %2277 = vdwg.mxu0
    %2278 = vmatprep.subr.bf16.mxu0 0
    %2279 = vmatpush1.bf16.msra.mxu0 %v2155
    %2280 = vmatprep.subr.bf16.mxu0 0
    %2281 = vmatpush1.bf16.msra.mxu0 %v2156
    %2282 = vmatprep.subr.bf16.mxu0 0
    %2283 = vmatpush1.bf16.msra.mxu0 %v2157
    %2284 = vmatprep.subr.bf16.mxu0 0
    %2285 = vmatpush1.bf16.msra.mxu0 %v2158
    %2286 = vmatprep.subr.bf16.mxu0 0
    %2287 = vmatpush1.bf16.msra.mxu0 0
    %2288 = vmatprep.subr.bf16.mxu0 0
    %2289 = vmatpush1.bf16.msra.mxu0 0
    %2290 = vmatprep.subr.bf16.mxu0 0
    %2291 = vmatpush1.bf16.msra.mxu0 0
    %2292 = vmatprep.subr.bf16.mxu0 0
    %2293 = vmatpush1.bf16.msra.mxu0 0
    %2294 = vmatprep.subr.bf16.mxu0 0
    %2295 = vmatpush1.bf16.msra.mxu0 0
    %2296 = vmatprep.subr.bf16.mxu0 0
    %2297 = vmatpush1.bf16.msra.mxu0 0
    %2298 = vmatprep.subr.bf16.mxu0 0
    %2299 = vmatpush1.bf16.msra.mxu0 0
    %2300 = vmatprep.subr.bf16.mxu0 0
    %2301 = vmatpush1.bf16.msra.mxu0 0
    %2302 = vmatprep.subr.bf16.mxu0 0
    %2303 = vmatpush1.bf16.msra.mxu0 0
    %2304 = vmatprep.subr.bf16.mxu0 0
    %2305 = vmatpush1.bf16.msra.mxu0 0
    %2306 = vmatprep.subr.bf16.mxu0 0
    %2307 = vmatpush1.bf16.msra.mxu0 0
    %2308 = vmatprep.subr.bf16.mxu0 0
    %2309 = vmatpush1.bf16.msra.mxu0 0
    %2310 = vmatprep.mubr.bf16.mxu0 0
    %2311 = vmatmul.mubr.bf16.gmra.mrb[0].mxu0 %v2196
    %v2312 = vpop.f32.mrb[0].mxu0
    %v2313 = vadd.f32 %v2273, %v2312
    %v2314 = vpop.f32.mrb[0].mxu0
    %v2315 = vpop.f32.mrb[0].mxu0
    %v2316 = vpop.f32.mrb[0].mxu0
    %2317 = vdwg.mxu0
    %v2318 = vmax.f32 %v2313, 0.0
    %s2319 = scalar_lea.vmem %s0, 32
    %v2320 = vld [vmem:[%s2319] sm:$0xff]
    %v2321 = vld [vmem:[%s2319 + $0x8] sm:$0xff]
    %v2322 = vld [vmem:[%s2319 + $0x10] sm:$0xff]
    %v2323 = vld [vmem:[%s2319 + $0x18] sm:$0x1f]
    %v2324 = vpack.c.bf16 %v2321, %v2320
    %v2325 = vpack.c.bf16 %v2323, %v2322
    %v2327 = vshrl.u32 %v2324, 16
    %v2329 = vshll.u32 %v2324, 16
    %v2331 = vrot.slane %v2329, 1
    %v2332 = vor.u32 %v2327, %v2331
    %v2334 = vshll.u32 %v2325, 16
    %v2336 = vrot.slane %v2334, 1
    %v2337 = vsel %vm158, %v2332, %v2336
    %v2338 = vshrl.u32 %v2325, 16
    %v2340 = vor.u32 %v2338, %v2336
    %v2342 = vsel %vm213, %v2337, 0
    %v2345 = vsel %vm213, %v2340, 0
    %2347 = vmatprep.subr.bf16.mxu0 %v199
    %2348 = vmatpush1.bf16.msra.mxu0 %v198
    %2349 = vmatprep.subr.bf16.mxu0 %v225
    %2350 = vmatpush1.bf16.msra.mxu0 %v222
    %2351 = vmatprep.subr.bf16.mxu0 0
    %2352 = vmatpush1.bf16.msra.mxu0 0
    %2353 = vmatprep.subr.bf16.mxu0 0
    %2354 = vmatpush1.bf16.msra.mxu0 0
    %2355 = vmatprep.subr.bf16.mxu0 0
    %2356 = vmatpush1.bf16.msra.mxu0 0
    %2357 = vmatprep.subr.bf16.mxu0 0
    %2358 = vmatpush1.bf16.msra.mxu0 0
    %2359 = vmatprep.subr.bf16.mxu0 0
    %2360 = vmatpush1.bf16.msra.mxu0 0
    %2361 = vmatprep.subr.bf16.mxu0 0
    %2362 = vmatpush1.bf16.msra.mxu0 0
    %2363 = vmatprep.subr.bf16.mxu0 0
    %2364 = vmatpush1.bf16.msra.mxu0 0
    %2365 = vmatprep.subr.bf16.mxu0 0
    %2366 = vmatpush1.bf16.msra.mxu0 0
    %2367 = vmatprep.subr.bf16.mxu0 0
    %2368 = vmatpush1.bf16.msra.mxu0 0
    %2369 = vmatprep.subr.bf16.mxu0 0
    %2370 = vmatpush1.bf16.msra.mxu0 0
    %2371 = vmatprep.subr.bf16.mxu0 0
    %2372 = vmatpush1.bf16.msra.mxu0 0
    %2373 = vmatprep.subr.bf16.mxu0 0
    %2374 = vmatpush1.bf16.msra.mxu0 0
    %2375 = vmatprep.subr.bf16.mxu0 0
    %2376 = vmatpush1.bf16.msra.mxu0 0
    %2377 = vmatprep.subr.bf16.mxu0 0
    %2378 = vmatpush1.bf16.msra.mxu0 0
    %2379 = vmatprep.mubr.bf16.mxu0 0
    %2380 = vmatmul.mubr.bf16.gmra.mrb[0].mxu0 %v2342
    %v2381 = vpop.f32.mrb[0].mxu0
    %v2382 = vadd.f32 0.0, %v2381
    %v2383 = vpop.f32.mrb[0].mxu0
    %v2384 = vadd.f32 0.0, %v2383
    %v2385 = vpop.f32.mrb[0].mxu0
    %v2386 = vadd.f32 0.0, %v2385
    %v2387 = vpop.f32.mrb[0].mxu0
    %v2388 = vadd.f32 0.0, %v2387
    %2389 = vmatprep.mubr.bf16.mxu0 0
    %2390 = vmatmul.mubr.bf16.gmra.mrb[0].mxu0 %v2345
    %v2391 = vpop.f32.mrb[0].mxu0
    %v2392 = vadd.f32 0.0, %v2391
    %v2393 = vpop.f32.mrb[0].mxu0
    %v2394 = vadd.f32 0.0, %v2393
    %v2395 = vpop.f32.mrb[0].mxu0
    %v2396 = vadd.f32 0.0, %v2395
    %v2397 = vpop.f32.mrb[0].mxu0
    %v2398 = vadd.f32 0.0, %v2397
    %2399 = vdwg.mxu0
    %2400 = vmatprep.subr.bf16.mxu0 %v201
    %2401 = vmatpush1.bf16.msra.mxu0 %v200
    %2402 = vmatprep.subr.bf16.mxu0 %v231
    %2403 = vmatpush1.bf16.msra.mxu0 %v228
    %2404 = vmatprep.subr.bf16.mxu0 0
    %2405 = vmatpush1.bf16.msra.mxu0 0
    %2406 = vmatprep.subr.bf16.mxu0 0
    %2407 = vmatpush1.bf16.msra.mxu0 0
    %2408 = vmatprep.subr.bf16.mxu0 0
    %2409 = vmatpush1.bf16.msra.mxu0 0
    %2410 = vmatprep.subr.bf16.mxu0 0
    %2411 = vmatpush1.bf16.msra.mxu0 0
    %2412 = vmatprep.subr.bf16.mxu0 0
    %2413 = vmatpush1.bf16.msra.mxu0 0
    %2414 = vmatprep.subr.bf16.mxu0 0
    %2415 = vmatpush1.bf16.msra.mxu0 0
    %2416 = vmatprep.subr.bf16.mxu0 0
    %2417 = vmatpush1.bf16.msra.mxu0 0
    %2418 = vmatprep.subr.bf16.mxu0 0
    %2419 = vmatpush1.bf16.msra.mxu0 0
    %2420 = vmatprep.subr.bf16.mxu0 0
    %2421 = vmatpush1.bf16.msra.mxu0 0
    %2422 = vmatprep.subr.bf16.mxu0 0
    %2423 = vmatpush1.bf16.msra.mxu0 0
    %2424 = vmatprep.subr.bf16.mxu0 0
    %2425 = vmatpush1.bf16.msra.mxu0 0
    %2426 = vmatprep.subr.bf16.mxu0 0
    %2427 = vmatpush1.bf16.msra.mxu0 0
    %2428 = vmatprep.subr.bf16.mxu0 0
    %2429 = vmatpush1.bf16.msra.mxu0 0
    %2430 = vmatprep.subr.bf16.mxu0 0
    %2431 = vmatpush1.bf16.msra.mxu0 0
    %2432 = vmatprep.mubr.bf16.mxu0 0
    %2433 = vmatmul.mubr.bf16.gmra.mrb[0].mxu0 %v2342
    %v2434 = vpop.f32.mrb[0].mxu0
    %v2435 = vadd.f32 0.0, %v2434
    %v2436 = vpop.f32.mrb[0].mxu0
    %v2437 = vadd.f32 0.0, %v2436
    %v2438 = vpop.f32.mrb[0].mxu0
    %v2439 = vadd.f32 0.0, %v2438
    %v2440 = vpop.f32.mrb[0].mxu0
    %v2441 = vadd.f32 0.0, %v2440
    %2442 = vmatprep.mubr.bf16.mxu0 0
    %2443 = vmatmul.mubr.bf16.gmra.mrb[0].mxu0 %v2345
    %v2444 = vpop.f32.mrb[0].mxu0
    %v2445 = vadd.f32 0.0, %v2444
    %v2446 = vpop.f32.mrb[0].mxu0
    %v2447 = vadd.f32 0.0, %v2446
    %v2448 = vpop.f32.mrb[0].mxu0
    %v2449 = vadd.f32 0.0, %v2448
    %v2450 = vpop.f32.mrb[0].mxu0
    %v2451 = vadd.f32 0.0, %v2450
    %2452 = vdwg.mxu0
    %2453 = vmatprep.subr.bf16.mxu0 0
    %2454 = vmatpush1.bf16.msra.mxu0 %v202
    %2455 = vmatprep.subr.bf16.mxu0 0
    %2456 = vmatpush1.bf16.msra.mxu0 %v234
    %2457 = vmatprep.subr.bf16.mxu0 0
    %2458 = vmatpush1.bf16.msra.mxu0 0
    %2459 = vmatprep.subr.bf16.mxu0 0
    %2460 = vmatpush1.bf16.msra.mxu0 0
    %2461 = vmatprep.subr.bf16.mxu0 0
    %2462 = vmatpush1.bf16.msra.mxu0 0
    %2463 = vmatprep.subr.bf16.mxu0 0
    %2464 = vmatpush1.bf16.msra.mxu0 0
    %2465 = vmatprep.subr.bf16.mxu0 0
    %2466 = vmatpush1.bf16.msra.mxu0 0
    %2467 = vmatprep.subr.bf16.mxu0 0
    %2468 = vmatpush1.bf16.msra.mxu0 0
    %2469 = vmatprep.subr.bf16.mxu0 0
    %2470 = vmatpush1.bf16.msra.mxu0 0
    %2471 = vmatprep.subr.bf16.mxu0 0
    %2472 = vmatpush1.bf16.msra.mxu0 0
    %2473 = vmatprep.subr.bf16.mxu0 0
    %2474 = vmatpush1.bf16.msra.mxu0 0
    %2475 = vmatprep.subr.bf16.mxu0 0
    %2476 = vmatpush1.bf16.msra.mxu0 0
    %2477 = vmatprep.subr.bf16.mxu0 0
    %2478 = vmatpush1.bf16.msra.mxu0 0
    %2479 = vmatprep.subr.bf16.mxu0 0
    %2480 = vmatpush1.bf16.msra.mxu0 0
    %2481 = vmatprep.subr.bf16.mxu0 0
    %2482 = vmatpush1.bf16.msra.mxu0 0
    %2483 = vmatprep.subr.bf16.mxu0 0
    %2484 = vmatpush1.bf16.msra.mxu0 0
    %2485 = vmatprep.mubr.bf16.mxu0 0
    %2486 = vmatmul.mubr.bf16.gmra.mrb[0].mxu0 %v2342
    %v2487 = vpop.f32.mrb[0].mxu0
    %v2488 = vadd.f32 0.0, %v2487
    %v2489 = vpop.f32.mrb[0].mxu0
    %v2490 = vpop.f32.mrb[0].mxu0
    %v2491 = vadd.f32 0.0, %v2490
    %v2492 = vpop.f32.mrb[0].mxu0
    %2493 = vmatprep.mubr.bf16.mxu0 0
    %2494 = vmatmul.mubr.bf16.gmra.mrb[0].mxu0 %v2345
    %v2495 = vpop.f32.mrb[0].mxu0
    %v2496 = vadd.f32 0.0, %v2495
    %v2497 = vpop.f32.mrb[0].mxu0
    %v2498 = vpop.f32.mrb[0].mxu0
    %v2499 = vadd.f32 0.0, %v2498
    %v2500 = vpop.f32.mrb[0].mxu0
    %2501 = vdwg.mxu0
    %v2502 = vsel %vm213, %v2324, 0
    %v2504 = vsel %vm213, %v2325, 0
    %2506 = vmatprep.subr.bf16.mxu0 %v416
    %2507 = vmatpush1.bf16.msra.mxu0 %v415
    %2508 = vmatprep.subr.bf16.mxu0 %v438
    %2509 = vmatpush1.bf16.msra.mxu0 %v435
    %2510 = vmatprep.subr.bf16.mxu0 0
    %2511 = vmatpush1.bf16.msra.mxu0 0
    %2512 = vmatprep.subr.bf16.mxu0 0
    %2513 = vmatpush1.bf16.msra.mxu0 0
    %2514 = vmatprep.subr.bf16.mxu0 0
    %2515 = vmatpush1.bf16.msra.mxu0 0
    %2516 = vmatprep.subr.bf16.mxu0 0
    %2517 = vmatpush1.bf16.msra.mxu0 0
    %2518 = vmatprep.subr.bf16.mxu0 0
    %2519 = vmatpush1.bf16.msra.mxu0 0
    %2520 = vmatprep.subr.bf16.mxu0 0
    %2521 = vmatpush1.bf16.msra.mxu0 0
    %2522 = vmatprep.subr.bf16.mxu0 0
    %2523 = vmatpush1.bf16.msra.mxu0 0
    %2524 = vmatprep.subr.bf16.mxu0 0
    %2525 = vmatpush1.bf16.msra.mxu0 0
    %2526 = vmatprep.subr.bf16.mxu0 0
    %2527 = vmatpush1.bf16.msra.mxu0 0
    %2528 = vmatprep.subr.bf16.mxu0 0
    %2529 = vmatpush1.bf16.msra.mxu0 0
    %2530 = vmatprep.subr.bf16.mxu0 0
    %2531 = vmatpush1.bf16.msra.mxu0 0
    %2532 = vmatprep.subr.bf16.mxu0 0
    %2533 = vmatpush1.bf16.msra.mxu0 0
    %2534 = vmatprep.subr.bf16.mxu0 0
    %2535 = vmatpush1.bf16.msra.mxu0 0
    %2536 = vmatprep.subr.bf16.mxu0 0
    %2537 = vmatpush1.bf16.msra.mxu0 0
    %2538 = vmatprep.mubr.bf16.mxu0 0
    %2539 = vmatmul.mubr.bf16.gmra.mrb[0].mxu0 %v2502
    %v2540 = vpop.f32.mrb[0].mxu0
    %v2541 = vadd.f32 %v2382, %v2540
    %v2542 = vpop.f32.mrb[0].mxu0
    %v2543 = vadd.f32 %v2384, %v2542
    %v2544 = vpop.f32.mrb[0].mxu0
    %v2545 = vadd.f32 %v2386, %v2544
    %v2546 = vpop.f32.mrb[0].mxu0
    %v2547 = vadd.f32 %v2388, %v2546
    %2548 = vmatprep.mubr.bf16.mxu0 0
    %2549 = vmatmul.mubr.bf16.gmra.mrb[0].mxu0 %v2504
    %v2550 = vpop.f32.mrb[0].mxu0
    %v2551 = vadd.f32 %v2392, %v2550
    %v2552 = vpop.f32.mrb[0].mxu0
    %v2553 = vadd.f32 %v2394, %v2552
    %v2554 = vpop.f32.mrb[0].mxu0
    %v2555 = vadd.f32 %v2396, %v2554
    %v2556 = vpop.f32.mrb[0].mxu0
    %v2557 = vadd.f32 %v2398, %v2556
    %2558 = vdwg.mxu0
    %2559 = vmatprep.subr.bf16.mxu0 %v418
    %2560 = vmatpush1.bf16.msra.mxu0 %v417
    %2561 = vmatprep.subr.bf16.mxu0 %v444
    %2562 = vmatpush1.bf16.msra.mxu0 %v441
    %2563 = vmatprep.subr.bf16.mxu0 0
    %2564 = vmatpush1.bf16.msra.mxu0 0
    %2565 = vmatprep.subr.bf16.mxu0 0
    %2566 = vmatpush1.bf16.msra.mxu0 0
    %2567 = vmatprep.subr.bf16.mxu0 0
    %2568 = vmatpush1.bf16.msra.mxu0 0
    %2569 = vmatprep.subr.bf16.mxu0 0
    %2570 = vmatpush1.bf16.msra.mxu0 0
    %2571 = vmatprep.subr.bf16.mxu0 0
    %2572 = vmatpush1.bf16.msra.mxu0 0
    %2573 = vmatprep.subr.bf16.mxu0 0
    %2574 = vmatpush1.bf16.msra.mxu0 0
    %2575 = vmatprep.subr.bf16.mxu0 0
    %2576 = vmatpush1.bf16.msra.mxu0 0
    %2577 = vmatprep.subr.bf16.mxu0 0
    %2578 = vmatpush1.bf16.msra.mxu0 0
    %2579 = vmatprep.subr.bf16.mxu0 0
    %2580 = vmatpush1.bf16.msra.mxu0 0
    %2581 = vmatprep.subr.bf16.mxu0 0
    %2582 = vmatpush1.bf16.msra.mxu0 0
    %2583 = vmatprep.subr.bf16.mxu0 0
    %2584 = vmatpush1.bf16.msra.mxu0 0
    %2585 = vmatprep.subr.bf16.mxu0 0
    %2586 = vmatpush1.bf16.msra.mxu0 0
    %2587 = vmatprep.subr.bf16.mxu0 0
    %2588 = vmatpush1.bf16.msra.mxu0 0
    %2589 = vmatprep.subr.bf16.mxu0 0
    %2590 = vmatpush1.bf16.msra.mxu0 0
    %2591 = vmatprep.mubr.bf16.mxu0 0
    %2592 = vmatmul.mubr.bf16.gmra.mrb[0].mxu0 %v2502
    %v2593 = vpop.f32.mrb[0].mxu0
    %v2594 = vadd.f32 %v2435, %v2593
    %v2595 = vpop.f32.mrb[0].mxu0
    %v2596 = vadd.f32 %v2437, %v2595
    %v2597 = vpop.f32.mrb[0].mxu0
    %v2598 = vadd.f32 %v2439, %v2597
    %v2599 = vpop.f32.mrb[0].mxu0
    %v2600 = vadd.f32 %v2441, %v2599
    %2601 = vmatprep.mubr.bf16.mxu0 0
    %2602 = vmatmul.mubr.bf16.gmra.mrb[0].mxu0 %v2504
    %v2603 = vpop.f32.mrb[0].mxu0
    %v2604 = vadd.f32 %v2445, %v2603
    %v2605 = vpop.f32.mrb[0].mxu0
    %v2606 = vadd.f32 %v2447, %v2605
    %v2607 = vpop.f32.mrb[0].mxu0
    %v2608 = vadd.f32 %v2449, %v2607
    %v2609 = vpop.f32.mrb[0].mxu0
    %v2610 = vadd.f32 %v2451, %v2609
    %2611 = vdwg.mxu0
    %2612 = vmatprep.subr.bf16.mxu0 0
    %2613 = vmatpush1.bf16.msra.mxu0 %v419
    %2614 = vmatprep.subr.bf16.mxu0 0
    %2615 = vmatpush1.bf16.msra.mxu0 %v447
    %2616 = vmatprep.subr.bf16.mxu0 0
    %2617 = vmatpush1.bf16.msra.mxu0 0
    %2618 = vmatprep.subr.bf16.mxu0 0
    %2619 = vmatpush1.bf16.msra.mxu0 0
    %2620 = vmatprep.subr.bf16.mxu0 0
    %2621 = vmatpush1.bf16.msra.mxu0 0
    %2622 = vmatprep.subr.bf16.mxu0 0
    %2623 = vmatpush1.bf16.msra.mxu0 0
    %2624 = vmatprep.subr.bf16.mxu0 0
    %2625 = vmatpush1.bf16.msra.mxu0 0
    %2626 = vmatprep.subr.bf16.mxu0 0
    %2627 = vmatpush1.bf16.msra.mxu0 0
    %2628 = vmatprep.subr.bf16.mxu0 0
    %2629 = vmatpush1.bf16.msra.mxu0 0
    %2630 = vmatprep.subr.bf16.mxu0 0
    %2631 = vmatpush1.bf16.msra.mxu0 0
    %2632 = vmatprep.subr.bf16.mxu0 0
    %2633 = vmatpush1.bf16.msra.mxu0 0
    %2634 = vmatprep.subr.bf16.mxu0 0
    %2635 = vmatpush1.bf16.msra.mxu0 0
    %2636 = vmatprep.subr.bf16.mxu0 0
    %2637 = vmatpush1.bf16.msra.mxu0 0
    %2638 = vmatprep.subr.bf16.mxu0 0
    %2639 = vmatpush1.bf16.msra.mxu0 0
    %2640 = vmatprep.subr.bf16.mxu0 0
    %2641 = vmatpush1.bf16.msra.mxu0 0
    %2642 = vmatprep.subr.bf16.mxu0 0
    %2643 = vmatpush1.bf16.msra.mxu0 0
    %2644 = vmatprep.mubr.bf16.mxu0 0
    %2645 = vmatmul.mubr.bf16.gmra.mrb[0].mxu0 %v2502
    %v2646 = vpop.f32.mrb[0].mxu0
    %v2647 = vadd.f32 %v2488, %v2646
    %v2648 = vpop.f32.mrb[0].mxu0
    %v2649 = vpop.f32.mrb[0].mxu0
    %v2650 = vadd.f32 %v2491, %v2649
    %v2651 = vpop.f32.mrb[0].mxu0
    %2652 = vmatprep.mubr.bf16.mxu0 0
    %2653 = vmatmul.mubr.bf16.gmra.mrb[0].mxu0 %v2504
    %v2654 = vpop.f32.mrb[0].mxu0
    %v2655 = vadd.f32 %v2496, %v2654
    %v2656 = vpop.f32.mrb[0].mxu0
    %v2657 = vpop.f32.mrb[0].mxu0
    %v2658 = vadd.f32 %v2499, %v2657
    %v2659 = vpop.f32.mrb[0].mxu0
    %2660 = vdwg.mxu0
    %v2661 = vadd.f32 %v2541, %v609
    %v2662 = vadd.f32 %v2543, %v613
    %v2663 = vadd.f32 %v2594, %v617
    %v2664 = vadd.f32 %v2596, %v621
    %v2665 = vadd.f32 %v2647, %v625
    %v2666 = vadd.f32 %v2545, %v609
    %v2667 = vadd.f32 %v2547, %v613
    %v2668 = vadd.f32 %v2598, %v617
    %v2669 = vadd.f32 %v2600, %v621
    %v2670 = vadd.f32 %v2650, %v625
    %v2671 = vadd.f32 %v2551, %v609
    %v2672 = vadd.f32 %v2553, %v613
    %v2673 = vadd.f32 %v2604, %v617
    %v2674 = vadd.f32 %v2606, %v621
    %v2675 = vadd.f32 %v2655, %v625
    %v2676 = vadd.f32 %v2555, %v609
    %v2677 = vadd.f32 %v2557, %v613
    %v2678 = vadd.f32 %v2608, %v617
    %v2679 = vadd.f32 %v2610, %v621
    %v2680 = vadd.f32 %v2658, %v625
    %v2681 = vmax.f32 %v2661, 0.0
    %v2682 = vmax.f32 %v2662, 0.0
    %v2683 = vmax.f32 %v2663, 0.0
    %v2684 = vmax.f32 %v2664, 0.0
    %v2685 = vmax.f32 %v2665, 0.0
    %v2686 = vmax.f32 %v2666, 0.0
    %v2687 = vmax.f32 %v2667, 0.0
    %v2688 = vmax.f32 %v2668, 0.0
    %v2689 = vmax.f32 %v2669, 0.0
    %v2690 = vmax.f32 %v2670, 0.0
    %v2691 = vmax.f32 %v2671, 0.0
    %v2692 = vmax.f32 %v2672, 0.0
    %v2693 = vmax.f32 %v2673, 0.0
    %v2694 = vmax.f32 %v2674, 0.0
    %v2695 = vmax.f32 %v2675, 0.0
    %v2696 = vmax.f32 %v2676, 0.0
    %v2697 = vmax.f32 %v2677, 0.0
    %v2698 = vmax.f32 %v2678, 0.0
    %v2699 = vmax.f32 %v2679, 0.0
    %v2700 = vmax.f32 %v2680, 0.0
    %2705 = vrot.lane.b32.xlu0 %v2681, 96
    %v2706 = vpop.permute.xlu0 %2705
    %2707 = vrot.lane.b32.xlu0 %v2686, 96
    %v2708 = vpop.permute.xlu0 %2707
    %2709 = vrot.lane.b32.xlu0 %v2691, 96
    %v2710 = vpop.permute.xlu0 %2709
    %2711 = vrot.lane.b32.xlu0 %v2696, 96
    %v2712 = vpop.permute.xlu0 %2711
    %v2717 = vmax.f32 %v2681, %v2706
    %v2718 = vmax.f32 %v2686, %v2708
    %v2719 = vmax.f32 %v2691, %v2710
    %v2720 = vmax.f32 %v2696, %v2712
    %2725 = vrot.lane.b32.xlu0 %v2682, 96
    %v2726 = vpop.permute.xlu0 %2725
    %2727 = vrot.lane.b32.xlu0 %v2687, 96
    %v2728 = vpop.permute.xlu0 %2727
    %2729 = vrot.lane.b32.xlu0 %v2692, 96
    %v2730 = vpop.permute.xlu0 %2729
    %2731 = vrot.lane.b32.xlu0 %v2697, 96
    %v2732 = vpop.permute.xlu0 %2731
    %v2737 = vmax.f32 %v2682, %v2726
    %v2738 = vmax.f32 %v2687, %v2728
    %v2739 = vmax.f32 %v2692, %v2730
    %v2740 = vmax.f32 %v2697, %v2732
    %2745 = vrot.lane.b32.xlu0 %v2683, 96
    %v2746 = vpop.permute.xlu0 %2745
    %2747 = vrot.lane.b32.xlu0 %v2688, 96
    %v2748 = vpop.permute.xlu0 %2747
    %2749 = vrot.lane.b32.xlu0 %v2693, 96
    %v2750 = vpop.permute.xlu0 %2749
    %2751 = vrot.lane.b32.xlu0 %v2698, 96
    %v2752 = vpop.permute.xlu0 %2751
    %v2757 = vmax.f32 %v2683, %v2746
    %v2758 = vmax.f32 %v2688, %v2748
    %v2759 = vmax.f32 %v2693, %v2750
    %v2760 = vmax.f32 %v2698, %v2752
    %2765 = vrot.lane.b32.xlu0 %v2684, 96
    %v2766 = vpop.permute.xlu0 %2765
    %2767 = vrot.lane.b32.xlu0 %v2689, 96
    %v2768 = vpop.permute.xlu0 %2767
    %2769 = vrot.lane.b32.xlu0 %v2694, 96
    %v2770 = vpop.permute.xlu0 %2769
    %2771 = vrot.lane.b32.xlu0 %v2699, 96
    %v2772 = vpop.permute.xlu0 %2771
    %v2777 = vmax.f32 %v2684, %v2766
    %v2778 = vmax.f32 %v2689, %v2768
    %v2779 = vmax.f32 %v2694, %v2770
    %v2780 = vmax.f32 %v2699, %v2772
    %2785 = vrot.lane.b32.xlu0 %v2685, 96
    %v2786 = vpop.permute.xlu0 %2785
    %2787 = vrot.lane.b32.xlu0 %v2690, 96
    %v2788 = vpop.permute.xlu0 %2787
    %2789 = vrot.lane.b32.xlu0 %v2695, 96
    %v2790 = vpop.permute.xlu0 %2789
    %2791 = vrot.lane.b32.xlu0 %v2700, 96
    %v2792 = vpop.permute.xlu0 %2791
    %v2797 = vmax.f32 %v2685, %v2786
    %v2798 = vmax.f32 %v2690, %v2788
    %v2799 = vmax.f32 %v2695, %v2790
    %v2800 = vmax.f32 %v2700, %v2792
    %2805 = vrot.lane.b32.xlu0 %v2717, 96
    %v2806 = vpop.permute.xlu0 %2805
    %2807 = vrot.lane.b32.xlu0 %v2718, 96
    %v2808 = vpop.permute.xlu0 %2807
    %2809 = vrot.lane.b32.xlu0 %v2719, 96
    %v2810 = vpop.permute.xlu0 %2809
    %2811 = vrot.lane.b32.xlu0 %v2720, 96
    %v2812 = vpop.permute.xlu0 %2811
    %2821 = vrot.lane.b32.xlu0 %v2737, 64
    %v2822 = vpop.permute.xlu0 %2821
    %2823 = vrot.lane.b32.xlu0 %v2738, 64
    %v2824 = vpop.permute.xlu0 %2823
    %2825 = vrot.lane.b32.xlu0 %v2739, 64
    %v2826 = vpop.permute.xlu0 %2825
    %2827 = vrot.lane.b32.xlu0 %v2740, 64
    %v2828 = vpop.permute.xlu0 %2827
    %2833 = vrot.lane.b32.xlu0 %v2737, 32
    %v2834 = vpop.permute.xlu0 %2833
    %2835 = vrot.lane.b32.xlu0 %v2738, 32
    %v2836 = vpop.permute.xlu0 %2835
    %2837 = vrot.lane.b32.xlu0 %v2739, 32
    %v2838 = vpop.permute.xlu0 %2837
    %2839 = vrot.lane.b32.xlu0 %v2740, 32
    %v2840 = vpop.permute.xlu0 %2839
    %2849 = vrot.lane.b32.xlu0 %v2757, 96
    %v2850 = vpop.permute.xlu0 %2849
    %2851 = vrot.lane.b32.xlu0 %v2758, 96
    %v2852 = vpop.permute.xlu0 %2851
    %2853 = vrot.lane.b32.xlu0 %v2759, 96
    %v2854 = vpop.permute.xlu0 %2853
    %2855 = vrot.lane.b32.xlu0 %v2760, 96
    %v2856 = vpop.permute.xlu0 %2855
    %2865 = vrot.lane.b32.xlu0 %v2777, 64
    %v2866 = vpop.permute.xlu0 %2865
    %2867 = vrot.lane.b32.xlu0 %v2778, 64
    %v2868 = vpop.permute.xlu0 %2867
    %2869 = vrot.lane.b32.xlu0 %v2779, 64
    %v2870 = vpop.permute.xlu0 %2869
    %2871 = vrot.lane.b32.xlu0 %v2780, 64
    %v2872 = vpop.permute.xlu0 %2871
    %2877 = vrot.lane.b32.xlu0 %v2777, 32
    %v2878 = vpop.permute.xlu0 %2877
    %2879 = vrot.lane.b32.xlu0 %v2778, 32
    %v2880 = vpop.permute.xlu0 %2879
    %2881 = vrot.lane.b32.xlu0 %v2779, 32
    %v2882 = vpop.permute.xlu0 %2881
    %2883 = vrot.lane.b32.xlu0 %v2780, 32
    %v2884 = vpop.permute.xlu0 %2883
    %v2889 = vsel %vm859, %v2717, %v2806
    %v2890 = vsel %vm859, %v2718, %v2808
    %v2891 = vsel %vm859, %v2719, %v2810
    %v2892 = vsel %vm859, %v2720, %v2812
    %v2893 = vsel %vm864, %v2889, %v2822
    %v2894 = vsel %vm864, %v2890, %v2824
    %v2895 = vsel %vm864, %v2891, %v2826
    %v2896 = vsel %vm864, %v2892, %v2828
    %v2897 = vsel %vm869, %v2893, %v2834
    %v2898 = vsel %vm869, %v2894, %v2836
    %v2899 = vsel %vm869, %v2895, %v2838
    %v2900 = vsel %vm869, %v2896, %v2840
    %v2901 = vsel %vm859, %v2757, %v2850
    %v2902 = vsel %vm859, %v2758, %v2852
    %v2903 = vsel %vm859, %v2759, %v2854
    %v2904 = vsel %vm859, %v2760, %v2856
    %v2905 = vsel %vm864, %v2901, %v2866
    %v2906 = vsel %vm864, %v2902, %v2868
    %v2907 = vsel %vm864, %v2903, %v2870
    %v2908 = vsel %vm864, %v2904, %v2872
    %v2909 = vsel %vm869, %v2905, %v2878
    %v2910 = vsel %vm869, %v2906, %v2880
    %v2911 = vsel %vm869, %v2907, %v2882
    %v2912 = vsel %vm869, %v2908, %v2884
    %v2916 = vrot.slane %v2897, 1
    %v2917 = vrot.slane %v2909, 1
    %v2918 = vrot.slane %v2797, 1
    %v2922 = vmax.f32 %v2897, %v2916
    %v2923 = vmax.f32 %v2909, %v2917
    %v2924 = vmax.f32 %v2797, %v2918
    %v2928 = vrot.slane %v2898, 1
    %v2929 = vrot.slane %v2910, 1
    %v2930 = vrot.slane %v2798, 1
    %v2934 = vmax.f32 %v2898, %v2928
    %v2935 = vmax.f32 %v2910, %v2929
    %v2936 = vmax.f32 %v2798, %v2930
    %v2940 = vrot.slane %v2899, 1
    %v2941 = vrot.slane %v2911, 1
    %v2942 = vrot.slane %v2799, 1
    %v2946 = vmax.f32 %v2899, %v2940
    %v2947 = vmax.f32 %v2911, %v2941
    %v2948 = vmax.f32 %v2799, %v2942
    %v2952 = vrot.slane %v2900, 1
    %v2953 = vrot.slane %v2912, 1
    %v2954 = vrot.slane %v2800, 1
    %v2958 = vmax.f32 %v2900, %v2952
    %v2959 = vmax.f32 %v2912, %v2953
    %v2960 = vmax.f32 %v2800, %v2954
    %v2964 = vrot.slane %v2922, 1
    %v2965 = vrot.slane %v2923, 1
    %v2966 = vrot.slane %v2924, 1
    %v2970 = vrot.slane %v2922, 2
    %v2971 = vrot.slane %v2923, 2
    %v2972 = vrot.slane %v2924, 2
    %v2976 = vrot.slane %v2922, 3
    %v2977 = vrot.slane %v2923, 3
    %v2978 = vrot.slane %v2924, 3
    %v2985 = vrot.slane %v2934, 4
    %v2986 = vrot.slane %v2935, 4
    %v2987 = vrot.slane %v2936, 4
    %v2991 = vrot.slane %v2934, 5
    %v2992 = vrot.slane %v2935, 5
    %v2993 = vrot.slane %v2936, 5
    %v2997 = vrot.slane %v2934, 6
    %v2998 = vrot.slane %v2935, 6
    %v2999 = vrot.slane %v2936, 6
    %v3003 = vrot.slane %v2934, 7
    %v3004 = vrot.slane %v2935, 7
    %v3005 = vrot.slane %v2936, 7
    %v3012 = vrot.slane %v2946, 1
    %v3013 = vrot.slane %v2947, 1
    %v3014 = vrot.slane %v2948, 1
    %v3018 = vrot.slane %v2946, 2
    %v3019 = vrot.slane %v2947, 2
    %v3020 = vrot.slane %v2948, 2
    %v3024 = vrot.slane %v2946, 3
    %v3025 = vrot.slane %v2947, 3
    %v3026 = vrot.slane %v2948, 3
    %v3033 = vrot.slane %v2958, 4
    %v3034 = vrot.slane %v2959, 4
    %v3035 = vrot.slane %v2960, 4
    %v3039 = vrot.slane %v2958, 5
    %v3040 = vrot.slane %v2959, 5
    %v3041 = vrot.slane %v2960, 5
    %v3045 = vsel %vm1018, %v2922, %v2964
    %v3046 = vsel %vm1018, %v2923, %v2965
    %v3047 = vsel %vm1018, %v2924, %v2966
    %v3048 = vsel %vm220, %v3045, %v2970
    %v3049 = vsel %vm220, %v3046, %v2971
    %v3050 = vsel %vm220, %v3047, %v2972
    %v3051 = vsel %vm1025, %v3048, %v2976
    %v3052 = vsel %vm1025, %v3049, %v2977
    %v3053 = vsel %vm1025, %v3050, %v2978
    %v3054 = vsel %vm1029, %v3051, %v2985
    %v3055 = vsel %vm1029, %v3052, %v2986
    %v3056 = vsel %vm1029, %v3053, %v2987
    %v3057 = vsel %vm1033, %v3054, %v2991
    %v3058 = vsel %vm1033, %v3055, %v2992
    %v3059 = vsel %vm1033, %v3056, %v2993
    %v3060 = vsel %vm1037, %v3057, %v2997
    %v3061 = vsel %vm1037, %v3058, %v2998
    %v3062 = vsel %vm1037, %v3059, %v2999
    %v3063 = vsel %vm1041, %v3060, %v3003
    %v3064 = vsel %vm1041, %v3061, %v3004
    %v3065 = vsel %vm1041, %v3062, %v3005
    %v3066 = vsel %vm1018, %v2946, %v3012
    %v3067 = vsel %vm1018, %v2947, %v3013
    %v3068 = vsel %vm1018, %v2948, %v3014
    %v3069 = vsel %vm220, %v3066, %v3018
    %v3070 = vsel %vm220, %v3067, %v3019
    %v3071 = vsel %vm220, %v3068, %v3020
    %v3072 = vsel %vm1025, %v3069, %v3024
    %v3073 = vsel %vm1025, %v3070, %v3025
    %v3074 = vsel %vm1025, %v3071, %v3026
    %v3075 = vsel %vm1029, %v3072, %v3033
    %v3076 = vsel %vm1029, %v3073, %v3034
    %v3077 = vsel %vm1029, %v3074, %v3035
    %v3078 = vsel %vm1033, %v3075, %v3039
    %v3079 = vsel %vm1033, %v3076, %v3040
    %v3080 = vsel %vm1033, %v3077, %v3041
    %v3083 = vrot.slane %v3063, 1
    %v3084 = vrot.slane %v3078, 1
    %v3085 = vsel %vm1041, %v3083, %v3084
    %3086 = vrot.lane.b32.xlu0 %v3085, 32
    %v3087 = vpop.permute.xlu0 %3086
    %3088 = vrot.lane.b32.xlu0 %v3084, 32
    %v3089 = vpop.permute.xlu0 %3088
    %v3092 = vrot.slane %v3063, 2
    %v3093 = vrot.slane %v3078, 2
    %v3094 = vsel %vm1037, %v3092, %v3093
    %3095 = vrot.lane.b32.xlu0 %v3094, 64
    %v3096 = vpop.permute.xlu0 %3095
    %3097 = vrot.lane.b32.xlu0 %v3093, 64
    %v3098 = vpop.permute.xlu0 %3097
    %3101 = vrot.lane.b32.xlu0 %v3063, 64
    %v3102 = vpop.permute.xlu0 %3101
    %3103 = vrot.lane.b32.xlu0 %v3078, 64
    %v3104 = vpop.permute.xlu0 %3103
    %3107 = vrot.lane.b32.xlu0 %v3085, 96
    %v3108 = vpop.permute.xlu0 %3107
    %3109 = vrot.lane.b32.xlu0 %v3084, 96
    %v3110 = vpop.permute.xlu0 %3109
    %v3115 = vsel %vm859, %v3063, %v3087
    %v3116 = vsel %vm859, %v3078, %v3089
    %v3117 = vsel %vm864, %v3115, %v3096
    %v3118 = vsel %vm864, %v3116, %v3098
    %v3119 = vsel %vm869, %v3117, %v3102
    %v3120 = vsel %vm869, %v3118, %v3104
    %v3121 = vsel %vm859, %v3108, %v3094
    %v3122 = vsel %vm859, %v3110, %v3093
    %v3123 = vsel %vm864, %v3121, %v3063
    %v3124 = vsel %vm864, %v3122, %v3078
    %v3125 = vsel %vm869, %v3123, %v3087
    %v3126 = vsel %vm869, %v3124, %v3089
    %v3127 = vsel %vm859, %v3096, %v3102
    %v3128 = vsel %vm859, %v3098, %v3104
    %v3129 = vsel %vm864, %v3127, %v3108
    %v3130 = vsel %vm864, %v3128, %v3110
    %v3131 = vsel %vm869, %v3129, %v3094
    %v3132 = vsel %vm869, %v3130, %v3093
    %3133 = vrot.lane.b32.xlu0 %v3063, 96
    %v3134 = vpop.permute.xlu0 %3133
    %3135 = vrot.lane.b32.xlu0 %v3078, 96
    %v3136 = vpop.permute.xlu0 %3135
    %3141 = vrot.lane.b32.xlu0 %v3094, 32
    %v3142 = vpop.permute.xlu0 %3141
    %3143 = vrot.lane.b32.xlu0 %v3093, 32
    %v3144 = vpop.permute.xlu0 %3143
    %3147 = vrot.lane.b32.xlu0 %v3063, 32
    %v3148 = vpop.permute.xlu0 %3147
    %3149 = vrot.lane.b32.xlu0 %v3078, 32
    %v3150 = vpop.permute.xlu0 %3149
    %3153 = vrot.lane.b32.xlu0 %v3085, 64
    %v3154 = vpop.permute.xlu0 %3153
    %3155 = vrot.lane.b32.xlu0 %v3084, 64
    %v3156 = vpop.permute.xlu0 %3155
    %3159 = vrot.lane.b32.xlu0 %v3094, 96
    %v3160 = vpop.permute.xlu0 %3159
    %3161 = vrot.lane.b32.xlu0 %v3093, 96
    %v3162 = vpop.permute.xlu0 %3161
    %3167 = vrot.lane.b32.xlu0 %v3064, 32
    %v3168 = vpop.permute.xlu0 %3167
    %3169 = vrot.lane.b32.xlu0 %v3079, 32
    %v3170 = vpop.permute.xlu0 %3169
    %v3173 = vrot.slane %v3064, 1
    %v3174 = vrot.slane %v3079, 1
    %v3175 = vsel %vm1041, %v3173, %v3174
    %3176 = vrot.lane.b32.xlu0 %v3175, 64
    %v3177 = vpop.permute.xlu0 %3176
    %3178 = vrot.lane.b32.xlu0 %v3174, 64
    %v3179 = vpop.permute.xlu0 %3178
    %v3182 = vrot.slane %v3064, 2
    %v3183 = vrot.slane %v3079, 2
    %v3184 = vsel %vm1037, %v3182, %v3183
    %3185 = vrot.lane.b32.xlu0 %v3184, 96
    %v3186 = vpop.permute.xlu0 %3185
    %3187 = vrot.lane.b32.xlu0 %v3183, 96
    %v3188 = vpop.permute.xlu0 %3187
    %v3191 = vsel %vm859, %v3134, %v3085
    %v3192 = vsel %vm859, %v3136, %v3084
    %v3193 = vsel %vm864, %v3191, %v3142
    %v3194 = vsel %vm864, %v3192, %v3144
    %v3195 = vsel %vm869, %v3193, %v3148
    %v3196 = vsel %vm869, %v3194, %v3150
    %v3197 = vsel %vm859, %v3154, %v3160
    %v3198 = vsel %vm859, %v3156, %v3162
    %v3199 = vsel %vm864, %v3197, %v3134
    %v3200 = vsel %vm864, %v3198, %v3136
    %v3201 = vsel %vm869, %v3199, %v3085
    %v3202 = vsel %vm869, %v3200, %v3084
    %v3203 = vsel %vm859, %v3142, %v3168
    %v3204 = vsel %vm859, %v3144, %v3170
    %v3205 = vsel %vm864, %v3203, %v3177
    %v3206 = vsel %vm864, %v3204, %v3179
    %v3207 = vsel %vm869, %v3205, %v3186
    %v3208 = vsel %vm869, %v3206, %v3188
    %3209 = vrot.lane.b32.xlu0 %v3064, 64
    %v3210 = vpop.permute.xlu0 %3209
    %3211 = vrot.lane.b32.xlu0 %v3079, 64
    %v3212 = vpop.permute.xlu0 %3211
    %3215 = vrot.lane.b32.xlu0 %v3175, 96
    %v3216 = vpop.permute.xlu0 %3215
    %3217 = vrot.lane.b32.xlu0 %v3174, 96
    %v3218 = vpop.permute.xlu0 %3217
    %3223 = vrot.lane.b32.xlu0 %v3175, 32
    %v3224 = vpop.permute.xlu0 %3223
    %3225 = vrot.lane.b32.xlu0 %v3174, 32
    %v3226 = vpop.permute.xlu0 %3225
    %3229 = vrot.lane.b32.xlu0 %v3184, 64
    %v3230 = vpop.permute.xlu0 %3229
    %3231 = vrot.lane.b32.xlu0 %v3183, 64
    %v3232 = vpop.permute.xlu0 %3231
    %v3235 = vsel %vm859, %v3102, %v3108
    %v3236 = vsel %vm859, %v3104, %v3110
    %v3237 = vsel %vm864, %v3235, %v3094
    %v3238 = vsel %vm864, %v3236, %v3093
    %v3239 = vsel %vm869, %v3237, %v3063
    %v3240 = vsel %vm869, %v3238, %v3078
    %v3241 = vsel %vm859, %v3087, %v3096
    %v3242 = vsel %vm859, %v3089, %v3098
    %v3243 = vsel %vm864, %v3241, %v3210
    %v3244 = vsel %vm864, %v3242, %v3212
    %v3245 = vsel %vm869, %v3243, %v3216
    %v3246 = vsel %vm869, %v3244, %v3218
    %v3247 = vsel %vm859, %v3184, %v3064
    %v3248 = vsel %vm859, %v3183, %v3079
    %v3249 = vsel %vm864, %v3247, %v3224
    %v3250 = vsel %vm864, %v3248, %v3226
    %v3251 = vsel %vm869, %v3249, %v3230
    %v3252 = vsel %vm869, %v3250, %v3232
    %3253 = vrot.lane.b32.xlu0 %v3064, 96
    %v3254 = vpop.permute.xlu0 %3253
    %3255 = vrot.lane.b32.xlu0 %v3079, 96
    %v3256 = vpop.permute.xlu0 %3255
    %3261 = vrot.lane.b32.xlu0 %v3184, 32
    %v3262 = vpop.permute.xlu0 %3261
    %3263 = vrot.lane.b32.xlu0 %v3183, 32
    %v3264 = vpop.permute.xlu0 %3263
    %v3267 = vsel %vm859, %v3148, %v3154
    %v3268 = vsel %vm859, %v3150, %v3156
    %v3269 = vsel %vm864, %v3267, %v3160
    %v3270 = vsel %vm864, %v3268, %v3162
    %v3271 = vsel %vm869, %v3269, %v3254
    %v3272 = vsel %vm869, %v3270, %v3256
    %v3273 = vsel %vm859, %v3175, %v3262
    %v3274 = vsel %vm859, %v3174, %v3264
    %v3275 = vsel %vm864, %v3273, %v3168
    %v3276 = vsel %vm864, %v3274, %v3170
    %v3277 = vsel %vm869, %v3275, %v3177
    %v3278 = vsel %vm869, %v3276, %v3179
    %v3279 = vsel %vm859, %v3186, %v3254
    %v3280 = vsel %vm859, %v3188, %v3256
    %v3281 = vsel %vm864, %v3279, %v3175
    %v3282 = vsel %vm864, %v3280, %v3174
    %v3283 = vsel %vm869, %v3281, %v3262
    %v3284 = vsel %vm869, %v3282, %v3264
    %v3285 = vsel %vm859, %v3064, %v3224
    %v3286 = vsel %vm859, %v3079, %v3226
    %v3287 = vsel %vm864, %v3285, %v3230
    %v3288 = vsel %vm864, %v3286, %v3232
    %v3289 = vsel %vm869, %v3287, %v3210
    %v3290 = vsel %vm869, %v3288, %v3212
    %v3291 = vsel %vm859, %v3216, %v3184
    %v3292 = vsel %vm859, %v3218, %v3183
    %v3293 = vsel %vm864, %v3291, %v3064
    %v3294 = vsel %vm864, %v3292, %v3079
    %v3295 = vsel %vm869, %v3293, %v3224
    %v3296 = vsel %vm869, %v3294, %v3226
    %v3297 = vsel %vm859, %v3230, %v3210
    %v3298 = vsel %vm859, %v3232, %v3212
    %v3299 = vsel %vm864, %v3297, %v3216
    %v3300 = vsel %vm864, %v3298, %v3218
    %v3301 = vsel %vm869, %v3299, %v3184
    %v3302 = vsel %vm869, %v3300, %v3183
    %3305 = vrot.lane.b32.xlu0 %v3065, 32
    %v3306 = vpop.permute.xlu0 %3305
    %3307 = vrot.lane.b32.xlu0 %v3080, 32
    %v3308 = vpop.permute.xlu0 %3307
    %v3311 = vrot.slane %v3065, 1
    %v3312 = vrot.slane %v3080, 1
    %v3313 = vsel %vm1041, %v3311, %v3312
    %3314 = vrot.lane.b32.xlu0 %v3313, 64
    %v3315 = vpop.permute.xlu0 %3314
    %3316 = vrot.lane.b32.xlu0 %v3312, 64
    %v3317 = vpop.permute.xlu0 %3316
    %v3320 = vrot.slane %v3065, 2
    %v3321 = vrot.slane %v3080, 2
    %v3322 = vsel %vm1037, %v3320, %v3321
    %3323 = vrot.lane.b32.xlu0 %v3322, 96
    %v3324 = vpop.permute.xlu0 %3323
    %3325 = vrot.lane.b32.xlu0 %v3321, 96
    %v3326 = vpop.permute.xlu0 %3325
    %v3329 = vsel %vm859, %v3254, %v3175
    %v3330 = vsel %vm859, %v3256, %v3174
    %v3331 = vsel %vm864, %v3329, %v3262
    %v3332 = vsel %vm864, %v3330, %v3264
    %v3333 = vsel %vm869, %v3331, %v3168
    %v3334 = vsel %vm869, %v3332, %v3170
    %v3335 = vsel %vm859, %v3177, %v3186
    %v3336 = vsel %vm859, %v3179, %v3188
    %v3337 = vsel %vm864, %v3335, %v3254
    %v3338 = vsel %vm864, %v3336, %v3256
    %v3339 = vsel %vm869, %v3337, %v3175
    %v3340 = vsel %vm869, %v3338, %v3174
    %v3341 = vsel %vm859, %v3262, %v3306
    %v3342 = vsel %vm859, %v3264, %v3308
    %v3343 = vsel %vm864, %v3341, %v3315
    %v3344 = vsel %vm864, %v3342, %v3317
    %v3345 = vsel %vm869, %v3343, %v3324
    %v3346 = vsel %vm869, %v3344, %v3326
    %v3353 = vrot.slane %v3195, 4
    %v3354 = vrot.slane %v3201, 4
    %v3355 = vrot.slane %v3207, 4
    %v3356 = vrot.slane %v3196, 4
    %v3357 = vsel %vm1029, %v3353, %v3356
    %v3358 = vrot.slane %v3202, 4
    %v3359 = vsel %vm1029, %v3354, %v3358
    %v3360 = vrot.slane %v3208, 4
    %v3361 = vsel %vm1029, %v3355, %v3360
    %v3374 = vrot.slane %v3271, 4
    %v3375 = vrot.slane %v3277, 4
    %v3376 = vrot.slane %v3283, 4
    %v3377 = vrot.slane %v3272, 4
    %v3378 = vsel %vm1029, %v3374, %v3377
    %v3379 = vrot.slane %v3278, 4
    %v3380 = vsel %vm1029, %v3375, %v3379
    %v3381 = vrot.slane %v3284, 4
    %v3382 = vsel %vm1029, %v3376, %v3381
    %v3395 = vrot.slane %v3333, 4
    %v3396 = vrot.slane %v3339, 4
    %v3397 = vrot.slane %v3345, 4
    %v3398 = vrot.slane %v3334, 4
    %v3399 = vsel %vm1029, %v3395, %v3398
    %v3400 = vrot.slane %v3340, 4
    %v3401 = vsel %vm1029, %v3396, %v3400
    %v3402 = vrot.slane %v3346, 4
    %v3403 = vsel %vm1029, %v3397, %v3402
    %v3410 = vsel %vm1029, %v3120, %v3353
    %v3411 = vsel %vm1029, %v3126, %v3354
    %v3412 = vsel %vm1029, %v3132, %v3355
    %v3413 = vsel %vm1029, %v3240, %v3374
    %v3414 = vsel %vm1029, %v3246, %v3375
    %v3415 = vsel %vm1029, %v3252, %v3376
    %v3416 = vsel %vm1029, %v3290, %v3395
    %v3417 = vsel %vm1029, %v3296, %v3396
    %v3418 = vsel %vm1029, %v3302, %v3397
    %v3419 = vpack.c.bf16 %v3410, %v3119
    %v3420 = vpack.c.bf16 %v3411, %v3125
    %v3421 = vpack.c.bf16 %v3412, %v3131
    %v3422 = vpack.c.bf16 %v3239, %v3357
    %v3423 = vpack.c.bf16 %v3245, %v3359
    %v3424 = vpack.c.bf16 %v3251, %v3361
    %v3425 = vpack.c.bf16 %v3378, %v3413
    %v3426 = vpack.c.bf16 %v3380, %v3414
    %v3427 = vpack.c.bf16 %v3382, %v3415
    %v3428 = vpack.c.bf16 %v3416, %v3289
    %v3429 = vpack.c.bf16 %v3417, %v3295
    %v3430 = vpack.c.bf16 %v3418, %v3301
    %v3431 = vpack.c.bf16 %v3399, %v3399
    %v3432 = vpack.c.bf16 %v3401, %v3401
    %v3433 = vpack.c.bf16 %v3403, %v3403
    %3434 = vmatprep.subr.bf16.mxu0 0
    %3435 = vmatpush1.bf16.msra.mxu0 %v1564
    %3436 = vmatprep.subr.bf16.mxu0 0
    %3437 = vmatpush1.bf16.msra.mxu0 %v1565
    %3438 = vmatprep.subr.bf16.mxu0 0
    %3439 = vmatpush1.bf16.msra.mxu0 %v1566
    %3440 = vmatprep.subr.bf16.mxu0 0
    %3441 = vmatpush1.bf16.msra.mxu0 %v1567
    %3442 = vmatprep.subr.bf16.mxu0 0
    %3443 = vmatpush1.bf16.msra.mxu0 %v1568
    %3444 = vmatprep.subr.bf16.mxu0 0
    %3445 = vmatpush1.bf16.msra.mxu0 %v1569
    %3446 = vmatprep.subr.bf16.mxu0 0
    %3447 = vmatpush1.bf16.msra.mxu0 %v1570
    %3448 = vmatprep.subr.bf16.mxu0 0
    %3449 = vmatpush1.bf16.msra.mxu0 %v1571
    %3450 = vmatprep.subr.bf16.mxu0 0
    %3451 = vmatpush1.bf16.msra.mxu0 %v1572
    %3452 = vmatprep.subr.bf16.mxu0 0
    %3453 = vmatpush1.bf16.msra.mxu0 %v1573
    %3454 = vmatprep.subr.bf16.mxu0 0
    %3455 = vmatpush1.bf16.msra.mxu0 %v1574
    %3456 = vmatprep.subr.bf16.mxu0 0
    %3457 = vmatpush1.bf16.msra.mxu0 %v1575
    %3458 = vmatprep.subr.bf16.mxu0 0
    %3459 = vmatpush1.bf16.msra.mxu0 %v1576
    %3460 = vmatprep.subr.bf16.mxu0 0
    %3461 = vmatpush1.bf16.msra.mxu0 %v1577
    %3462 = vmatprep.subr.bf16.mxu0 0
    %3463 = vmatpush1.bf16.msra.mxu0 %v1578
    %3464 = vmatprep.subr.bf16.mxu0 0
    %3465 = vmatpush1.bf16.msra.mxu0 %v1579
    %3466 = vmatprep.mubr.bf16.mxu0 %v3420
    %3467 = vmatmul.mubr.bf16.gmra.mrb[0].mxu0 %v3419
    %v3468 = vpop.f32.mrb[0].mxu0
    %v3469 = vadd.f32 %v1466, %v3468
    %v3470 = vpop.f32.mrb[0].mxu0
    %v3471 = vpop.f32.mrb[0].mxu0
    %v3472 = vadd.f32 %v1466, %v3471
    %v3473 = vpop.f32.mrb[0].mxu0
    %3474 = vmatprep.mubr.bf16.mxu0 %v3423
    %3475 = vmatmul.mubr.bf16.gmra.mrb[0].mxu0 %v3422
    %v3476 = vpop.f32.mrb[0].mxu0
    %v3477 = vadd.f32 %v1466, %v3476
    %v3478 = vpop.f32.mrb[0].mxu0
    %v3479 = vpop.f32.mrb[0].mxu0
    %v3480 = vadd.f32 %v1466, %v3479
    %v3481 = vpop.f32.mrb[0].mxu0
    %3482 = vmatprep.mubr.bf16.mxu0 %v3426
    %3483 = vmatmul.mubr.bf16.gmra.mrb[0].mxu0 %v3425
    %v3484 = vpop.f32.mrb[0].mxu0
    %v3485 = vadd.f32 %v1466, %v3484
    %v3486 = vpop.f32.mrb[0].mxu0
    %v3487 = vpop.f32.mrb[0].mxu0
    %v3488 = vadd.f32 %v1466, %v3487
    %v3489 = vpop.f32.mrb[0].mxu0
    %3490 = vmatprep.mubr.bf16.mxu0 %v3429
    %3491 = vmatmul.mubr.bf16.gmra.mrb[0].mxu0 %v3428
    %v3492 = vpop.f32.mrb[0].mxu0
    %v3493 = vadd.f32 %v1466, %v3492
    %v3494 = vpop.f32.mrb[0].mxu0
    %v3495 = vpop.f32.mrb[0].mxu0
    %v3496 = vadd.f32 %v1466, %v3495
    %v3497 = vpop.f32.mrb[0].mxu0
    %3498 = vmatprep.mubr.bf16.mxu0 %v3432
    %3499 = vmatmul.mubr.bf16.gmra.mrb[0].mxu0 %v3431
    %v3500 = vpop.f32.mrb[0].mxu0
    %v3501 = vadd.f32 %v1466, %v3500
    %v3502 = vpop.f32.mrb[0].mxu0
    %v3503 = vpop.f32.mrb[0].mxu0
    %v3504 = vpop.f32.mrb[0].mxu0
    %3505 = vdwg.mxu0
    %3506 = vmatprep.subr.bf16.mxu0 0
    %3507 = vmatpush1.bf16.msra.mxu0 %v1580
    %3508 = vmatprep.subr.bf16.mxu0 0
    %3509 = vmatpush1.bf16.msra.mxu0 %v1581
    %3510 = vmatprep.subr.bf16.mxu0 0
    %3511 = vmatpush1.bf16.msra.mxu0 %v1582
    %3512 = vmatprep.subr.bf16.mxu0 0
    %3513 = vmatpush1.bf16.msra.mxu0 %v1583
    %3514 = vmatprep.subr.bf16.mxu0 0
    %3515 = vmatpush1.bf16.msra.mxu0 %v1584
    %3516 = vmatprep.subr.bf16.mxu0 0
    %3517 = vmatpush1.bf16.msra.mxu0 %v1585
    %3518 = vmatprep.subr.bf16.mxu0 0
    %3519 = vmatpush1.bf16.msra.mxu0 %v1586
    %3520 = vmatprep.subr.bf16.mxu0 0
    %3521 = vmatpush1.bf16.msra.mxu0 %v1587
    %3522 = vmatprep.subr.bf16.mxu0 0
    %3523 = vmatpush1.bf16.msra.mxu0 0
    %3524 = vmatprep.subr.bf16.mxu0 0
    %3525 = vmatpush1.bf16.msra.mxu0 0
    %3526 = vmatprep.subr.bf16.mxu0 0
    %3527 = vmatpush1.bf16.msra.mxu0 0
    %3528 = vmatprep.subr.bf16.mxu0 0
    %3529 = vmatpush1.bf16.msra.mxu0 0
    %3530 = vmatprep.subr.bf16.mxu0 0
    %3531 = vmatpush1.bf16.msra.mxu0 0
    %3532 = vmatprep.subr.bf16.mxu0 0
    %3533 = vmatpush1.bf16.msra.mxu0 0
    %3534 = vmatprep.subr.bf16.mxu0 0
    %3535 = vmatpush1.bf16.msra.mxu0 0
    %3536 = vmatprep.subr.bf16.mxu0 0
    %3537 = vmatpush1.bf16.msra.mxu0 0
    %3538 = vmatprep.mubr.bf16.mxu0 0
    %3539 = vmatmul.mubr.bf16.gmra.mrb[0].mxu0 %v3421
    %v3540 = vpop.f32.mrb[0].mxu0
    %v3541 = vadd.f32 %v3469, %v3540
    %v3542 = vpop.f32.mrb[0].mxu0
    %v3543 = vpop.f32.mrb[0].mxu0
    %v3544 = vadd.f32 %v3472, %v3543
    %v3545 = vpop.f32.mrb[0].mxu0
    %3546 = vmatprep.mubr.bf16.mxu0 0
    %3547 = vmatmul.mubr.bf16.gmra.mrb[0].mxu0 %v3424
    %v3548 = vpop.f32.mrb[0].mxu0
    %v3549 = vadd.f32 %v3477, %v3548
    %v3550 = vpop.f32.mrb[0].mxu0
    %v3551 = vpop.f32.mrb[0].mxu0
    %v3552 = vadd.f32 %v3480, %v3551
    %v3553 = vpop.f32.mrb[0].mxu0
    %3554 = vmatprep.mubr.bf16.mxu0 0
    %3555 = vmatmul.mubr.bf16.gmra.mrb[0].mxu0 %v3427
    %v3556 = vpop.f32.mrb[0].mxu0
    %v3557 = vadd.f32 %v3485, %v3556
    %v3558 = vpop.f32.mrb[0].mxu0
    %v3559 = vpop.f32.mrb[0].mxu0
    %v3560 = vadd.f32 %v3488, %v3559
    %v3561 = vpop.f32.mrb[0].mxu0
    %3562 = vmatprep.mubr.bf16.mxu0 0
    %3563 = vmatmul.mubr.bf16.gmra.mrb[0].mxu0 %v3430
    %v3564 = vpop.f32.mrb[0].mxu0
    %v3565 = vadd.f32 %v3493, %v3564
    %v3566 = vpop.f32.mrb[0].mxu0
    %v3567 = vpop.f32.mrb[0].mxu0
    %v3568 = vadd.f32 %v3496, %v3567
    %v3569 = vpop.f32.mrb[0].mxu0
    %3570 = vmatprep.mubr.bf16.mxu0 0
    %3571 = vmatmul.mubr.bf16.gmra.mrb[0].mxu0 %v3433
    %v3572 = vpop.f32.mrb[0].mxu0
    %v3573 = vadd.f32 %v3501, %v3572
    %v3574 = vpop.f32.mrb[0].mxu0
    %v3575 = vpop.f32.mrb[0].mxu0
    %v3576 = vpop.f32.mrb[0].mxu0
    %3577 = vdwg.mxu0
    %v3578 = vmax.f32 %v3541, 0.0
    %v3579 = vmax.f32 %v3544, 0.0
    %v3580 = vmax.f32 %v3549, 0.0
    %v3581 = vmax.f32 %v3552, 0.0
    %v3582 = vmax.f32 %v3557, 0.0
    %v3583 = vmax.f32 %v3560, 0.0
    %v3584 = vmax.f32 %v3565, 0.0
    %v3585 = vmax.f32 %v3568, 0.0
    %v3586 = vmax.f32 %v3573, 0.0
    %v3589 = vrot.slane %v3579, 4
    %v3590 = vrot.slane %v3580, 4
    %v3591 = vsel %vm1029, %v3589, %v3590
    %v3594 = vmax.f32 %v3578, %v3591
    %v3595 = vmax.f32 %v3579, %v3590
    %v3597 = vrot.slane %v3594, 1
    %v3599 = vmax.f32 %v3594, %v3597
    %v3601 = vrot.slane %v3595, 1
    %v3603 = vmax.f32 %v3595, %v3601
    %v3605 = vrot.slane %v3599, 1
    %v3607 = vrot.slane %v3599, 2
    %v3609 = vrot.slane %v3599, 3
    %v3612 = vrot.slane %v3603, 4
    %v3614 = vrot.slane %v3603, 5
    %v3616 = vsel %vm1018, %v3599, %v3605
    %v3617 = vsel %vm220, %v3616, %v3607
    %v3618 = vsel %vm1025, %v3617, %v3609
    %v3619 = vsel %vm1029, %v3618, %v3612
    %v3620 = vsel %vm1033, %v3619, %v3614
    %v3623 = vrot.slane %v3582, 4
    %v3624 = vrot.slane %v3583, 4
    %v3625 = vsel %vm1029, %v3623, %v3624
    %v3628 = vmax.f32 %v3581, %v3625
    %v3629 = vmax.f32 %v3582, %v3624
    %v3631 = vrot.slane %v3628, 1
    %v3633 = vmax.f32 %v3628, %v3631
    %v3635 = vrot.slane %v3629, 1
    %v3637 = vmax.f32 %v3629, %v3635
    %v3639 = vrot.slane %v3633, 1
    %v3641 = vrot.slane %v3633, 2
    %v3643 = vrot.slane %v3633, 3
    %v3646 = vrot.slane %v3637, 4
    %v3648 = vrot.slane %v3637, 5
    %v3650 = vsel %vm1018, %v3633, %v3639
    %v3651 = vsel %vm220, %v3650, %v3641
    %v3652 = vsel %vm1025, %v3651, %v3643
    %v3653 = vsel %vm1029, %v3652, %v3646
    %v3654 = vsel %vm1033, %v3653, %v3648
    %v3657 = vrot.slane %v3585, 4
    %v3658 = vrot.slane %v3586, 4
    %v3659 = vsel %vm1029, %v3657, %v3658
    %v3662 = vmax.f32 %v3584, %v3659
    %v3663 = vmax.f32 %v3585, %v3658
    %v3665 = vrot.slane %v3662, 1
    %v3667 = vmax.f32 %v3662, %v3665
    %v3669 = vrot.slane %v3663, 1
    %v3671 = vmax.f32 %v3663, %v3669
    %v3673 = vrot.slane %v3667, 1
    %v3675 = vrot.slane %v3667, 2
    %v3677 = vrot.slane %v3667, 3
    %v3680 = vrot.slane %v3671, 4
    %v3682 = vrot.slane %v3671, 5
    %v3684 = vsel %vm1018, %v3667, %v3673
    %v3685 = vsel %vm220, %v3684, %v3675
    %v3686 = vsel %vm1025, %v3685, %v3677
    %v3687 = vsel %vm1029, %v3686, %v3680
    %v3688 = vsel %vm1033, %v3687, %v3682
    %v3690 = vrot.slane %v3620, 1
    %3691 = vrot.lane.b32.xlu0 %v3690, 64
    %v3692 = vpop.permute.xlu0 %3691
    %v3694 = vrot.slane %v3620, 2
    %3697 = vrot.lane.b32.xlu0 %v3654, 64
    %v3698 = vpop.permute.xlu0 %3697
    %v3700 = vrot.slane %v3654, 1
    %v3702 = vrot.slane %v3654, 2
    %3703 = vrot.lane.b32.xlu0 %v3702, 64
    %v3704 = vpop.permute.xlu0 %3703
    %v3707 = vrot.slane %v3688, 1
    %3708 = vrot.lane.b32.xlu0 %v3707, 64
    %v3709 = vpop.permute.xlu0 %3708
    %v3711 = vrot.slane %v3688, 2
    %v3713 = vsel %vm864, %v3620, %v3692
    %v3714 = vsel %vm864, %v3694, %v3698
    %v3715 = vsel %vm864, %v3700, %v3704
    %v3716 = vsel %vm864, %v3688, %v3709
    %v3717 = vpack.c.bf16 %v3713, %v3713
    %v3718 = vpack.c.bf16 %v3714, %v3714
    %v3719 = vpack.c.bf16 %v3715, %v3715
    %v3720 = vpack.c.bf16 %v3716, %v3716
    %v3721 = vpack.c.bf16 %v3711, %v3711
    %v3723 = vsel %vm864, %v3721, 0
    %3725 = vmatprep.subr.bf16.mxu0 0
    %3726 = vmatpush1.bf16.msra.mxu0 %v2123
    %3727 = vmatprep.subr.bf16.mxu0 0
    %3728 = vmatpush1.bf16.msra.mxu0 %v2124
    %3729 = vmatprep.subr.bf16.mxu0 0
    %3730 = vmatpush1.bf16.msra.mxu0 %v2125
    %3731 = vmatprep.subr.bf16.mxu0 0
    %3732 = vmatpush1.bf16.msra.mxu0 %v2126
    %3733 = vmatprep.subr.bf16.mxu0 0
    %3734 = vmatpush1.bf16.msra.mxu0 %v2127
    %3735 = vmatprep.subr.bf16.mxu0 0
    %3736 = vmatpush1.bf16.msra.mxu0 %v2128
    %3737 = vmatprep.subr.bf16.mxu0 0
    %3738 = vmatpush1.bf16.msra.mxu0 %v2129
    %3739 = vmatprep.subr.bf16.mxu0 0
    %3740 = vmatpush1.bf16.msra.mxu0 %v2130
    %3741 = vmatprep.subr.bf16.mxu0 0
    %3742 = vmatpush1.bf16.msra.mxu0 %v2131
    %3743 = vmatprep.subr.bf16.mxu0 0
    %3744 = vmatpush1.bf16.msra.mxu0 %v2132
    %3745 = vmatprep.subr.bf16.mxu0 0
    %3746 = vmatpush1.bf16.msra.mxu0 %v2133
    %3747 = vmatprep.subr.bf16.mxu0 0
    %3748 = vmatpush1.bf16.msra.mxu0 %v2134
    %3749 = vmatprep.subr.bf16.mxu0 0
    %3750 = vmatpush1.bf16.msra.mxu0 %v2135
    %3751 = vmatprep.subr.bf16.mxu0 0
    %3752 = vmatpush1.bf16.msra.mxu0 %v2136
    %3753 = vmatprep.subr.bf16.mxu0 0
    %3754 = vmatpush1.bf16.msra.mxu0 %v2137
    %3755 = vmatprep.subr.bf16.mxu0 0
    %3756 = vmatpush1.bf16.msra.mxu0 %v2138
    %3757 = vmatprep.mubr.bf16.mxu0 %v3718
    %3758 = vmatmul.mubr.bf16.gmra.mrb[0].mxu0 %v3717
    %v3759 = vpop.f32.mrb[0].mxu0
    %v3760 = vadd.f32 %v1977, %v3759
    %v3761 = vpop.f32.mrb[0].mxu0
    %v3762 = vpop.f32.mrb[0].mxu0
    %v3763 = vpop.f32.mrb[0].mxu0
    %3764 = vdwg.mxu0
    %3765 = vmatprep.subr.bf16.mxu0 0
    %3766 = vmatpush1.bf16.msra.mxu0 %v2139
    %3767 = vmatprep.subr.bf16.mxu0 0
    %3768 = vmatpush1.bf16.msra.mxu0 %v2140
    %3769 = vmatprep.subr.bf16.mxu0 0
    %3770 = vmatpush1.bf16.msra.mxu0 %v2141
    %3771 = vmatprep.subr.bf16.mxu0 0
    %3772 = vmatpush1.bf16.msra.mxu0 %v2142
    %3773 = vmatprep.subr.bf16.mxu0 0
    %3774 = vmatpush1.bf16.msra.mxu0 %v2143
    %3775 = vmatprep.subr.bf16.mxu0 0
    %3776 = vmatpush1.bf16.msra.mxu0 %v2144
    %3777 = vmatprep.subr.bf16.mxu0 0
    %3778 = vmatpush1.bf16.msra.mxu0 %v2145
    %3779 = vmatprep.subr.bf16.mxu0 0
    %3780 = vmatpush1.bf16.msra.mxu0 %v2146
    %3781 = vmatprep.subr.bf16.mxu0 0
    %3782 = vmatpush1.bf16.msra.mxu0 %v2147
    %3783 = vmatprep.subr.bf16.mxu0 0
    %3784 = vmatpush1.bf16.msra.mxu0 %v2148
    %3785 = vmatprep.subr.bf16.mxu0 0
    %3786 = vmatpush1.bf16.msra.mxu0 %v2149
    %3787 = vmatprep.subr.bf16.mxu0 0
    %3788 = vmatpush1.bf16.msra.mxu0 %v2150
    %3789 = vmatprep.subr.bf16.mxu0 0
    %3790 = vmatpush1.bf16.msra.mxu0 %v2151
    %3791 = vmatprep.subr.bf16.mxu0 0
    %3792 = vmatpush1.bf16.msra.mxu0 %v2152
    %3793 = vmatprep.subr.bf16.mxu0 0
    %3794 = vmatpush1.bf16.msra.mxu0 %v2153
    %3795 = vmatprep.subr.bf16.mxu0 0
    %3796 = vmatpush1.bf16.msra.mxu0 %v2154
    %3797 = vmatprep.mubr.bf16.mxu0 %v3720
    %3798 = vmatmul.mubr.bf16.gmra.mrb[0].mxu0 %v3719
    %v3799 = vpop.f32.mrb[0].mxu0
    %v3800 = vadd.f32 %v3760, %v3799
    %v3801 = vpop.f32.mrb[0].mxu0
    %v3802 = vpop.f32.mrb[0].mxu0
    %v3803 = vpop.f32.mrb[0].mxu0
    %3804 = vdwg.mxu0
    %3805 = vmatprep.subr.bf16.mxu0 0
    %3806 = vmatpush1.bf16.msra.mxu0 %v2155
    %3807 = vmatprep.subr.bf16.mxu0 0
    %3808 = vmatpush1.bf16.msra.mxu0 %v2156
    %3809 = vmatprep.subr.bf16.mxu0 0
    %3810 = vmatpush1.bf16.msra.mxu0 %v2157
    %3811 = vmatprep.subr.bf16.mxu0 0
    %3812 = vmatpush1.bf16.msra.mxu0 %v2158
    %3813 = vmatprep.subr.bf16.mxu0 0
    %3814 = vmatpush1.bf16.msra.mxu0 0
    %3815 = vmatprep.subr.bf16.mxu0 0
    %3816 = vmatpush1.bf16.msra.mxu0 0
    %3817 = vmatprep.subr.bf16.mxu0 0
    %3818 = vmatpush1.bf16.msra.mxu0 0
    %3819 = vmatprep.subr.bf16.mxu0 0
    %3820 = vmatpush1.bf16.msra.mxu0 0
    %3821 = vmatprep.subr.bf16.mxu0 0
    %3822 = vmatpush1.bf16.msra.mxu0 0
    %3823 = vmatprep.subr.bf16.mxu0 0
    %3824 = vmatpush1.bf16.msra.mxu0 0
    %3825 = vmatprep.subr.bf16.mxu0 0
    %3826 = vmatpush1.bf16.msra.mxu0 0
    %3827 = vmatprep.subr.bf16.mxu0 0
    %3828 = vmatpush1.bf16.msra.mxu0 0
    %3829 = vmatprep.subr.bf16.mxu0 0
    %3830 = vmatpush1.bf16.msra.mxu0 0
    %3831 = vmatprep.subr.bf16.mxu0 0
    %3832 = vmatpush1.bf16.msra.mxu0 0
    %3833 = vmatprep.subr.bf16.mxu0 0
    %3834 = vmatpush1.bf16.msra.mxu0 0
    %3835 = vmatprep.subr.bf16.mxu0 0
    %3836 = vmatpush1.bf16.msra.mxu0 0
    %3837 = vmatprep.mubr.bf16.mxu0 0
    %3838 = vmatmul.mubr.bf16.gmra.mrb[0].mxu0 %v3723
    %v3839 = vpop.f32.mrb[0].mxu0
    %v3840 = vadd.f32 %v3800, %v3839
    %v3841 = vpop.f32.mrb[0].mxu0
    %v3842 = vpop.f32.mrb[0].mxu0
    %v3843 = vpop.f32.mrb[0].mxu0
    %3844 = vdwg.mxu0
    %v3845 = vmax.f32 %v3840, 0.0
    %v3847 = vrot.slane %v3845, 7
    %v3850 = vrot.slane %v2318, 7
    %v3852 = vrot.slane %v3845, 6
    %v3854 = vrot.slane %v2318, 6
    %v3856 = vrot.slane %v3845, 5
    %v3858 = vrot.slane %v2318, 5
    %v3860 = vrot.slane %v3845, 4
    %v3862 = vsel %vm1018, %v2318, %v3847
    %v3863 = vsel %vm220, %v3862, %v3850
    %v3864 = vsel %vm1025, %v3863, %v3852
    %v3865 = vsel %vm1029, %v3864, %v3854
    %v3866 = vsel %vm1033, %v3865, %v3856
    %v3867 = vsel %vm1037, %v3866, %v3858
    %v3868 = vsel %vm1041, %v3867, %v3860
    %v3869 = vpack.c.bf16 %v3868, %v3868
    %v3870 = vld [vmem:[#allocation7] sm:$0xff]
    %v3871 = vld [vmem:[#allocation7 + $0x8] sm:$0xf]
    %v3872 = vld [vmem:[#allocation7 + $0xc] sm:$0xff]
    %v3873 = vld [vmem:[#allocation7 + $0x14] sm:$0xf]
    %v3874 = vld [vmem:[#allocation7 + $0x18] sm:$0xff]
    %v3875 = vld [vmem:[#allocation7 + $0x20] sm:$0xf]
    %v3876 = vld [vmem:[#allocation7 + $0x24] sm:$0xff]
    %v3877 = vld [vmem:[#allocation7 + $0x2c] sm:$0xf]
    %v3878 = vld [vmem:[#allocation7 + $0x30] sm:$0xff]
    %v3879 = vld [vmem:[#allocation7 + $0x38] sm:$0xf]
    %v3880 = vld [vmem:[#allocation7 + $0x3c] sm:$0xff]
    %v3881 = vld [vmem:[#allocation7 + $0x44] sm:$0xf]
    %v3882 = vld [vmem:[#allocation7 + $0x48] sm:$0xff]
    %v3883 = vld [vmem:[#allocation7 + $0x50] sm:$0xf]
    %v3884 = vld [vmem:[#allocation7 + $0x54] sm:$0xff]
    %v3885 = vld [vmem:[#allocation7 + $0x5c] sm:$0xf]
    %v3886 = vld [vmem:[#allocation7 + $0x60] sm:$0xff]
    %v3887 = vld [vmem:[#allocation7 + $0x68] sm:$0xf]
    %v3888 = vld [vmem:[#allocation7 + $0x6c] sm:$0xff]
    %v3889 = vld [vmem:[#allocation7 + $0x74] sm:$0xf]
    %v3890 = vld [vmem:[#allocation7 + $0x78] sm:$0xff]
    %v3891 = vld [vmem:[#allocation7 + $0x80] sm:$0xf]
    %v3892 = vld [vmem:[#allocation7 + $0x84] sm:$0xff]
    %v3893 = vld [vmem:[#allocation7 + $0x8c] sm:$0xf]
    %v3894 = vld [vmem:[#allocation7 + $0x90] sm:$0xff]
    %v3895 = vld [vmem:[#allocation7 + $0x98] sm:$0xf]
    %v3896 = vld [vmem:[#allocation7 + $0x9c] sm:$0xff]
    %v3897 = vld [vmem:[#allocation7 + $0xa4] sm:$0xf]
    %v3898 = vld [vmem:[#allocation7 + $0xa8] sm:$0xff]
    %v3899 = vld [vmem:[#allocation7 + $0xb0] sm:$0xf]
    %v3900 = vld [vmem:[#allocation7 + $0xb4] sm:$0xff]
    %v3901 = vld [vmem:[#allocation7 + $0xbc] sm:$0xf]
    %v3902 = vld [vmem:[#allocation8] sm:$0x7]
    %v3904 = vlaneseq
    %v3905 = vshrl.u32 %v3904, 7
    %v3906 = vsub.s32 0, %v3905
    %v3907 = vrot.slane %v3902, %v3906
    %v3908 = vlaneseq
    %v3909 = vshrl.u32 %v3908, 7
    %v3910 = vsub.s32 1, %v3909
    %v3911 = vrot.slane %v3902, %v3910
    %v3912 = vlaneseq
    %v3913 = vshrl.u32 %v3912, 7
    %v3914 = vsub.s32 2, %v3913
    %v3915 = vrot.slane %v3902, %v3914
    %v3951 = vunpack.c.l.b16 %v3870
    %v3952 = vunpack.c.h.b16 %v3870
    %v3953 = vunpack.c.l.b16 %v3871
    %v3954 = vunpack.c.l.b16 %v3872
    %v3955 = vunpack.c.h.b16 %v3872
    %v3956 = vunpack.c.l.b16 %v3873
    %v3957 = vunpack.c.l.b16 %v3874
    %v3958 = vunpack.c.h.b16 %v3874
    %v3959 = vunpack.c.l.b16 %v3875
    %v3960 = vunpack.c.l.b16 %v3876
    %v3961 = vunpack.c.h.b16 %v3876
    %v3962 = vunpack.c.l.b16 %v3877
    %v3963 = vunpack.c.l.b16 %v3878
    %v3964 = vunpack.c.h.b16 %v3878
    %v3965 = vunpack.c.l.b16 %v3879
    %v3966 = vunpack.c.l.b16 %v3880
    %v3967 = vunpack.c.h.b16 %v3880
    %v3968 = vunpack.c.l.b16 %v3881
    %v3969 = vunpack.c.l.b16 %v3882
    %v3970 = vunpack.c.h.b16 %v3882
    %v3971 = vunpack.c.l.b16 %v3883
    %v3972 = vunpack.c.l.b16 %v3884
    %v3973 = vunpack.c.h.b16 %v3884
    %v3974 = vunpack.c.l.b16 %v3885
    %v3975 = vunpack.c.l.b16 %v3886
    %v3976 = vunpack.c.h.b16 %v3886
    %v3977 = vunpack.c.l.b16 %v3887
    %v3978 = vunpack.c.l.b16 %v3888
    %v3979 = vunpack.c.h.b16 %v3888
    %v3980 = vunpack.c.l.b16 %v3889
    %v3981 = vunpack.c.l.b16 %v3890
    %v3982 = vunpack.c.h.b16 %v3890
    %v3983 = vunpack.c.l.b16 %v3891
    %v3984 = vunpack.c.l.b16 %v3892
    %v3985 = vunpack.c.h.b16 %v3892
    %v3986 = vunpack.c.l.b16 %v3893
    %v3987 = vunpack.c.l.b16 %v3894
    %v3988 = vunpack.c.h.b16 %v3894
    %v3989 = vunpack.c.l.b16 %v3895
    %v3990 = vunpack.c.l.b16 %v3896
    %v3991 = vunpack.c.h.b16 %v3896
    %v3992 = vunpack.c.l.b16 %v3897
    %v3993 = vunpack.c.l.b16 %v3898
    %v3994 = vunpack.c.h.b16 %v3898
    %v3995 = vunpack.c.l.b16 %v3899
    %v3996 = vunpack.c.l.b16 %v3900
    %v3997 = vunpack.c.h.b16 %v3900
    %v3998 = vunpack.c.l.b16 %v3901
    %v3999 = vpack.c.b16 %v3954, %v3951
    %v4000 = vpack.c.b16 %v3955, %v3952
    %v4001 = vpack.c.b16 %v3956, %v3953
    %v4002 = vpack.c.b16 %v3960, %v3957
    %v4003 = vpack.c.b16 %v3961, %v3958
    %v4004 = vpack.c.b16 %v3962, %v3959
    %v4005 = vpack.c.b16 %v3966, %v3963
    %v4006 = vpack.c.b16 %v3967, %v3964
    %v4007 = vpack.c.b16 %v3968, %v3965
    %v4008 = vpack.c.b16 %v3972, %v3969
    %v4009 = vpack.c.b16 %v3973, %v3970
    %v4010 = vpack.c.b16 %v3974, %v3971
    %v4011 = vpack.c.b16 %v3978, %v3975
    %v4012 = vpack.c.b16 %v3979, %v3976
    %v4013 = vpack.c.b16 %v3980, %v3977
    %v4014 = vpack.c.b16 %v3984, %v3981
    %v4015 = vpack.c.b16 %v3985, %v3982
    %v4016 = vpack.c.b16 %v3986, %v3983
    %v4017 = vpack.c.b16 %v3990, %v3987
    %v4018 = vpack.c.b16 %v3991, %v3988
    %v4019 = vpack.c.b16 %v3992, %v3989
    %v4020 = vpack.c.b16 %v3996, %v3993
    %v4021 = vpack.c.b16 %v3997, %v3994
    %v4022 = vpack.c.b16 %v3998, %v3995
    %4047 = vmatprep.subr.bf16.mxu0 %v4000
    %4048 = vmatpush1.bf16.msra.mxu0 %v3999
    %4049 = vmatprep.subr.bf16.mxu0 %v4003
    %4050 = vmatpush1.bf16.msra.mxu0 %v4002
    %4051 = vmatprep.subr.bf16.mxu0 %v4006
    %4052 = vmatpush1.bf16.msra.mxu0 %v4005
    %4053 = vmatprep.subr.bf16.mxu0 %v4009
    %4054 = vmatpush1.bf16.msra.mxu0 %v4008
    %4055 = vmatprep.subr.bf16.mxu0 %v4012
    %4056 = vmatpush1.bf16.msra.mxu0 %v4011
    %4057 = vmatprep.subr.bf16.mxu0 %v4015
    %4058 = vmatpush1.bf16.msra.mxu0 %v4014
    %4059 = vmatprep.subr.bf16.mxu0 %v4018
    %4060 = vmatpush1.bf16.msra.mxu0 %v4017
    %4061 = vmatprep.subr.bf16.mxu0 %v4021
    %4062 = vmatpush1.bf16.msra.mxu0 %v4020
    %4063 = vmatprep.subr.bf16.mxu0 0
    %4064 = vmatpush1.bf16.msra.mxu0 0
    %4065 = vmatprep.subr.bf16.mxu0 0
    %4066 = vmatpush1.bf16.msra.mxu0 0
    %4067 = vmatprep.subr.bf16.mxu0 0
    %4068 = vmatpush1.bf16.msra.mxu0 0
    %4069 = vmatprep.subr.bf16.mxu0 0
    %4070 = vmatpush1.bf16.msra.mxu0 0
    %4071 = vmatprep.subr.bf16.mxu0 0
    %4072 = vmatpush1.bf16.msra.mxu0 0
    %4073 = vmatprep.subr.bf16.mxu0 0
    %4074 = vmatpush1.bf16.msra.mxu0 0
    %4075 = vmatprep.subr.bf16.mxu0 0
    %4076 = vmatpush1.bf16.msra.mxu0 0
    %4077 = vmatprep.subr.bf16.mxu0 0
    %4078 = vmatpush1.bf16.msra.mxu0 0
    %4079 = vmatprep.mubr.bf16.mxu0 0
    %4080 = vmatmul.mubr.bf16.gmra.mrb[0].mxu0 %v3869
    %v4081 = vpop.f32.mrb[0].mxu0
    %v4082 = vadd.f32 %v3907, %v4081
    %v4083 = vpop.f32.mrb[0].mxu0
    %v4084 = vadd.f32 %v3911, %v4083
    %v4085 = vpop.f32.mrb[0].mxu0
    %v4086 = vpop.f32.mrb[0].mxu0
    %4087 = vdwg.mxu0
    %4088 = vmatprep.subr.bf16.mxu0 0
    %4089 = vmatpush1.bf16.msra.mxu0 %v4001
    %4090 = vmatprep.subr.bf16.mxu0 0
    %4091 = vmatpush1.bf16.msra.mxu0 %v4004
    %4092 = vmatprep.subr.bf16.mxu0 0
    %4093 = vmatpush1.bf16.msra.mxu0 %v4007
    %4094 = vmatprep.subr.bf16.mxu0 0
    %4095 = vmatpush1.bf16.msra.mxu0 %v4010
    %4096 = vmatprep.subr.bf16.mxu0 0
    %4097 = vmatpush1.bf16.msra.mxu0 %v4013
    %4098 = vmatprep.subr.bf16.mxu0 0
    %4099 = vmatpush1.bf16.msra.mxu0 %v4016
    %4100 = vmatprep.subr.bf16.mxu0 0
    %4101 = vmatpush1.bf16.msra.mxu0 %v4019
    %4102 = vmatprep.subr.bf16.mxu0 0
    %4103 = vmatpush1.bf16.msra.mxu0 %v4022
    %4104 = vmatprep.subr.bf16.mxu0 0
    %4105 = vmatpush1.bf16.msra.mxu0 0
    %4106 = vmatprep.subr.bf16.mxu0 0
    %4107 = vmatpush1.bf16.msra.mxu0 0
    %4108 = vmatprep.subr.bf16.mxu0 0
    %4109 = vmatpush1.bf16.msra.mxu0 0
    %4110 = vmatprep.subr.bf16.mxu0 0
    %4111 = vmatpush1.bf16.msra.mxu0 0
    %4112 = vmatprep.subr.bf16.mxu0 0
    %4113 = vmatpush1.bf16.msra.mxu0 0
    %4114 = vmatprep.subr.bf16.mxu0 0
    %4115 = vmatpush1.bf16.msra.mxu0 0
    %4116 = vmatprep.subr.bf16.mxu0 0
    %4117 = vmatpush1.bf16.msra.mxu0 0
    %4118 = vmatprep.subr.bf16.mxu0 0
    %4119 = vmatpush1.bf16.msra.mxu0 0
    %4120 = vmatprep.mubr.bf16.mxu0 0
    %4121 = vmatmul.mubr.bf16.gmra.mrb[0].mxu0 %v3869
    %v4122 = vpop.f32.mrb[0].mxu0
    %v4123 = vadd.f32 %v3915, %v4122
    %v4124 = vpop.f32.mrb[0].mxu0
    %v4125 = vpop.f32.mrb[0].mxu0
    %v4126 = vpop.f32.mrb[0].mxu0
    %4127 = vdwg.mxu0
    %v4128 = vld [vmem:[#allocation10] sm:$0xff]
    %v4129 = vld [vmem:[#allocation10 + $0x8] sm:$0xf]
    %v4130 = vld [vmem:[#allocation10 + $0xc] sm:$0xff]
    %v4131 = vld [vmem:[#allocation10 + $0x14] sm:$0xf]
    %v4132 = vld [vmem:[#allocation10 + $0x18] sm:$0xff]
    %v4133 = vld [vmem:[#allocation10 + $0x20] sm:$0xf]
    %v4134 = vld [vmem:[#allocation10 + $0x24] sm:$0xff]
    %v4135 = vld [vmem:[#allocation10 + $0x2c] sm:$0xf]
    %v4136 = vld [vmem:[#allocation10 + $0x30] sm:$0xff]
    %v4137 = vld [vmem:[#allocation10 + $0x38] sm:$0xf]
    %v4138 = vld [vmem:[#allocation10 + $0x3c] sm:$0xff]
    %v4139 = vld [vmem:[#allocation10 + $0x44] sm:$0xf]
    %v4140 = vld [vmem:[#allocation10 + $0x48] sm:$0xff]
    %v4141 = vld [vmem:[#allocation10 + $0x50] sm:$0xf]
    %v4142 = vld [vmem:[#allocation10 + $0x54] sm:$0xff]
    %v4143 = vld [vmem:[#allocation10 + $0x5c] sm:$0xf]
    %v4144 = vld [vmem:[#allocation10 + $0x60] sm:$0xff]
    %v4145 = vld [vmem:[#allocation10 + $0x68] sm:$0xf]
    %v4146 = vld [vmem:[#allocation10 + $0x6c] sm:$0xff]
    %v4147 = vld [vmem:[#allocation10 + $0x74] sm:$0xf]
    %v4148 = vld [vmem:[#allocation10 + $0x78] sm:$0xff]
    %v4149 = vld [vmem:[#allocation10 + $0x80] sm:$0xf]
    %v4150 = vld [vmem:[#allocation10 + $0x84] sm:$0xff]
    %v4151 = vld [vmem:[#allocation10 + $0x8c] sm:$0xf]
    %v4152 = vld [vmem:[#allocation10 + $0x90] sm:$0xff]
    %v4153 = vld [vmem:[#allocation10 + $0x98] sm:$0xf]
    %v4154 = vld [vmem:[#allocation10 + $0x9c] sm:$0xff]
    %v4155 = vld [vmem:[#allocation10 + $0xa4] sm:$0xf]
    %v4156 = vld [vmem:[#allocation10 + $0xa8] sm:$0xff]
    %v4157 = vld [vmem:[#allocation10 + $0xb0] sm:$0xf]
    %v4158 = vld [vmem:[#allocation10 + $0xb4] sm:$0xff]
    %v4159 = vld [vmem:[#allocation10 + $0xbc] sm:$0xf]
    %v4160 = vld [vmem:[#allocation11] sm:$0x7]
    %v4162 = vlaneseq
    %v4163 = vshrl.u32 %v4162, 7
    %v4164 = vsub.s32 0, %v4163
    %v4165 = vrot.slane %v4160, %v4164
    %v4166 = vlaneseq
    %v4167 = vshrl.u32 %v4166, 7
    %v4168 = vsub.s32 1, %v4167
    %v4169 = vrot.slane %v4160, %v4168
    %v4170 = vlaneseq
    %v4171 = vshrl.u32 %v4170, 7
    %v4172 = vsub.s32 2, %v4171
    %v4173 = vrot.slane %v4160, %v4172
    %v4209 = vunpack.c.l.b16 %v4128
    %v4210 = vunpack.c.h.b16 %v4128
    %v4211 = vunpack.c.l.b16 %v4129
    %v4212 = vunpack.c.l.b16 %v4130
    %v4213 = vunpack.c.h.b16 %v4130
    %v4214 = vunpack.c.l.b16 %v4131
    %v4215 = vunpack.c.l.b16 %v4132
    %v4216 = vunpack.c.h.b16 %v4132
    %v4217 = vunpack.c.l.b16 %v4133
    %v4218 = vunpack.c.l.b16 %v4134
    %v4219 = vunpack.c.h.b16 %v4134
    %v4220 = vunpack.c.l.b16 %v4135
    %v4221 = vunpack.c.l.b16 %v4136
    %v4222 = vunpack.c.h.b16 %v4136
    %v4223 = vunpack.c.l.b16 %v4137
    %v4224 = vunpack.c.l.b16 %v4138
    %v4225 = vunpack.c.h.b16 %v4138
    %v4226 = vunpack.c.l.b16 %v4139
    %v4227 = vunpack.c.l.b16 %v4140
    %v4228 = vunpack.c.h.b16 %v4140
    %v4229 = vunpack.c.l.b16 %v4141
    %v4230 = vunpack.c.l.b16 %v4142
    %v4231 = vunpack.c.h.b16 %v4142
    %v4232 = vunpack.c.l.b16 %v4143
    %v4233 = vunpack.c.l.b16 %v4144
    %v4234 = vunpack.c.h.b16 %v4144
    %v4235 = vunpack.c.l.b16 %v4145
    %v4236 = vunpack.c.l.b16 %v4146
    %v4237 = vunpack.c.h.b16 %v4146
    %v4238 = vunpack.c.l.b16 %v4147
    %v4239 = vunpack.c.l.b16 %v4148
    %v4240 = vunpack.c.h.b16 %v4148
    %v4241 = vunpack.c.l.b16 %v4149
    %v4242 = vunpack.c.l.b16 %v4150
    %v4243 = vunpack.c.h.b16 %v4150
    %v4244 = vunpack.c.l.b16 %v4151
    %v4245 = vunpack.c.l.b16 %v4152
    %v4246 = vunpack.c.h.b16 %v4152
    %v4247 = vunpack.c.l.b16 %v4153
    %v4248 = vunpack.c.l.b16 %v4154
    %v4249 = vunpack.c.h.b16 %v4154
    %v4250 = vunpack.c.l.b16 %v4155
    %v4251 = vunpack.c.l.b16 %v4156
    %v4252 = vunpack.c.h.b16 %v4156
    %v4253 = vunpack.c.l.b16 %v4157
    %v4254 = vunpack.c.l.b16 %v4158
    %v4255 = vunpack.c.h.b16 %v4158
    %v4256 = vunpack.c.l.b16 %v4159
    %v4257 = vpack.c.b16 %v4212, %v4209
    %v4258 = vpack.c.b16 %v4213, %v4210
    %v4259 = vpack.c.b16 %v4214, %v4211
    %v4260 = vpack.c.b16 %v4218, %v4215
    %v4261 = vpack.c.b16 %v4219, %v4216
    %v4262 = vpack.c.b16 %v4220, %v4217
    %v4263 = vpack.c.b16 %v4224, %v4221
    %v4264 = vpack.c.b16 %v4225, %v4222
    %v4265 = vpack.c.b16 %v4226, %v4223
    %v4266 = vpack.c.b16 %v4230, %v4227
    %v4267 = vpack.c.b16 %v4231, %v4228
    %v4268 = vpack.c.b16 %v4232, %v4229
    %v4269 = vpack.c.b16 %v4236, %v4233
    %v4270 = vpack.c.b16 %v4237, %v4234
    %v4271 = vpack.c.b16 %v4238, %v4235
    %v4272 = vpack.c.b16 %v4242, %v4239
    %v4273 = vpack.c.b16 %v4243, %v4240
    %v4274 = vpack.c.b16 %v4244, %v4241
    %v4275 = vpack.c.b16 %v4248, %v4245
    %v4276 = vpack.c.b16 %v4249, %v4246
    %v4277 = vpack.c.b16 %v4250, %v4247
    %v4278 = vpack.c.b16 %v4254, %v4251
    %v4279 = vpack.c.b16 %v4255, %v4252
    %v4280 = vpack.c.b16 %v4256, %v4253
    %4305 = vmatprep.subr.bf16.mxu0 %v4258
    %4306 = vmatpush1.bf16.msra.mxu0 %v4257
    %4307 = vmatprep.subr.bf16.mxu0 %v4261
    %4308 = vmatpush1.bf16.msra.mxu0 %v4260
    %4309 = vmatprep.subr.bf16.mxu0 %v4264
    %4310 = vmatpush1.bf16.msra.mxu0 %v4263
    %4311 = vmatprep.subr.bf16.mxu0 %v4267
    %4312 = vmatpush1.bf16.msra.mxu0 %v4266
    %4313 = vmatprep.subr.bf16.mxu0 %v4270
    %4314 = vmatpush1.bf16.msra.mxu0 %v4269
    %4315 = vmatprep.subr.bf16.mxu0 %v4273
    %4316 = vmatpush1.bf16.msra.mxu0 %v4272
    %4317 = vmatprep.subr.bf16.mxu0 %v4276
    %4318 = vmatpush1.bf16.msra.mxu0 %v4275
    %4319 = vmatprep.subr.bf16.mxu0 %v4279
    %4320 = vmatpush1.bf16.msra.mxu0 %v4278
    %4321 = vmatprep.subr.bf16.mxu0 0
    %4322 = vmatpush1.bf16.msra.mxu0 0
    %4323 = vmatprep.subr.bf16.mxu0 0
    %4324 = vmatpush1.bf16.msra.mxu0 0
    %4325 = vmatprep.subr.bf16.mxu0 0
    %4326 = vmatpush1.bf16.msra.mxu0 0
    %4327 = vmatprep.subr.bf16.mxu0 0
    %4328 = vmatpush1.bf16.msra.mxu0 0
    %4329 = vmatprep.subr.bf16.mxu0 0
    %4330 = vmatpush1.bf16.msra.mxu0 0
    %4331 = vmatprep.subr.bf16.mxu0 0
    %4332 = vmatpush1.bf16.msra.mxu0 0
    %4333 = vmatprep.subr.bf16.mxu0 0
    %4334 = vmatpush1.bf16.msra.mxu0 0
    %4335 = vmatprep.subr.bf16.mxu0 0
    %4336 = vmatpush1.bf16.msra.mxu0 0
    %4337 = vmatprep.mubr.bf16.mxu0 0
    %4338 = vmatmul.mubr.bf16.gmra.mrb[0].mxu0 0
    %v4339 = vpop.f32.mrb[0].mxu0
    %v4340 = vadd.f32 %v4165, %v4339
    %v4341 = vpop.f32.mrb[0].mxu0
    %v4342 = vadd.f32 %v4169, %v4341
    %v4343 = vpop.f32.mrb[0].mxu0
    %v4344 = vpop.f32.mrb[0].mxu0
    %4345 = vdwg.mxu0
    %4346 = vmatprep.subr.bf16.mxu0 0
    %4347 = vmatpush1.bf16.msra.mxu0 %v4259
    %4348 = vmatprep.subr.bf16.mxu0 0
    %4349 = vmatpush1.bf16.msra.mxu0 %v4262
    %4350 = vmatprep.subr.bf16.mxu0 0
    %4351 = vmatpush1.bf16.msra.mxu0 %v4265
    %4352 = vmatprep.subr.bf16.mxu0 0
    %4353 = vmatpush1.bf16.msra.mxu0 %v4268
    %4354 = vmatprep.subr.bf16.mxu0 0
    %4355 = vmatpush1.bf16.msra.mxu0 %v4271
    %4356 = vmatprep.subr.bf16.mxu0 0
    %4357 = vmatpush1.bf16.msra.mxu0 %v4274
    %4358 = vmatprep.subr.bf16.mxu0 0
    %4359 = vmatpush1.bf16.msra.mxu0 %v4277
    %4360 = vmatprep.subr.bf16.mxu0 0
    %4361 = vmatpush1.bf16.msra.mxu0 %v4280
    %4362 = vmatprep.subr.bf16.mxu0 0
    %4363 = vmatpush1.bf16.msra.mxu0 0
    %4364 = vmatprep.subr.bf16.mxu0 0
    %4365 = vmatpush1.bf16.msra.mxu0 0
    %4366 = vmatprep.subr.bf16.mxu0 0
    %4367 = vmatpush1.bf16.msra.mxu0 0
    %4368 = vmatprep.subr.bf16.mxu0 0
    %4369 = vmatpush1.bf16.msra.mxu0 0
    %4370 = vmatprep.subr.bf16.mxu0 0
    %4371 = vmatpush1.bf16.msra.mxu0 0
    %4372 = vmatprep.subr.bf16.mxu0 0
    %4373 = vmatpush1.bf16.msra.mxu0 0
    %4374 = vmatprep.subr.bf16.mxu0 0
    %4375 = vmatpush1.bf16.msra.mxu0 0
    %4376 = vmatprep.subr.bf16.mxu0 0
    %4377 = vmatpush1.bf16.msra.mxu0 0
    %4378 = vmatprep.mubr.bf16.mxu0 0
    %4379 = vmatmul.mubr.bf16.gmra.mrb[0].mxu0 0
    %v4380 = vpop.f32.mrb[0].mxu0
    %v4381 = vadd.f32 %v4173, %v4380
    %v4382 = vpop.f32.mrb[0].mxu0
    %v4383 = vpop.f32.mrb[0].mxu0
    %v4384 = vpop.f32.mrb[0].mxu0
    %4385 = vdwg.mxu0
    %v4386 = vadd.f32 %v4082, %v4340
    %v4387 = vxor.u32 %v4386, 2147483648
    %v4388 = vmul.f32 %v4387, 1.442695
    %v4389 = vpow.pop %v4388
    %v4390 = vadd.f32 %v4389, 1.0
    %v4391 = vrcp.pop %v4390
    %v4392 = vmul.f32 1.0, %v4391
    %v4393 = vadd.f32 %v4084, %v4342
    %v4394 = vxor.u32 %v4393, 2147483648
    %v4395 = vmul.f32 %v4394, 1.442695
    %v4396 = vpow.pop %v4395
    %v4397 = vadd.f32 %v4396, 1.0
    %v4398 = vrcp.pop %v4397
    %v4399 = vmul.f32 1.0, %v4398
    %v4400 = vmul.f32 %v4392, %v4381
    %v4401 = vadd.f32 %v4123, %v4400
    %v4402 = vtanh.pop %v4401
    %v4403 = vsub.f32 1.0, %v4399
    %v4404 = vmul.f32 %v4403, %v4402
    %v4405 = vmul.f32 %v4399, 0.0
    %v4406 = vadd.f32 %v4404, %v4405
    %v4407 = vpack.c.bf16 %v4406, %v4406
    %4408 = vmatprep.subr.bf16.mxu0 %v4258
    %4409 = vmatpush1.bf16.msra.mxu0 %v4257
    %4410 = vmatprep.subr.bf16.mxu0 %v4261
    %4411 = vmatpush1.bf16.msra.mxu0 %v4260
    %4412 = vmatprep.subr.bf16.mxu0 %v4264
    %4413 = vmatpush1.bf16.msra.mxu0 %v4263
    %4414 = vmatprep.subr.bf16.mxu0 %v4267
    %4415 = vmatpush1.bf16.msra.mxu0 %v4266
    %4416 = vmatprep.subr.bf16.mxu0 %v4270
    %4417 = vmatpush1.bf16.msra.mxu0 %v4269
    %4418 = vmatprep.subr.bf16.mxu0 %v4273
    %4419 = vmatpush1.bf16.msra.mxu0 %v4272
    %4420 = vmatprep.subr.bf16.mxu0 %v4276
    %4421 = vmatpush1.bf16.msra.mxu0 %v4275
    %4422 = vmatprep.subr.bf16.mxu0 %v4279
    %4423 = vmatpush1.bf16.msra.mxu0 %v4278
    %4424 = vmatprep.subr.bf16.mxu0 0
    %4425 = vmatpush1.bf16.msra.mxu0 0
    %4426 = vmatprep.subr.bf16.mxu0 0
    %4427 = vmatpush1.bf16.msra.mxu0 0
    %4428 = vmatprep.subr.bf16.mxu0 0
    %4429 = vmatpush1.bf16.msra.mxu0 0
    %4430 = vmatprep.subr.bf16.mxu0 0
    %4431 = vmatpush1.bf16.msra.mxu0 0
    %4432 = vmatprep.subr.bf16.mxu0 0
    %4433 = vmatpush1.bf16.msra.mxu0 0
    %4434 = vmatprep.subr.bf16.mxu0 0
    %4435 = vmatpush1.bf16.msra.mxu0 0
    %4436 = vmatprep.subr.bf16.mxu0 0
    %4437 = vmatpush1.bf16.msra.mxu0 0
    %4438 = vmatprep.subr.bf16.mxu0 0
    %4439 = vmatpush1.bf16.msra.mxu0 0
    %4440 = vmatprep.mubr.bf16.mxu0 0
    %4441 = vmatmul.mubr.bf16.gmra.mrb[0].mxu0 %v4407
    %v4442 = vpop.f32.mrb[0].mxu0
    %v4443 = vadd.f32 %v4165, %v4442
    %v4444 = vpop.f32.mrb[0].mxu0
    %v4445 = vadd.f32 %v4169, %v4444
    %v4446 = vpop.f32.mrb[0].mxu0
    %v4447 = vpop.f32.mrb[0].mxu0
    %4448 = vdwg.mxu0
    %4449 = vmatprep.subr.bf16.mxu0 0
    %4450 = vmatpush1.bf16.msra.mxu0 %v4259
    %4451 = vmatprep.subr.bf16.mxu0 0
    %4452 = vmatpush1.bf16.msra.mxu0 %v4262
    %4453 = vmatprep.subr.bf16.mxu0 0
    %4454 = vmatpush1.bf16.msra.mxu0 %v4265
    %4455 = vmatprep.subr.bf16.mxu0 0
    %4456 = vmatpush1.bf16.msra.mxu0 %v4268
    %4457 = vmatprep.subr.bf16.mxu0 0
    %4458 = vmatpush1.bf16.msra.mxu0 %v4271
    %4459 = vmatprep.subr.bf16.mxu0 0
    %4460 = vmatpush1.bf16.msra.mxu0 %v4274
    %4461 = vmatprep.subr.bf16.mxu0 0
    %4462 = vmatpush1.bf16.msra.mxu0 %v4277
    %4463 = vmatprep.subr.bf16.mxu0 0
    %4464 = vmatpush1.bf16.msra.mxu0 %v4280
    %4465 = vmatprep.subr.bf16.mxu0 0
    %4466 = vmatpush1.bf16.msra.mxu0 0
    %4467 = vmatprep.subr.bf16.mxu0 0
    %4468 = vmatpush1.bf16.msra.mxu0 0
    %4469 = vmatprep.subr.bf16.mxu0 0
    %4470 = vmatpush1.bf16.msra.mxu0 0
    %4471 = vmatprep.subr.bf16.mxu0 0
    %4472 = vmatpush1.bf16.msra.mxu0 0
    %4473 = vmatprep.subr.bf16.mxu0 0
    %4474 = vmatpush1.bf16.msra.mxu0 0
    %4475 = vmatprep.subr.bf16.mxu0 0
    %4476 = vmatpush1.bf16.msra.mxu0 0
    %4477 = vmatprep.subr.bf16.mxu0 0
    %4478 = vmatpush1.bf16.msra.mxu0 0
    %4479 = vmatprep.subr.bf16.mxu0 0
    %4480 = vmatpush1.bf16.msra.mxu0 0
    %4481 = vmatprep.mubr.bf16.mxu0 0
    %4482 = vmatmul.mubr.bf16.gmra.mrb[0].mxu0 %v4407
    %v4483 = vpop.f32.mrb[0].mxu0
    %v4484 = vadd.f32 %v4173, %v4483
    %v4485 = vpop.f32.mrb[0].mxu0
    %v4486 = vpop.f32.mrb[0].mxu0
    %v4487 = vpop.f32.mrb[0].mxu0
    %4488 = vdwg.mxu0
    %v4490 = vrot.slane %v4443, 6
    %v4492 = vadd.f32 %v4082, %v4490
    %v4493 = vxor.u32 %v4492, 2147483648
    %v4494 = vmul.f32 %v4493, 1.442695
    %v4495 = vpow.pop %v4494
    %v4496 = vadd.f32 %v4495, 1.0
    %v4497 = vrcp.pop %v4496
    %v4498 = vmul.f32 1.0, %v4497
    %v4500 = vrot.slane %v4445, 6
    %v4502 = vadd.f32 %v4084, %v4500
    %v4503 = vxor.u32 %v4502, 2147483648
    %v4504 = vmul.f32 %v4503, 1.442695
    %v4505 = vpow.pop %v4504
    %v4506 = vadd.f32 %v4505, 1.0
    %v4507 = vrcp.pop %v4506
    %v4508 = vmul.f32 1.0, %v4507
    %v4510 = vrot.slane %v4484, 6
    %v4512 = vmul.f32 %v4498, %v4510
    %v4513 = vadd.f32 %v4123, %v4512
    %v4514 = vtanh.pop %v4513
    %v4515 = vsub.f32 1.0, %v4508
    %v4516 = vmul.f32 %v4515, %v4514
    %v4518 = vrot.slane %v4406, 6
    %v4520 = vmul.f32 %v4508, %v4518
    %v4521 = vadd.f32 %v4516, %v4520
    %v4523 = vrot.slane %v4521, 2
    %v4525 = vmax.f32 %v4406, %v4523
    %v4526 = vpack.c.bf16 %v4521, %v4521
    %v4528 = vrot.slane %v4526, 1
    %4530 = vmatprep.subr.bf16.mxu0 %v4258
    %4531 = vmatpush1.bf16.msra.mxu0 %v4257
    %4532 = vmatprep.subr.bf16.mxu0 %v4261
    %4533 = vmatpush1.bf16.msra.mxu0 %v4260
    %4534 = vmatprep.subr.bf16.mxu0 %v4264
    %4535 = vmatpush1.bf16.msra.mxu0 %v4263
    %4536 = vmatprep.subr.bf16.mxu0 %v4267
    %4537 = vmatpush1.bf16.msra.mxu0 %v4266
    %4538 = vmatprep.subr.bf16.mxu0 %v4270
    %4539 = vmatpush1.bf16.msra.mxu0 %v4269
    %4540 = vmatprep.subr.bf16.mxu0 %v4273
    %4541 = vmatpush1.bf16.msra.mxu0 %v4272
    %4542 = vmatprep.subr.bf16.mxu0 %v4276
    %4543 = vmatpush1.bf16.msra.mxu0 %v4275
    %4544 = vmatprep.subr.bf16.mxu0 %v4279
    %4545 = vmatpush1.bf16.msra.mxu0 %v4278
    %4546 = vmatprep.subr.bf16.mxu0 0
    %4547 = vmatpush1.bf16.msra.mxu0 0
    %4548 = vmatprep.subr.bf16.mxu0 0
    %4549 = vmatpush1.bf16.msra.mxu0 0
    %4550 = vmatprep.subr.bf16.mxu0 0
    %4551 = vmatpush1.bf16.msra.mxu0 0
    %4552 = vmatprep.subr.bf16.mxu0 0
    %4553 = vmatpush1.bf16.msra.mxu0 0
    %4554 = vmatprep.subr.bf16.mxu0 0
    %4555 = vmatpush1.bf16.msra.mxu0 0
    %4556 = vmatprep.subr.bf16.mxu0 0
    %4557 = vmatpush1.bf16.msra.mxu0 0
    %4558 = vmatprep.subr.bf16.mxu0 0
    %4559 = vmatpush1.bf16.msra.mxu0 0
    %4560 = vmatprep.subr.bf16.mxu0 0
    %4561 = vmatpush1.bf16.msra.mxu0 0
    %4562 = vmatprep.mubr.bf16.mxu0 0
    %4563 = vmatmul.mubr.bf16.gmra.mrb[0].mxu0 %v4528
    %v4564 = vpop.f32.mrb[0].mxu0
    %v4565 = vadd.f32 %v4165, %v4564
    %v4566 = vpop.f32.mrb[0].mxu0
    %v4567 = vadd.f32 %v4169, %v4566
    %v4568 = vpop.f32.mrb[0].mxu0
    %v4569 = vpop.f32.mrb[0].mxu0
    %4570 = vdwg.mxu0
    %4571 = vmatprep.subr.bf16.mxu0 0
    %4572 = vmatpush1.bf16.msra.mxu0 %v4259
    %4573 = vmatprep.subr.bf16.mxu0 0
    %4574 = vmatpush1.bf16.msra.mxu0 %v4262
    %4575 = vmatprep.subr.bf16.mxu0 0
    %4576 = vmatpush1.bf16.msra.mxu0 %v4265
    %4577 = vmatprep.subr.bf16.mxu0 0
    %4578 = vmatpush1.bf16.msra.mxu0 %v4268
    %4579 = vmatprep.subr.bf16.mxu0 0
    %4580 = vmatpush1.bf16.msra.mxu0 %v4271
    %4581 = vmatprep.subr.bf16.mxu0 0
    %4582 = vmatpush1.bf16.msra.mxu0 %v4274
    %4583 = vmatprep.subr.bf16.mxu0 0
    %4584 = vmatpush1.bf16.msra.mxu0 %v4277
    %4585 = vmatprep.subr.bf16.mxu0 0
    %4586 = vmatpush1.bf16.msra.mxu0 %v4280
    %4587 = vmatprep.subr.bf16.mxu0 0
    %4588 = vmatpush1.bf16.msra.mxu0 0
    %4589 = vmatprep.subr.bf16.mxu0 0
    %4590 = vmatpush1.bf16.msra.mxu0 0
    %4591 = vmatprep.subr.bf16.mxu0 0
    %4592 = vmatpush1.bf16.msra.mxu0 0
    %4593 = vmatprep.subr.bf16.mxu0 0
    %4594 = vmatpush1.bf16.msra.mxu0 0
    %4595 = vmatprep.subr.bf16.mxu0 0
    %4596 = vmatpush1.bf16.msra.mxu0 0
    %4597 = vmatprep.subr.bf16.mxu0 0
    %4598 = vmatpush1.bf16.msra.mxu0 0
    %4599 = vmatprep.subr.bf16.mxu0 0
    %4600 = vmatpush1.bf16.msra.mxu0 0
    %4601 = vmatprep.subr.bf16.mxu0 0
    %4602 = vmatpush1.bf16.msra.mxu0 0
    %4603 = vmatprep.mubr.bf16.mxu0 0
    %4604 = vmatmul.mubr.bf16.gmra.mrb[0].mxu0 %v4528
    %v4605 = vpop.f32.mrb[0].mxu0
    %v4606 = vadd.f32 %v4173, %v4605
    %v4607 = vpop.f32.mrb[0].mxu0
    %v4608 = vpop.f32.mrb[0].mxu0
    %v4609 = vpop.f32.mrb[0].mxu0
    %4610 = vdwg.mxu0
    %v4612 = vrot.slane %v4565, 4
    %v4614 = vadd.f32 %v4082, %v4612
    %v4615 = vxor.u32 %v4614, 2147483648
    %v4616 = vmul.f32 %v4615, 1.442695
    %v4617 = vpow.pop %v4616
    %v4618 = vadd.f32 %v4617, 1.0
    %v4619 = vrcp.pop %v4618
    %v4620 = vmul.f32 1.0, %v4619
    %v4622 = vrot.slane %v4567, 4
    %v4624 = vadd.f32 %v4084, %v4622
    %v4625 = vxor.u32 %v4624, 2147483648
    %v4626 = vmul.f32 %v4625, 1.442695
    %v4627 = vpow.pop %v4626
    %v4628 = vadd.f32 %v4627, 1.0
    %v4629 = vrcp.pop %v4628
    %v4630 = vmul.f32 1.0, %v4629
    %v4632 = vrot.slane %v4606, 4
    %v4634 = vmul.f32 %v4620, %v4632
    %v4635 = vadd.f32 %v4123, %v4634
    %v4636 = vtanh.pop %v4635
    %v4637 = vsub.f32 1.0, %v4630
    %v4638 = vmul.f32 %v4637, %v4636
    %v4639 = vrot.slane %v4521, 6
    %v4641 = vmul.f32 %v4630, %v4639
    %v4642 = vadd.f32 %v4638, %v4641
    %v4644 = vrot.slane %v4642, 4
    %v4646 = vmax.f32 %v4525, %v4644
    %v4647 = vpack.c.bf16 %v4642, %v4642
    %v4649 = vrot.slane %v4647, 2
    %4651 = vmatprep.subr.bf16.mxu0 %v4258
    %4652 = vmatpush1.bf16.msra.mxu0 %v4257
    %4653 = vmatprep.subr.bf16.mxu0 %v4261
    %4654 = vmatpush1.bf16.msra.mxu0 %v4260
    %4655 = vmatprep.subr.bf16.mxu0 %v4264
    %4656 = vmatpush1.bf16.msra.mxu0 %v4263
    %4657 = vmatprep.subr.bf16.mxu0 %v4267
    %4658 = vmatpush1.bf16.msra.mxu0 %v4266
    %4659 = vmatprep.subr.bf16.mxu0 %v4270
    %4660 = vmatpush1.bf16.msra.mxu0 %v4269
    %4661 = vmatprep.subr.bf16.mxu0 %v4273
    %4662 = vmatpush1.bf16.msra.mxu0 %v4272
    %4663 = vmatprep.subr.bf16.mxu0 %v4276
    %4664 = vmatpush1.bf16.msra.mxu0 %v4275
    %4665 = vmatprep.subr.bf16.mxu0 %v4279
    %4666 = vmatpush1.bf16.msra.mxu0 %v4278
    %4667 = vmatprep.subr.bf16.mxu0 0
    %4668 = vmatpush1.bf16.msra.mxu0 0
    %4669 = vmatprep.subr.bf16.mxu0 0
    %4670 = vmatpush1.bf16.msra.mxu0 0
    %4671 = vmatprep.subr.bf16.mxu0 0
    %4672 = vmatpush1.bf16.msra.mxu0 0
    %4673 = vmatprep.subr.bf16.mxu0 0
    %4674 = vmatpush1.bf16.msra.mxu0 0
    %4675 = vmatprep.subr.bf16.mxu0 0
    %4676 = vmatpush1.bf16.msra.mxu0 0
    %4677 = vmatprep.subr.bf16.mxu0 0
    %4678 = vmatpush1.bf16.msra.mxu0 0
    %4679 = vmatprep.subr.bf16.mxu0 0
    %4680 = vmatpush1.bf16.msra.mxu0 0
    %4681 = vmatprep.subr.bf16.mxu0 0
    %4682 = vmatpush1.bf16.msra.mxu0 0
    %4683 = vmatprep.mubr.bf16.mxu0 0
    %4684 = vmatmul.mubr.bf16.gmra.mrb[0].mxu0 %v4649
    %v4685 = vpop.f32.mrb[0].mxu0
    %v4686 = vadd.f32 %v4165, %v4685
    %v4687 = vpop.f32.mrb[0].mxu0
    %v4688 = vadd.f32 %v4169, %v4687
    %v4689 = vpop.f32.mrb[0].mxu0
    %v4690 = vpop.f32.mrb[0].mxu0
    %4691 = vdwg.mxu0
    %4692 = vmatprep.subr.bf16.mxu0 0
    %4693 = vmatpush1.bf16.msra.mxu0 %v4259
    %4694 = vmatprep.subr.bf16.mxu0 0
    %4695 = vmatpush1.bf16.msra.mxu0 %v4262
    %4696 = vmatprep.subr.bf16.mxu0 0
    %4697 = vmatpush1.bf16.msra.mxu0 %v4265
    %4698 = vmatprep.subr.bf16.mxu0 0
    %4699 = vmatpush1.bf16.msra.mxu0 %v4268
    %4700 = vmatprep.subr.bf16.mxu0 0
    %4701 = vmatpush1.bf16.msra.mxu0 %v4271
    %4702 = vmatprep.subr.bf16.mxu0 0
    %4703 = vmatpush1.bf16.msra.mxu0 %v4274
    %4704 = vmatprep.subr.bf16.mxu0 0
    %4705 = vmatpush1.bf16.msra.mxu0 %v4277
    %4706 = vmatprep.subr.bf16.mxu0 0
    %4707 = vmatpush1.bf16.msra.mxu0 %v4280
    %4708 = vmatprep.subr.bf16.mxu0 0
    %4709 = vmatpush1.bf16.msra.mxu0 0
    %4710 = vmatprep.subr.bf16.mxu0 0
    %4711 = vmatpush1.bf16.msra.mxu0 0
    %4712 = vmatprep.subr.bf16.mxu0 0
    %4713 = vmatpush1.bf16.msra.mxu0 0
    %4714 = vmatprep.subr.bf16.mxu0 0
    %4715 = vmatpush1.bf16.msra.mxu0 0
    %4716 = vmatprep.subr.bf16.mxu0 0
    %4717 = vmatpush1.bf16.msra.mxu0 0
    %4718 = vmatprep.subr.bf16.mxu0 0
    %4719 = vmatpush1.bf16.msra.mxu0 0
    %4720 = vmatprep.subr.bf16.mxu0 0
    %4721 = vmatpush1.bf16.msra.mxu0 0
    %4722 = vmatprep.subr.bf16.mxu0 0
    %4723 = vmatpush1.bf16.msra.mxu0 0
    %4724 = vmatprep.mubr.bf16.mxu0 0
    %4725 = vmatmul.mubr.bf16.gmra.mrb[0].mxu0 %v4649
    %v4726 = vpop.f32.mrb[0].mxu0
    %v4727 = vadd.f32 %v4173, %v4726
    %v4728 = vpop.f32.mrb[0].mxu0
    %v4729 = vpop.f32.mrb[0].mxu0
    %v4730 = vpop.f32.mrb[0].mxu0
    %4731 = vdwg.mxu0
    %v4733 = vrot.slane %v4686, 2
    %v4735 = vadd.f32 %v4082, %v4733
    %v4736 = vxor.u32 %v4735, 2147483648
    %v4737 = vmul.f32 %v4736, 1.442695
    %v4738 = vpow.pop %v4737
    %v4739 = vadd.f32 %v4738, 1.0
    %v4740 = vrcp.pop %v4739
    %v4741 = vmul.f32 1.0, %v4740
    %v4743 = vrot.slane %v4688, 2
    %v4745 = vadd.f32 %v4084, %v4743
    %v4746 = vxor.u32 %v4745, 2147483648
    %v4747 = vmul.f32 %v4746, 1.442695
    %v4748 = vpow.pop %v4747
    %v4749 = vadd.f32 %v4748, 1.0
    %v4750 = vrcp.pop %v4749
    %v4751 = vmul.f32 1.0, %v4750
    %v4753 = vrot.slane %v4727, 2
    %v4755 = vmul.f32 %v4741, %v4753
    %v4756 = vadd.f32 %v4123, %v4755
    %v4757 = vtanh.pop %v4756
    %v4758 = vsub.f32 1.0, %v4751
    %v4759 = vmul.f32 %v4758, %v4757
    %v4760 = vrot.slane %v4642, 6
    %v4762 = vmul.f32 %v4751, %v4760
    %v4763 = vadd.f32 %v4759, %v4762
    %v4765 = vrot.slane %v4763, 6
    %v4767 = vmax.f32 %v4646, %v4765
    %v4768 = vpack.c.bf16 %v4767, %v4767
    %v4769 = vld [vmem:[%s11] sm:$0xf]
    %v4770 = vld [vmem:[%s11 + $0x4] sm:$0xf]
    %v4771 = vld [vmem:[%s11 + $0x8] sm:$0xf]
    %v4772 = vld [vmem:[%s11 + $0xc] sm:$0xf]
    %v4773 = vld [vmem:[%s11 + $0x10] sm:$0xf]
    %v4774 = vld [vmem:[%s11 + $0x14] sm:$0xf]
    %v4775 = vld [vmem:[%s11 + $0x18] sm:$0xf]
    %v4776 = vld [vmem:[%s11 + $0x1c] sm:$0xf]
    %v4777 = vld [vmem:[%s11 + $0x20] sm:$0xf]
    %v4778 = vld [vmem:[%s11 + $0x24] sm:$0xf]
    %v4779 = vld [vmem:[%s11 + $0x28] sm:$0xf]
    %v4780 = vld [vmem:[%s11 + $0x2c] sm:$0xf]
    %v4781 = vld [vmem:[%s11 + $0x30] sm:$0xf]
    %v4782 = vld [vmem:[%s11 + $0x34] sm:$0xf]
    %v4783 = vld [vmem:[%s11 + $0x38] sm:$0xf]
    %v4784 = vld [vmem:[%s11 + $0x3c] sm:$0xf]
    %v4785 = vld [vmem:[#allocation13] sm:$0x1]
    %v4787 = vlaneseq
    %v4788 = vshrl.u32 %v4787, 7
    %v4789 = vsub.s32 0, %v4788
    %v4790 = vrot.slane %v4785, %v4789
    %v4808 = vunpack.c.l.b16 %v4769
    %v4809 = vunpack.c.l.b16 %v4770
    %v4810 = vunpack.c.l.b16 %v4771
    %v4811 = vunpack.c.l.b16 %v4772
    %v4812 = vunpack.c.l.b16 %v4773
    %v4813 = vunpack.c.l.b16 %v4774
    %v4814 = vunpack.c.l.b16 %v4775
    %v4815 = vunpack.c.l.b16 %v4776
    %v4816 = vunpack.c.l.b16 %v4777
    %v4817 = vunpack.c.l.b16 %v4778
    %v4818 = vunpack.c.l.b16 %v4779
    %v4819 = vunpack.c.l.b16 %v4780
    %v4820 = vunpack.c.l.b16 %v4781
    %v4821 = vunpack.c.l.b16 %v4782
    %v4822 = vunpack.c.l.b16 %v4783
    %v4823 = vunpack.c.l.b16 %v4784
    %v4824 = vpack.c.b16 %v4809, %v4808
    %v4825 = vpack.c.b16 %v4811, %v4810
    %v4826 = vpack.c.b16 %v4813, %v4812
    %v4827 = vpack.c.b16 %v4815, %v4814
    %v4828 = vpack.c.b16 %v4817, %v4816
    %v4829 = vpack.c.b16 %v4819, %v4818
    %v4830 = vpack.c.b16 %v4821, %v4820
    %v4831 = vpack.c.b16 %v4823, %v4822
    %4840 = vmatprep.subr.bf16.mxu0 0
    %4841 = vmatpush1.bf16.msra.mxu0 %v4824
    %4842 = vmatprep.subr.bf16.mxu0 0
    %4843 = vmatpush1.bf16.msra.mxu0 %v4825
    %4844 = vmatprep.subr.bf16.mxu0 0
    %4845 = vmatpush1.bf16.msra.mxu0 %v4826
    %4846 = vmatprep.subr.bf16.mxu0 0
    %4847 = vmatpush1.bf16.msra.mxu0 %v4827
    %4848 = vmatprep.subr.bf16.mxu0 0
    %4849 = vmatpush1.bf16.msra.mxu0 %v4828
    %4850 = vmatprep.subr.bf16.mxu0 0
    %4851 = vmatpush1.bf16.msra.mxu0 %v4829
    %4852 = vmatprep.subr.bf16.mxu0 0
    %4853 = vmatpush1.bf16.msra.mxu0 %v4830
    %4854 = vmatprep.subr.bf16.mxu0 0
    %4855 = vmatpush1.bf16.msra.mxu0 %v4831
    %4856 = vmatprep.subr.bf16.mxu0 0
    %4857 = vmatpush1.bf16.msra.mxu0 0
    %4858 = vmatprep.subr.bf16.mxu0 0
    %4859 = vmatpush1.bf16.msra.mxu0 0
    %4860 = vmatprep.subr.bf16.mxu0 0
    %4861 = vmatpush1.bf16.msra.mxu0 0
    %4862 = vmatprep.subr.bf16.mxu0 0
    %4863 = vmatpush1.bf16.msra.mxu0 0
    %4864 = vmatprep.subr.bf16.mxu0 0
    %4865 = vmatpush1.bf16.msra.mxu0 0
    %4866 = vmatprep.subr.bf16.mxu0 0
    %4867 = vmatpush1.bf16.msra.mxu0 0
    %4868 = vmatprep.subr.bf16.mxu0 0
    %4869 = vmatpush1.bf16.msra.mxu0 0
    %4870 = vmatprep.subr.bf16.mxu0 0
    %4871 = vmatpush1.bf16.msra.mxu0 0
    %4872 = vmatprep.mubr.bf16.mxu0 0
    %4873 = vmatmul.mubr.bf16.gmra.mrb[0].mxu0 %v4768
    %v4874 = vpop.f32.mrb[0].mxu0
    %v4875 = vadd.f32 %v4790, %v4874
    %v4876 = vpop.f32.mrb[0].mxu0
    %v4877 = vpop.f32.mrb[0].mxu0
    %v4878 = vpop.f32.mrb[0].mxu0
    %4879 = vdwg.mxu0
    %4880 = vst [vmem:[#allocation14] sm:$0x3] %v4875
    // Predicated region
    $region82: #{crnn2_forward.1} parent=1 // pred_check
      _
    $region83: #{crnn2_forward.1} parent=1 // pred_check_branch
      %4882 = sbr.rel (0) target = $region85
    $region84: #{crnn2_forward.1} parent=1 // pred_region
      %s4884 = ssub.s32 32, 32
      %4885 = vsyncadd [#allocation4], %s4884
      %s4887 = sshll.u32 [#allocation14], 4
      %s4888 = int_to_ptr.vmem [resolvable:$true] %s4887
      %4890 = dma.vmem_to_hbm [thread:$0]  %s4888, 32, %s13, [#allocation4]
    $region85: #{crnn2_forward.1} parent=1 // pred_fallthru
      _
    // Predicated region
    $region86: #{crnn2_forward.1} parent=1 // pred_check
      _
    $region87: #{crnn2_forward.1} parent=1 // pred_check_branch
      %4892 = sbr.rel (0) target = $region89
    $region88: #{crnn2_forward.1} parent=1 // pred_region
      %4893 = dma.done [#allocation4], 32
    $region89: #{crnn2_forward.1} parent=1 // pred_fallthru
      _
    %4894 = vsyncpa [#allocation3], 1
    %4895 = vsyncpa [#allocation6], 1
    %4896 = vsyncpa [#allocation9], 1
    %4897 = vsyncpa [#allocation12], 1
    %4898 = vsyncpa [#allocation4], 1

</llo_original>
